<compile_context>
chip_gen: v7x
topology: tpu7x:2x2x1
jax: 0.10.0
libtpu: 0.0.40
codegen_flags: <defaults>
</compile_context>

<pallas_src>
import jax
import jax.numpy as jnp
from jax import lax
from jax.experimental import pallas as pl
from jax.experimental.pallas import tpu as pltpu


def _round_up(v, m):
    return (v + m - 1) // m * m


def _cdiv(a, b):
    return -(-a // b)


# ---------------------------------------------------------------------------
# Kernel factory: one specialized kernel per pooling mode / dtype path.
# ---------------------------------------------------------------------------
def _make_pool_kernel(mode, B_pad, C, N, TN, n_tiles, n_per, attention, bf16_mm):
    need_sum = mode in ('mean', 'sum', 'concat')   # segment-sum (MXU path)
    need_cnt = mode in ('mean', 'concat')          # node counts (for mean)
    need_max = mode in ('max', 'concat')           # running-max accumulator
    mm_dtype = jnp.bfloat16 if bf16_mm else jnp.float32
    mm_prec = None if bf16_mm else jax.lax.Precision.HIGHEST

    def kernel(*refs):
        it = iter(refs)
        lo_ref = next(it)                                # SMEM [n_tiles] i32
        hi_ref = next(it)                                # SMEM [n_tiles] i32
        ids_row_ref = next(it) if need_sum else None     # [1, TN]  int32
        ids_col_ref = next(it) if need_max else None     # [TN, 1]  int32
        x_ref = next(it)                                 # [TN, C]
        w_ref = next(it) if attention else None          # [1, C]   f32
        b_ref = next(it) if attention else None          # [1, 1]   f32
        sum_ref = next(it) if need_sum else None         # [1, B_pad, C] f32
        cnt_ref = next(it) if need_cnt else None         # [1, B_pad, 1] f32
        max_ref = next(it) if need_max else None         # [1, B_pad, C] f32

        p = pl.program_id(0)       # partition (parallel)
        j = pl.program_id(1)       # node-tile within partition (reduction)

        @pl.when(j == 0)
        def _init():
            if need_sum:
                sum_ref[...] = jnp.zeros_like(sum_ref)
            if need_cnt:
                cnt_ref[...] = jnp.zeros_like(cnt_ref)
            if need_max:
                max_ref[...] = jnp.full(max_ref.shape, -jnp.inf,
                                        dtype=max_ref.dtype)

        # Global tile index / row offset. Ragged last tile and the clamped
        # duplicate tile of the parallel split are handled purely by these
        # validity masks (no host-side padding of x).
        t = p * n_per + j
        row0 = t * TN
        valid_row = (row0 + lax.broadcasted_iota(jnp.int32, (1, TN), 1)) < N
        valid_col = (row0 + lax.broadcasted_iota(jnp.int32, (TN, 1), 0)) < N

        # Zero OOB rows right after load: protects the MXU accumulation from
        # 0 * NaN garbage and the attention weighting from garbage logits.
        x0 = jnp.where(valid_col, x_ref[...], 0)

        if attention:
            # Fused Linear(C -> 1) + Tanh weighting; tanh runs on the EUP.
            wv = w_ref[...].astype(jnp.float32)                       # [1, C]
            logits = jnp.sum(x0.astype(jnp.float32) * wv, axis=-1,
                             keepdims=True)                           # [TN, 1]
            wt = jnp.tanh(logits + b_ref[...])                        # [TN, 1]
            x_mm = (x0.astype(jnp.float32) * wt).astype(mm_dtype)
        else:
            x_mm = x0.astype(mm_dtype)

        if need_sum:
            # One-hot segment matrix [B_pad, TN]; segment-sum as an MXU matmul
            # (single-pass bf16 when the input is bf16, f32 HIGHEST otherwise).
            ids_row = ids_row_ref[...]                                # [1, TN]
            onehot_b = (lax.broadcasted_iota(jnp.int32, (B_pad, TN), 0)
                        == ids_row) & valid_row                       # bool
            onehot = onehot_b.astype(mm_dtype)
            sum_ref[0] += jnp.dot(onehot, x_mm,
                                  preferred_element_type=jnp.float32,
                                  precision=mm_prec)
            if need_cnt:
                # Exact counts: f32 lane-reduce of the boolean one-hot (XLU).
                cnt_ref[0] += jnp.sum(onehot_b.astype(jnp.float32), axis=1,
                                      keepdims=True)

        if need_max:
            xf = x0.astype(jnp.float32)
            ids_col = ids_col_ref[...]                                # [TN, 1]
            row_iota_b = lax.broadcasted_iota(jnp.int32, (B_pad, 1), 0)
            # Only iterate over graph ids actually present in this tile
            # (scalar-prefetched per-tile range); clamp the SMEM index so the
            # duplicate tile of the parallel split never reads OOB.
            t_c = jnp.minimum(t, n_tiles - 1)
            lo = lo_ref[t_c]
            hi = hi_ref[t_c]

            def body(b, acc):
                m = (ids_col == b) & valid_col                        # [TN, 1]
                mx = jnp.max(jnp.where(m, xf, -jnp.inf), axis=0,
                             keepdims=True)                           # [1, C]
                return jnp.where(row_iota_b == b, jnp.maximum(acc, mx), acc)

            max_ref[0] = lax.fori_loop(lo, hi + 1, body, max_ref[0])

    return kernel


# ---------------------------------------------------------------------------
# Host wrapper: no padding of x; per-tile graph ranges are scalar-prefetched;
# node tiles split over P partitions ("parallel") x node-tiles ("arbitrary").
# ---------------------------------------------------------------------------
def segment_pool(x, batch, num_graphs, mode, att_w=None, att_b=None,
                 tile_n=None, num_partitions=2):
    N, C = x.shape
    attention = att_w is not None
    need_sum = mode in ('mean', 'sum', 'concat')
    need_cnt = mode in ('mean', 'concat')
    need_max = mode in ('max', 'concat')

    B_pad = max(8, _round_up(int(num_graphs), 8))
    # TODO(synk): for very large num_graphs * C the resident [B_pad, C]
    # accumulators should additionally be blocked over graphs to stay inside
    # v7x's 64 MiB VMEM; not needed at these sizes.

    itemsize = jnp.dtype(x.dtype).itemsize
    if tile_n is None:
        # Big tiles amortize the per-grid-step overhead; cap double-buffered
        # x tiles around 8 MiB so every generation's VMEM budget is safe.
        cap = max(128, (8 * 1024 * 1024) // max(1, 2 * C * itemsize))
        tile_n = min(1024, cap)
    TN = _round_up(min(max(int(tile_n), 128), _round_up(N, 128)), 128)

    n_tiles = _cdiv(N, TN)
    P = max(1, min(int(num_partitions), n_tiles))
    n_per = _cdiv(n_tiles, P)

    bi = batch.astype(jnp.int32)

    # Per-tile graph-id range (for the bounded max loop); only the tiny int32
    # batch vector is padded/reshaped here -- x itself is never copied.
    pad_len = n_tiles * TN
    pos = jnp.arange(pad_len, dtype=jnp.int32)
    bi_pad = jnp.pad(bi, (0, pad_len - N))
    valid = pos < N
    lo_fill = jnp.where(valid, bi_pad, B_pad - 1).reshape(n_tiles, TN)
    hi_fill = jnp.where(valid, bi_pad, 0).reshape(n_tiles, TN)
    tile_lo = jnp.clip(jnp.min(lo_fill, axis=1), 0, B_pad - 1).astype(jnp.int32)
    tile_hi = jnp.clip(jnp.max(hi_fill, axis=1), 0, B_pad - 1).astype(jnp.int32)

    def clamp_t(p, j):
        # Clamp the global tile index so the (at most one) padding tile of the
        # parallel split re-reads the last real tile; the kernel masks it out.
        return jnp.minimum(p * n_per + j, n_tiles - 1)

    in_specs, args = [], []
    if need_sum:
        in_specs.append(pl.BlockSpec((1, TN), lambda p, j, lo, hi: (0, clamp_t(p, j))))
        args.append(bi.reshape(1, N))
    if need_max:
        in_specs.append(pl.BlockSpec((TN, 1), lambda p, j, lo, hi: (clamp_t(p, j), 0)))
        args.append(bi.reshape(N, 1))
    in_specs.append(pl.BlockSpec((TN, C), lambda p, j, lo, hi: (clamp_t(p, j), 0)))
    args.append(x)
    if attention:
        in_specs.append(pl.BlockSpec((1, C), lambda p, j, lo, hi: (0, 0)))
        args.append(att_w.astype(jnp.float32).reshape(1, C))
        in_specs.append(pl.BlockSpec((1, 1), lambda p, j, lo, hi: (0, 0)))
        args.append(att_b.astype(jnp.float32).reshape(1, 1))

    out_map = lambda p, j, lo, hi: (p, 0, 0)
    out_shapes, out_specs = [], []
    if need_sum:
        out_shapes.append(jax.ShapeDtypeStruct((P, B_pad, C), jnp.float32))
        out_specs.append(pl.BlockSpec((1, B_pad, C), out_map))
    if need_cnt:
        out_shapes.append(jax.ShapeDtypeStruct((P, B_pad, 1), jnp.float32))
        out_specs.append(pl.BlockSpec((1, B_pad, 1), out_map))
    if need_max:
        out_shapes.append(jax.ShapeDtypeStruct((P, B_pad, C), jnp.float32))
        out_specs.append(pl.BlockSpec((1, B_pad, C), out_map))

    bf16_mm = (x.dtype == jnp.bfloat16)
    kernel = _make_pool_kernel(mode, B_pad, C, N, TN, n_tiles, n_per,
                               attention, bf16_mm)

    outs = pl.pallas_call(
        kernel,
        out_shape=tuple(out_shapes),
        grid_spec=pltpu.PrefetchScalarGridSpec(
            num_scalar_prefetch=2,
            grid=(P, n_per),
            in_specs=in_specs,
            out_specs=out_specs),
        compiler_params=pltpu.CompilerParams(
            dimension_semantics=("parallel", "arbitrary"),
            vmem_limit_bytes=32 * 1024 * 1024),
    )(tile_lo, tile_hi, *args)

    # Tiny epilogue: combine per-partition partials, finalize, slice, cast.
    it = iter(outs)
    sum_tot = next(it).sum(axis=0) if need_sum else None
    cnt_tot = next(it).sum(axis=0) if need_cnt else None
    max_tot = next(it).max(axis=0) if need_max else None

    if mode == 'sum':
        res = sum_tot
    elif mode == 'mean':
        res = sum_tot / jnp.maximum(cnt_tot, 1.0)
    elif mode == 'max':
        res = max_tot
    else:  # 'concat' : mean || max
        mean = sum_tot / jnp.maximum(cnt_tot, 1.0)
        res = jnp.concatenate([mean, max_tot], axis=-1)
    return res[:num_graphs].astype(x.dtype)


# ---------------------------------------------------------------------------
# Pool module (mirrors the PyTorch forward semantics).
# ---------------------------------------------------------------------------
class Pool:
    def __init__(self, in_channels, type='mean_pool', ratio=0.8):
        self.type = type
        self.in_channels = in_channels
        self.ratio = ratio
        if type == 'attention':
            key = jax.random.PRNGKey(42)
            k1, k2 = jax.random.split(key)
            bound = 1.0 / float(in_channels) ** 0.5
            # nn.Linear(in_channels, 1): weight [1, C], bias [1]
            self.att_w = jax.random.uniform(k1, (1, in_channels), jnp.float32,
                                            -bound, bound)
            self.att_b = jax.random.uniform(k2, (1, 1), jnp.float32,
                                            -bound, bound)
        # TODO(synk): 'sag_pool' needs SAGPooling (GNN-scored top-k node
        # selection), whose class is not defined in the source; not implemented.

    def __call__(self, x, edge_index, batch=None, num_graphs=None):
        N, C = x.shape
        if batch is None:
            batch = jnp.zeros((N,), dtype=jnp.int32)
            if num_graphs is None:
                num_graphs = 1
        if num_graphs is None:
            # Fallback only: prefer passing num_graphs statically to avoid a
            # blocking device->host sync per call.
            num_graphs = int(jax.device_get(jnp.max(batch))) + 1

        if self.type == 'sag_pool':
            raise NotImplementedError("sag_pool not implemented (see TODO)")
        if self.type == 'mean_pool':
            return segment_pool(x, batch, num_graphs, 'mean')
        if self.type == 'max_pool':
            return segment_pool(x, batch, num_graphs, 'max')
        if self.type == 'sum_pool':
            return segment_pool(x, batch, num_graphs, 'sum')
        if self.type == 'attention':
            return segment_pool(x, batch, num_graphs, 'mean',
                                att_w=self.att_w, att_b=self.att_b)
        # default: mean || max concat
        return segment_pool(x, batch, num_graphs, 'concat')


if __name__ == "__main__":
    key = jax.random.PRNGKey(0)
    N, C = 600, 128
    sizes = (250, 200, 150)
    B = len(sizes)
    x = jax.random.normal(key, (N, C), jnp.float32)
    batch = jnp.concatenate(
        [jnp.full((s,), g, dtype=jnp.int32) for g, s in enumerate(sizes)])
    edge_index = jnp.zeros((2, 4), dtype=jnp.int32)  # unused by these variants

    # Plain-JAX references.
    ref_sum = jax.ops.segment_sum(x, batch, num_segments=B)
    ref_cnt = jax.ops.segment_sum(jnp.ones((N, 1), jnp.float32), batch,
                                  num_segments=B)
    ref_mean = ref_sum / jnp.maximum(ref_cnt, 1.0)
    ref_max = jax.ops.segment_max(x, batch, num_segments=B)
    ref_cat = jnp.concatenate([ref_mean, ref_max], axis=-1)

    out_mean = jax.block_until_ready(
        Pool(C, 'mean_pool')(x, edge_index, batch, num_graphs=B))
    out_max = jax.block_until_ready(
        Pool(C, 'max_pool')(x, edge_index, batch, num_graphs=B))
    out_sum = jax.block_until_ready(
        Pool(C, 'sum_pool')(x, edge_index, batch, num_graphs=B))
    out_cat = jax.block_until_ready(
        Pool(C, 'concat')(x, edge_index, batch, num_graphs=B))

    att = Pool(C, 'attention')
    out_att = jax.block_until_ready(att(x, edge_index, batch, num_graphs=B))
    w_node = jnp.tanh(jnp.sum(x * att.att_w, axis=-1, keepdims=True)
                      + att.att_b[0, 0])
    ref_att = jax.ops.segment_sum(x * w_node, batch, num_segments=B) \
        / jnp.maximum(ref_cnt, 1.0)

    assert out_mean.shape == (B, C) and jnp.allclose(out_mean, ref_mean, atol=1e-4)
    assert out_max.shape == (B, C) and jnp.allclose(out_max, ref_max, atol=1e-4)
    assert out_sum.shape == (B, C) and jnp.allclose(out_sum, ref_sum, atol=1e-3)
    assert out_cat.shape == (B, 2 * C) and jnp.allclose(out_cat, ref_cat, atol=1e-4)
    assert out_att.shape == (B, C) and jnp.allclose(out_att, ref_att, atol=1e-4)

    # Multi-tile path: TN=256 -> 3 node tiles split over 2 grid partitions
    # (exercises the parallel split + partial combine, the clamped duplicate
    # tile, the ragged last tile and the bounded per-tile max loop).
    out_cat2 = jax.block_until_ready(segment_pool(x, batch, B, 'concat', tile_n=256))
    assert jnp.allclose(out_cat2, ref_cat, atol=1e-4)

    # Unsorted batch: the bounded graph-range loop must remain correct.
    perm = jax.random.permutation(jax.random.PRNGKey(1), N)
    out_cat3 = jax.block_until_ready(
        segment_pool(x[perm], batch[perm], B, 'concat', tile_n=256))
    assert jnp.allclose(out_cat3, ref_cat, atol=1e-4)

    # bf16 input -> single-pass bf16 one-hot matmul path.
    xb = x.astype(jnp.bfloat16)
    out_b = jax.block_until_ready(segment_pool(xb, batch, B, 'mean'))
    ref_b = jax.ops.segment_sum(xb.astype(jnp.float32), batch, num_segments=B) \
        / jnp.maximum(ref_cnt, 1.0)
    assert out_b.shape == (B, C) and jnp.allclose(
        out_b.astype(jnp.float32), ref_b, atol=2e-2, rtol=2e-2)

    # batch=None path: all nodes -> single graph (no host sync needed).
    out_none = jax.block_until_ready(Pool(C, 'mean_pool')(x, edge_index, None))
    assert out_none.shape == (1, C) and jnp.allclose(
        out_none, jnp.mean(x, axis=0, keepdims=True), atol=1e-4)

    print("KERNEL_OK")
</pallas_src>

<mosaic_0001>
module attributes {stable_mosaic.version = 11 : i64} {
  func.func @kernel(%arg0: i32, %arg1: i32, %arg2: memref<1xi32, #tpu.memory_space<smem>>, %arg3: memref<1xi32, #tpu.memory_space<smem>>, %arg4: memref<1x640xi32, #tpu.memory_space<vmem>>, %arg5: memref<640x128xf32, #tpu.memory_space<vmem>>, %arg6: memref<1x8x128xf32, #tpu.memory_space<vmem>>, %arg7: memref<1x8x1xf32, #tpu.memory_space<vmem>>) attributes {dimension_semantics = [#tpu.dimension_semantics<parallel>, #tpu.dimension_semantics<arbitrary>], iteration_bounds = array<i64: 1, 1>, scalar_prefetch = 2 : i64, scratch_operands = 0 : i64, tpu.core_type = #tpu.core_type<tc>, window_params = [{transform_indices = @transform_0, window_bounds = array<i64: 1, 640>}, {transform_indices = @transform_1, window_bounds = array<i64: 640, 128>}, {transform_indices = @transform_2, window_bounds = array<i64: 1, 8, 128>}, {transform_indices = @transform_3, window_bounds = array<i64: 1, 8, 1>}]} {
    %c0_i32 = arith.constant 0 : i32
    %0 = arith.cmpi eq, %arg1, %c0_i32 : i32
    %1 = arith.extui %0 : i1 to i32
    %c0_i32_0 = arith.constant 0 : i32
    %2 = arith.cmpi ne, %1, %c0_i32_0 : i32
    scf.if %2 {
      %cst_19 = arith.constant 0.000000e+00 : f32
      %47 = vector.broadcast %cst_19 : f32 to vector<1x8x128xf32>
      %c0_20 = arith.constant 0 : index
      %c0_21 = arith.constant 0 : index
      %c0_22 = arith.constant 0 : index
      %48 = vector.load %arg6[%c0_20, %c0_21, %c0_22] : memref<1x8x128xf32, #tpu.memory_space<vmem>>, vector<1x8x128xf32>
      tpu.vector_store %arg6[%c0_20, %c0_21, %c0_22], %47 {strides = array<i32>} : memref<1x8x128xf32, #tpu.memory_space<vmem>>, vector<1x8x128xf32>,
      %cst_23 = arith.constant 0.000000e+00 : f32
      %49 = vector.broadcast %cst_23 : f32 to vector<1x8x1xf32>
      %c0_24 = arith.constant 0 : index
      %c0_25 = arith.constant 0 : index
      %c0_26 = arith.constant 0 : index
      %50 = vector.load %arg7[%c0_24, %c0_25, %c0_26] : memref<1x8x1xf32, #tpu.memory_space<vmem>>, vector<1x8x1xf32>
      tpu.vector_store %arg7[%c0_24, %c0_25, %c0_26], %49 {strides = array<i32>} : memref<1x8x1xf32, #tpu.memory_space<vmem>>, vector<1x8x1xf32>,
    } else {
    }
    %c1_i32 = arith.constant 1 : i32
    %3 = arith.muli %arg0, %c1_i32 : i32
    %4 = arith.addi %3, %arg1 : i32
    %c640_i32 = arith.constant 640 : i32
    %5 = arith.muli %4, %c640_i32 : i32
    %6 = tpu.iota {dimensions = array<i32: 1>} : vector<1x640xi32>
    %7 = vector.broadcast %5 : i32 to vector<1x640xi32>
    %8 = arith.addi %7, %6 : vector<1x640xi32>
    %c600_i32 = arith.constant 600 : i32
    %9 = vector.broadcast %c600_i32 : i32 to vector<1x640xi32>
    %10 = arith.cmpi slt, %8, %9 : vector<1x640xi32>
    %11 = tpu.iota {dimensions = array<i32: 0>} : vector<640x1xi32>
    %12 = vector.broadcast %5 : i32 to vector<640x1xi32>
    %13 = arith.addi %12, %11 : vector<640x1xi32>
    %c600_i32_1 = arith.constant 600 : i32
    %14 = vector.broadcast %c600_i32_1 : i32 to vector<640x1xi32>
    %15 = arith.cmpi slt, %13, %14 : vector<640x1xi32>
    %c0 = arith.constant 0 : index
    %c0_2 = arith.constant 0 : index
    %16 = vector.load %arg5[%c0, %c0_2] : memref<640x128xf32, #tpu.memory_space<vmem>>, vector<640x128xf32>
    %c0_i32_3 = arith.constant 0 : i32
    %17 = arith.sitofp %c0_i32_3 : i32 to f32
    %18 = vector.shape_cast %15 : vector<640x1xi1> to vector<640x1xi1>
    %19 = vector.broadcast %18 : vector<640x1xi1> to vector<640x128xi1>
    %20 = vector.broadcast %17 : f32 to vector<640x128xf32>
    %21 = arith.select %19, %16, %20 : vector<640x128xi1>, vector<640x128xf32>
    %c0_4 = arith.constant 0 : index
    %c0_5 = arith.constant 0 : index
    %22 = vector.load %arg4[%c0_4, %c0_5] : memref<1x640xi32, #tpu.memory_space<vmem>>, vector<1x640xi32>
    %23 = tpu.iota {dimensions = array<i32: 0>} : vector<8x640xi32>
    %24 = vector.broadcast %22 : vector<1x640xi32> to vector<8x640xi32>
    %25 = arith.cmpi eq, %23, %24 : vector<8x640xi32>
    %26 = vector.broadcast %10 : vector<1x640xi1> to vector<8x640xi1>
    %27 = arith.andi %25, %26 : vector<8x640xi1>
    %28 = arith.extui %27 : vector<8x640xi1> to vector<8x640xi32>
    %29 = arith.sitofp %28 : vector<8x640xi32> to vector<8x640xf32>
    %c0_6 = arith.constant 0 : index
    %c0_7 = arith.constant 0 : index
    %c0_8 = arith.constant 0 : index
    %30 = vector.load %arg6[%c0_6, %c0_7, %c0_8] : memref<1x8x128xf32, #tpu.memory_space<vmem>>, vector<1x8x128xf32>
    %31 = vector.shape_cast %30 : vector<1x8x128xf32> to vector<8x128xf32>
    %cst = arith.constant dense<0.000000e+00> : vector<8x128xf32>
    %32 = tpu.matmul %29, %21, %cst {dimension_numbers = #tpu.dot_dimension_numbers<[1], [0], [0], [1], [0, 0, 1, 1], [], []>, precision = #tpu.contract_precision<fp32>} : vector<8x640xf32>, vector<640x128xf32>, vector<8x128xf32> -> vector<8x128xf32>
    %33 = arith.addf %31, %32 : vector<8x128xf32>
    %c0_9 = arith.constant 0 : index
    %c0_10 = arith.constant 0 : index
    %c0_11 = arith.constant 0 : index
    %34 = vector.load %arg6[%c0_9, %c0_10, %c0_11] : memref<1x8x128xf32, #tpu.memory_space<vmem>>, vector<1x8x128xf32>
    %35 = vector.shape_cast %34 : vector<1x8x128xf32> to vector<8x128xf32>
    %36 = vector.shape_cast %33 : vector<8x128xf32> to vector<1x8x128xf32>
    tpu.vector_store %arg6[%c0_9, %c0_10, %c0_11], %36 {strides = array<i32>} : memref<1x8x128xf32, #tpu.memory_space<vmem>>, vector<1x8x128xf32>,
    %c0_12 = arith.constant 0 : index
    %c0_13 = arith.constant 0 : index
    %c0_14 = arith.constant 0 : index
    %37 = vector.load %arg7[%c0_12, %c0_13, %c0_14] : memref<1x8x1xf32, #tpu.memory_space<vmem>>, vector<1x8x1xf32>
    %38 = vector.shape_cast %37 : vector<1x8x1xf32> to vector<8x1xf32>
    %39 = arith.extui %27 : vector<8x640xi1> to vector<8x640xi32>
    %40 = arith.sitofp %39 : vector<8x640xi32> to vector<8x640xf32>
    %cst_15 = arith.constant dense<0.000000e+00> : vector<8xf32>
    %41 = vector.multi_reduction <add>, %40, %cst_15 [1] : vector<8x640xf32> to vector<8xf32>
    %42 = vector.shape_cast %41 : vector<8xf32> to vector<8x1xf32>
    %43 = arith.addf %38, %42 : vector<8x1xf32>
    %c0_16 = arith.constant 0 : index
    %c0_17 = arith.constant 0 : index
    %c0_18 = arith.constant 0 : index
    %44 = vector.load %arg7[%c0_16, %c0_17, %c0_18] : memref<1x8x1xf32, #tpu.memory_space<vmem>>, vector<1x8x1xf32>
    %45 = vector.shape_cast %44 : vector<1x8x1xf32> to vector<8x1xf32>
    %46 = vector.shape_cast %43 : vector<8x1xf32> to vector<1x8x1xf32>
    tpu.vector_store %arg7[%c0_16, %c0_17, %c0_18], %46 {strides = array<i32>} : memref<1x8x1xf32, #tpu.memory_space<vmem>>, vector<1x8x1xf32>,
    return
  }
  func.func @transform_0(%arg0: i32, %arg1: i32, %arg2: memref<1xi32, #tpu.memory_space<smem>>, %arg3: memref<1xi32, #tpu.memory_space<smem>>) -> (i32, i32) {
    %c1_i32 = arith.constant 1 : i32
    %0 = arith.muli %arg0, %c1_i32 : i32
    %1 = arith.addi %0, %arg1 : i32
    %c0_i32 = arith.constant 0 : i32
    %2 = arith.minsi %1, %c0_i32 : i32
    %c0_i32_0 = arith.constant 0 : i32
    %c0_i32_1 = arith.constant 0 : i32
    return %c0_i32_0, %2 : i32, i32
  }
  func.func @transform_1(%arg0: i32, %arg1: i32, %arg2: memref<1xi32, #tpu.memory_space<smem>>, %arg3: memref<1xi32, #tpu.memory_space<smem>>) -> (i32, i32) {
    %c1_i32 = arith.constant 1 : i32
    %0 = arith.muli %arg0, %c1_i32 : i32
    %1 = arith.addi %0, %arg1 : i32
    %c0_i32 = arith.constant 0 : i32
    %2 = arith.minsi %1, %c0_i32 : i32
    %c0_i32_0 = arith.constant 0 : i32
    %c0_i32_1 = arith.constant 0 : i32
    return %2, %c0_i32_0 : i32, i32
  }
  func.func @transform_2(%arg0: i32, %arg1: i32, %arg2: memref<1xi32, #tpu.memory_space<smem>>, %arg3: memref<1xi32, #tpu.memory_space<smem>>) -> (i32, i32, i32) {
    %c0_i32 = arith.constant 0 : i32
    %c0_i32_0 = arith.constant 0 : i32
    %c0_i32_1 = arith.constant 0 : i32
    return %arg0, %c0_i32, %c0_i32_0 : i32, i32, i32
  }
  func.func @transform_3(%arg0: i32, %arg1: i32, %arg2: memref<1xi32, #tpu.memory_space<smem>>, %arg3: memref<1xi32, #tpu.memory_space<smem>>) -> (i32, i32, i32) {
    %c0_i32 = arith.constant 0 : i32
    %c0_i32_0 = arith.constant 0 : i32
    %c0_i32_1 = arith.constant 0 : i32
    return %arg0, %c0_i32, %c0_i32_0 : i32, i32, i32
  }
}

</mosaic_0001>

<llo_original>
// kernel: tpu_custom_call.1
$region0: #{tpu_custom_call.1}
  #allocation0 [shape = 'u32[]', space=smem, size = 0x4, offset = 0x4, fixed_abs, tag = 'smem constant byte address 0x4 - core index']
  #allocation1 [shape = 'u32[144,128]{1,0:T(1,128)}', space=vmem, size = 0x12000, scoped, tag = 'internal scratch']
  #allocation2 [shape = 's32[1]{0}', space=sflag, size = 0x4, scoped, tag = 'scoped memory for tpu_custom_call.1']
  #allocation3 [shape = 's32[1]{0:T(128)S(6)}', space=smem, size = 0x200, scoped, tag = 'prefetched SMEM operand 0']
  #allocation4 [shape = 's32[1]{0:T(128)S(6)}', space=smem, size = 0x200, scoped, tag = 'prefetched SMEM operand 1']
  %s0 = inlined_call_operand.<no memory space> [shape: s32[1], index: 0, kind: input, shape index: {}]
  %s1 = inlined_call_operand.<no memory space> [shape: s32[1], index: 1, kind: input, shape index: {}]
  %s2 = inlined_call_operand.vmem [shape: s32[1,600], index: 2, kind: input, shape index: {}]
  %s3 = inlined_call_operand.hbm [shape: f32[600,128], index: 3, kind: input, shape index: {}]
  %s4 = inlined_call_operand.hbm [shape: f32[1,8,128], index: 4, kind: output, shape index: {0}]
  %s5 = inlined_call_operand.vmem [shape: f32[1,8,1], index: 5, kind: output, shape index: {1}]
  %6 = xla_tuple %s4, %s5
  %s7 = sld [smem:[#allocation0]]
  $region34: #{tpu_custom_call.1} parent=0
    _
  %s9 = ssub.s32 1, %s7
  %s10 = scalar_select 0, %s9, %s7
  %11 = sst [smem:[#allocation3]] %s0
  %12 = sst [smem:[#allocation4]] %s1
  $region1: #{tpu_custom_call.1} parent=0
    #allocation5 [shape = 'u8[327680]{0}', space=vmem, size = 0x50000, scoped, tag = 'input window, operand 3, single buffered']
    #allocation6 [shape = 's32[1]{0}', space=sflag, size = 0x4, scoped, tag = 'scoped memory for tpu_custom_call.1']
    #allocation7 [shape = 's32[1]{0}', space=sflag, size = 0x4, scoped, tag = 'scoped memory for tpu_custom_call.1']
    #allocation8 [shape = 'u8[4096]{0}', space=vmem, size = 0x1000, scoped, tag = 'output window, operand 0, single buffered']
    %13 = vsyncpa [#allocation6], 0
    %14 = vsyncpa [#allocation7], 0
    // Predicated region
    $region2: #{tpu_custom_call.1} parent=1 // pred_check
      _
    $region3: #{tpu_custom_call.1} parent=1 // pred_check_branch
      %16 = sbr.rel (0) target = $region5
    $region4: #{tpu_custom_call.1} parent=1 // pred_region
      %s17 = sadd.s32 0, 0
      %p18 = scmp.lt.s32.totalorder %s17, 0
      %s19 = scalar_select %p18, %s17, 0
      %s20 = smul.u32 5, %s19
      %p21 = scmp.lt.s32.totalorder %s20, 4
      %s22 = scalar_select %p21, %s20, 4
      %s23 = scalar_lea.vmem %s2, %s22
      %s24 = sadd.s32 0, 0
      %p25 = scmp.lt.s32.totalorder %s24, 0
      %s26 = scalar_select %p25, %s24, 0
      %s27 = smul.u32 5, %s26
    $region5: #{tpu_custom_call.1} parent=1 // pred_fallthru
      _
    // Predicated region
    $region6: #{tpu_custom_call.1} parent=1 // pred_check
      _
    $region7: #{tpu_custom_call.1} parent=1 // pred_check_branch
      %29 = sbr.rel (0) target = $region9
    $region8: #{tpu_custom_call.1} parent=1 // pred_region
      %s30 = sadd.s32 0, 0
      %p31 = scmp.lt.s32.totalorder %s30, 0
      %s32 = scalar_select %p31, %s30, 0
      %s33 = smul.u32 80, %s32
      %s34 = ssub.s32 75, %s33
      %s35 = smul.u32 128, %s34
      %s37 = ssub.s32 10240, %s35
      %38 = vsyncadd [#allocation6], %s37
      %p39 = scmp.ne.s32.totalorder 0, %s35
      %s40 = smul.addr %s33, 128
      %s41 = scalar_lea.hbm %s3, %s40
      %s42 = smul.u32 8, %s34
      %s43 = sshll.u32 [#allocation5], 4
      %s44 = int_to_ptr.vmem [resolvable:$true] %s43
      %s45 = sshll.u32 %s42, 4
      %49 = dma.hbm_to_vmem [thread:$0]  (%p39), %s41, %s45, %s44, [#allocation6], 128, 128, 8
    $region9: #{tpu_custom_call.1} parent=1 // pred_fallthru
      _
    // Predicated region
    $region10: #{tpu_custom_call.1} parent=1 // pred_check
      _
    $region11: #{tpu_custom_call.1} parent=1 // pred_check_branch
      %51 = sbr.rel (0) target = $region13
    $region12: #{tpu_custom_call.1} parent=1 // pred_region
      %52 = dma.done [#allocation6], 10240
    $region13: #{tpu_custom_call.1} parent=1 // pred_fallthru
      _
    %s53 = sadd.s32 0, 0
    %p54 = scmp.lt.s32.totalorder %s53, 0
    %s55 = scalar_select %p54, %s53, 0
    %s56 = smul.u32 5, %s55
    %p57 = scmp.lt.s32.totalorder %s56, 4
    %s58 = scalar_select %p57, %s56, 4
    %s59 = scalar_lea.vmem %s2, %s58
    %s60 = sadd.s32 0, 0
    %p61 = scmp.lt.s32.totalorder %s60, 0
    %s62 = scalar_select %p61, %s60, 0
    %s63 = smul.u32 5, %s62
    %p64 = scmp.lt.s32.totalorder %s63, 4
    %s65 = scalar_select %p64, %s63, 4
    %s66 = scalar_lea.vmem %s2, %s65
    %s67 = sadd.s32 0, 0
    %p68 = scmp.lt.s32.totalorder %s67, 0
    %s69 = scalar_select %p68, %s67, 0
    %s70 = smul.u32 5, %s69
    %s71 = sadd.s32 0, 0
    %p72 = scmp.lt.s32.totalorder %s71, 0
    %s73 = scalar_select %p72, %s71, 0
    %s74 = smul.u32 80, %s73
    %s75 = ssub.s32 75, %s74
    %s76 = smul.u32 128, %s75
    %p77 = scmp.eq.s32.totalorder 0, 0
    // Predicated region
    $region14: #{tpu_custom_call.1} parent=1 // pred_check
      %p78 = pneg %p77
    $region15: #{tpu_custom_call.1} parent=1 // pred_check_branch
      %80 = sbr.rel (%p78) target = $region17
    $region16: #{tpu_custom_call.1} parent=1 // pred_region
      %81 = vst [vmem:[#allocation8] sm:$0xff] 0.0
      %vm82 = vcmask 7168
      %83 = vst.msk [vmem:[%s5] sm:$0xff] %vm82, 0.0
    $region17: #{tpu_custom_call.1} parent=1 // pred_fallthru
      _
    %s84 = sadd.s32 0, 0
    %s85 = smul.u32 %s84, 640
    %v86 = vlaneseq
    %v87 = vand.u32 %v86, 127
    %v88 = vadd.s32 %v87, 128
    %v89 = vadd.s32 %v87, 256
    %v90 = vadd.s32 %v87, 384
    %v91 = vadd.s32 %v87, 512
    %v92 = vstv %s85
    %v93 = vadd.s32 %v92, %v87
    %v94 = vadd.s32 %v92, %v88
    %v95 = vadd.s32 %v92, %v89
    %v96 = vadd.s32 %v92, %v90
    %v97 = vadd.s32 %v92, %v91
    %vm98 = vcmp.lt.s32.totalorder %v93, 600
    %vm99 = vcmp.lt.s32.totalorder %v94, 600
    %vm100 = vcmp.lt.s32.totalorder %v95, 600
    %vm101 = vcmp.lt.s32.totalorder %v96, 600
    %vm102 = vcmp.lt.s32.totalorder %v97, 600
    %v103 = vlaneseq
    %v104 = vshrl.u32 %v103, 7
    %v105 = vadd.s32 %v104, 8
    %v106 = vadd.s32 %v104, 16
    %v107 = vadd.s32 %v104, 24
    %v108 = vadd.s32 %v104, 32
    %v109 = vadd.s32 %v104, 40
    %v110 = vadd.s32 %v104, 48
    %v111 = vadd.s32 %v104, 56
    %v112 = vadd.s32 %v104, 64
    %v113 = vadd.s32 %v104, 72
    %v114 = vadd.s32 %v104, 80
    %v115 = vadd.s32 %v104, 88
    %v116 = vadd.s32 %v104, 96
    %v117 = vadd.s32 %v104, 104
    %v118 = vadd.s32 %v104, 112
    %v119 = vadd.s32 %v104, 120
    %v120 = vadd.s32 %v104, 128
    %v121 = vadd.s32 %v104, 136
    %v122 = vadd.s32 %v104, 144
    %v123 = vadd.s32 %v104, 152
    %v124 = vadd.s32 %v104, 160
    %v125 = vadd.s32 %v104, 168
    %v126 = vadd.s32 %v104, 176
    %v127 = vadd.s32 %v104, 184
    %v128 = vadd.s32 %v104, 192
    %v129 = vadd.s32 %v104, 200
    %v130 = vadd.s32 %v104, 208
    %v131 = vadd.s32 %v104, 216
    %v132 = vadd.s32 %v104, 224
    %v133 = vadd.s32 %v104, 232
    %v134 = vadd.s32 %v104, 240
    %v135 = vadd.s32 %v104, 248
    %v136 = vadd.s32 %v104, 256
    %v137 = vadd.s32 %v104, 264
    %v138 = vadd.s32 %v104, 272
    %v139 = vadd.s32 %v104, 280
    %v140 = vadd.s32 %v104, 288
    %v141 = vadd.s32 %v104, 296
    %v142 = vadd.s32 %v104, 304
    %v143 = vadd.s32 %v104, 312
    %v144 = vadd.s32 %v104, 320
    %v145 = vadd.s32 %v104, 328
    %v146 = vadd.s32 %v104, 336
    %v147 = vadd.s32 %v104, 344
    %v148 = vadd.s32 %v104, 352
    %v149 = vadd.s32 %v104, 360
    %v150 = vadd.s32 %v104, 368
    %v151 = vadd.s32 %v104, 376
    %v152 = vadd.s32 %v104, 384
    %v153 = vadd.s32 %v104, 392
    %v154 = vadd.s32 %v104, 400
    %v155 = vadd.s32 %v104, 408
    %v156 = vadd.s32 %v104, 416
    %v157 = vadd.s32 %v104, 424
    %v158 = vadd.s32 %v104, 432
    %v159 = vadd.s32 %v104, 440
    %v160 = vadd.s32 %v104, 448
    %v161 = vadd.s32 %v104, 456
    %v162 = vadd.s32 %v104, 464
    %v163 = vadd.s32 %v104, 472
    %v164 = vadd.s32 %v104, 480
    %v165 = vadd.s32 %v104, 488
    %v166 = vadd.s32 %v104, 496
    %v167 = vadd.s32 %v104, 504
    %v168 = vadd.s32 %v104, 512
    %v169 = vadd.s32 %v104, 520
    %v170 = vadd.s32 %v104, 528
    %v171 = vadd.s32 %v104, 536
    %v172 = vadd.s32 %v104, 544
    %v173 = vadd.s32 %v104, 552
    %v174 = vadd.s32 %v104, 560
    %v175 = vadd.s32 %v104, 568
    %v176 = vadd.s32 %v104, 576
    %v177 = vadd.s32 %v104, 584
    %v178 = vadd.s32 %v104, 592
    %v179 = vadd.s32 %v104, 600
    %v180 = vadd.s32 %v104, 608
    %v181 = vadd.s32 %v104, 616
    %v182 = vadd.s32 %v104, 624
    %v183 = vadd.s32 %v104, 632
    %v184 = vadd.s32 %v92, %v104
    %v185 = vadd.s32 %v92, %v105
    %v186 = vadd.s32 %v92, %v106
    %v187 = vadd.s32 %v92, %v107
    %v188 = vadd.s32 %v92, %v108
    %v189 = vadd.s32 %v92, %v109
    %v190 = vadd.s32 %v92, %v110
    %v191 = vadd.s32 %v92, %v111
    %v192 = vadd.s32 %v92, %v112
    %v193 = vadd.s32 %v92, %v113
    %v194 = vadd.s32 %v92, %v114
    %v195 = vadd.s32 %v92, %v115
    %v196 = vadd.s32 %v92, %v116
    %v197 = vadd.s32 %v92, %v117
    %v198 = vadd.s32 %v92, %v118
    %v199 = vadd.s32 %v92, %v119
    %v200 = vadd.s32 %v92, %v120
    %v201 = vadd.s32 %v92, %v121
    %v202 = vadd.s32 %v92, %v122
    %v203 = vadd.s32 %v92, %v123
    %v204 = vadd.s32 %v92, %v124
    %v205 = vadd.s32 %v92, %v125
    %v206 = vadd.s32 %v92, %v126
    %v207 = vadd.s32 %v92, %v127
    %v208 = vadd.s32 %v92, %v128
    %v209 = vadd.s32 %v92, %v129
    %v210 = vadd.s32 %v92, %v130
    %v211 = vadd.s32 %v92, %v131
    %v212 = vadd.s32 %v92, %v132
    %v213 = vadd.s32 %v92, %v133
    %v214 = vadd.s32 %v92, %v134
    %v215 = vadd.s32 %v92, %v135
    %v216 = vadd.s32 %v92, %v136
    %v217 = vadd.s32 %v92, %v137
    %v218 = vadd.s32 %v92, %v138
    %v219 = vadd.s32 %v92, %v139
    %v220 = vadd.s32 %v92, %v140
    %v221 = vadd.s32 %v92, %v141
    %v222 = vadd.s32 %v92, %v142
    %v223 = vadd.s32 %v92, %v143
    %v224 = vadd.s32 %v92, %v144
    %v225 = vadd.s32 %v92, %v145
    %v226 = vadd.s32 %v92, %v146
    %v227 = vadd.s32 %v92, %v147
    %v228 = vadd.s32 %v92, %v148
    %v229 = vadd.s32 %v92, %v149
    %v230 = vadd.s32 %v92, %v150
    %v231 = vadd.s32 %v92, %v151
    %v232 = vadd.s32 %v92, %v152
    %v233 = vadd.s32 %v92, %v153
    %v234 = vadd.s32 %v92, %v154
    %v235 = vadd.s32 %v92, %v155
    %v236 = vadd.s32 %v92, %v156
    %v237 = vadd.s32 %v92, %v157
    %v238 = vadd.s32 %v92, %v158
    %v239 = vadd.s32 %v92, %v159
    %v240 = vadd.s32 %v92, %v160
    %v241 = vadd.s32 %v92, %v161
    %v242 = vadd.s32 %v92, %v162
    %v243 = vadd.s32 %v92, %v163
    %v244 = vadd.s32 %v92, %v164
    %v245 = vadd.s32 %v92, %v165
    %v246 = vadd.s32 %v92, %v166
    %v247 = vadd.s32 %v92, %v167
    %v248 = vadd.s32 %v92, %v168
    %v249 = vadd.s32 %v92, %v169
    %v250 = vadd.s32 %v92, %v170
    %v251 = vadd.s32 %v92, %v171
    %v252 = vadd.s32 %v92, %v172
    %v253 = vadd.s32 %v92, %v173
    %v254 = vadd.s32 %v92, %v174
    %v255 = vadd.s32 %v92, %v175
    %v256 = vadd.s32 %v92, %v176
    %v257 = vadd.s32 %v92, %v177
    %v258 = vadd.s32 %v92, %v178
    %v259 = vadd.s32 %v92, %v179
    %v260 = vadd.s32 %v92, %v180
    %v261 = vadd.s32 %v92, %v181
    %v262 = vadd.s32 %v92, %v182
    %v263 = vadd.s32 %v92, %v183
    %vm264 = vcmp.lt.s32.totalorder %v184, 600
    %vm265 = vcmp.lt.s32.totalorder %v185, 600
    %vm266 = vcmp.lt.s32.totalorder %v186, 600
    %vm267 = vcmp.lt.s32.totalorder %v187, 600
    %vm268 = vcmp.lt.s32.totalorder %v188, 600
    %vm269 = vcmp.lt.s32.totalorder %v189, 600
    %vm270 = vcmp.lt.s32.totalorder %v190, 600
    %vm271 = vcmp.lt.s32.totalorder %v191, 600
    %vm272 = vcmp.lt.s32.totalorder %v192, 600
    %vm273 = vcmp.lt.s32.totalorder %v193, 600
    %vm274 = vcmp.lt.s32.totalorder %v194, 600
    %vm275 = vcmp.lt.s32.totalorder %v195, 600
    %vm276 = vcmp.lt.s32.totalorder %v196, 600
    %vm277 = vcmp.lt.s32.totalorder %v197, 600
    %vm278 = vcmp.lt.s32.totalorder %v198, 600
    %vm279 = vcmp.lt.s32.totalorder %v199, 600
    %vm280 = vcmp.lt.s32.totalorder %v200, 600
    %vm281 = vcmp.lt.s32.totalorder %v201, 600
    %vm282 = vcmp.lt.s32.totalorder %v202, 600
    %vm283 = vcmp.lt.s32.totalorder %v203, 600
    %vm284 = vcmp.lt.s32.totalorder %v204, 600
    %vm285 = vcmp.lt.s32.totalorder %v205, 600
    %vm286 = vcmp.lt.s32.totalorder %v206, 600
    %vm287 = vcmp.lt.s32.totalorder %v207, 600
    %vm288 = vcmp.lt.s32.totalorder %v208, 600
    %vm289 = vcmp.lt.s32.totalorder %v209, 600
    %vm290 = vcmp.lt.s32.totalorder %v210, 600
    %vm291 = vcmp.lt.s32.totalorder %v211, 600
    %vm292 = vcmp.lt.s32.totalorder %v212, 600
    %vm293 = vcmp.lt.s32.totalorder %v213, 600
    %vm294 = vcmp.lt.s32.totalorder %v214, 600
    %vm295 = vcmp.lt.s32.totalorder %v215, 600
    %vm296 = vcmp.lt.s32.totalorder %v216, 600
    %vm297 = vcmp.lt.s32.totalorder %v217, 600
    %vm298 = vcmp.lt.s32.totalorder %v218, 600
    %vm299 = vcmp.lt.s32.totalorder %v219, 600
    %vm300 = vcmp.lt.s32.totalorder %v220, 600
    %vm301 = vcmp.lt.s32.totalorder %v221, 600
    %vm302 = vcmp.lt.s32.totalorder %v222, 600
    %vm303 = vcmp.lt.s32.totalorder %v223, 600
    %vm304 = vcmp.lt.s32.totalorder %v224, 600
    %vm305 = vcmp.lt.s32.totalorder %v225, 600
    %vm306 = vcmp.lt.s32.totalorder %v226, 600
    %vm307 = vcmp.lt.s32.totalorder %v227, 600
    %vm308 = vcmp.lt.s32.totalorder %v228, 600
    %vm309 = vcmp.lt.s32.totalorder %v229, 600
    %vm310 = vcmp.lt.s32.totalorder %v230, 600
    %vm311 = vcmp.lt.s32.totalorder %v231, 600
    %vm312 = vcmp.lt.s32.totalorder %v232, 600
    %vm313 = vcmp.lt.s32.totalorder %v233, 600
    %vm314 = vcmp.lt.s32.totalorder %v234, 600
    %vm315 = vcmp.lt.s32.totalorder %v235, 600
    %vm316 = vcmp.lt.s32.totalorder %v236, 600
    %vm317 = vcmp.lt.s32.totalorder %v237, 600
    %vm318 = vcmp.lt.s32.totalorder %v238, 600
    %vm319 = vcmp.lt.s32.totalorder %v239, 600
    %vm320 = vcmp.lt.s32.totalorder %v240, 600
    %vm321 = vcmp.lt.s32.totalorder %v241, 600
    %vm322 = vcmp.lt.s32.totalorder %v242, 600
    %vm323 = vcmp.lt.s32.totalorder %v243, 600
    %vm324 = vcmp.lt.s32.totalorder %v244, 600
    %vm325 = vcmp.lt.s32.totalorder %v245, 600
    %vm326 = vcmp.lt.s32.totalorder %v246, 600
    %vm327 = vcmp.lt.s32.totalorder %v247, 600
    %vm328 = vcmp.lt.s32.totalorder %v248, 600
    %vm329 = vcmp.lt.s32.totalorder %v249, 600
    %vm330 = vcmp.lt.s32.totalorder %v250, 600
    %vm331 = vcmp.lt.s32.totalorder %v251, 600
    %vm332 = vcmp.lt.s32.totalorder %v252, 600
    %vm333 = vcmp.lt.s32.totalorder %v253, 600
    %vm334 = vcmp.lt.s32.totalorder %v254, 600
    %vm335 = vcmp.lt.s32.totalorder %v255, 600
    %vm336 = vcmp.lt.s32.totalorder %v256, 600
    %vm337 = vcmp.lt.s32.totalorder %v257, 600
    %vm338 = vcmp.lt.s32.totalorder %v258, 600
    %vm339 = vcmp.lt.s32.totalorder %v259, 600
    %vm340 = vcmp.lt.s32.totalorder %v260, 600
    %vm341 = vcmp.lt.s32.totalorder %v261, 600
    %vm342 = vcmp.lt.s32.totalorder %v262, 600
    %vm343 = vcmp.lt.s32.totalorder %v263, 600
    %v344 = vld [vmem:[#allocation5] sm:$0xff]
    %v345 = vld [vmem:[#allocation5 + $0x8] sm:$0xff]
    %v346 = vld [vmem:[#allocation5 + $0x10] sm:$0xff]
    %v347 = vld [vmem:[#allocation5 + $0x18] sm:$0xff]
    %v348 = vld [vmem:[#allocation5 + $0x20] sm:$0xff]
    %v349 = vld [vmem:[#allocation5 + $0x28] sm:$0xff]
    %v350 = vld [vmem:[#allocation5 + $0x30] sm:$0xff]
    %v351 = vld [vmem:[#allocation5 + $0x38] sm:$0xff]
    %v352 = vld [vmem:[#allocation5 + $0x40] sm:$0xff]
    %v353 = vld [vmem:[#allocation5 + $0x48] sm:$0xff]
    %v354 = vld [vmem:[#allocation5 + $0x50] sm:$0xff]
    %v355 = vld [vmem:[#allocation5 + $0x58] sm:$0xff]
    %v356 = vld [vmem:[#allocation5 + $0x60] sm:$0xff]
    %v357 = vld [vmem:[#allocation5 + $0x68] sm:$0xff]
    %v358 = vld [vmem:[#allocation5 + $0x70] sm:$0xff]
    %v359 = vld [vmem:[#allocation5 + $0x78] sm:$0xff]
    %v360 = vld [vmem:[#allocation5 + $0x80] sm:$0xff]
    %v361 = vld [vmem:[#allocation5 + $0x88] sm:$0xff]
    %v362 = vld [vmem:[#allocation5 + $0x90] sm:$0xff]
    %v363 = vld [vmem:[#allocation5 + $0x98] sm:$0xff]
    %v364 = vld [vmem:[#allocation5 + $0xa0] sm:$0xff]
    %v365 = vld [vmem:[#allocation5 + $0xa8] sm:$0xff]
    %v366 = vld [vmem:[#allocation5 + $0xb0] sm:$0xff]
    %v367 = vld [vmem:[#allocation5 + $0xb8] sm:$0xff]
    %v368 = vld [vmem:[#allocation5 + $0xc0] sm:$0xff]
    %v369 = vld [vmem:[#allocation5 + $0xc8] sm:$0xff]
    %v370 = vld [vmem:[#allocation5 + $0xd0] sm:$0xff]
    %v371 = vld [vmem:[#allocation5 + $0xd8] sm:$0xff]
    %v372 = vld [vmem:[#allocation5 + $0xe0] sm:$0xff]
    %v373 = vld [vmem:[#allocation5 + $0xe8] sm:$0xff]
    %v374 = vld [vmem:[#allocation5 + $0xf0] sm:$0xff]
    %v375 = vld [vmem:[#allocation5 + $0xf8] sm:$0xff]
    %v376 = vld [vmem:[#allocation5 + $0x100] sm:$0xff]
    %v377 = vld [vmem:[#allocation5 + $0x108] sm:$0xff]
    %v378 = vld [vmem:[#allocation5 + $0x110] sm:$0xff]
    %v379 = vld [vmem:[#allocation5 + $0x118] sm:$0xff]
    %v380 = vld [vmem:[#allocation5 + $0x120] sm:$0xff]
    %v381 = vld [vmem:[#allocation5 + $0x128] sm:$0xff]
    %v382 = vld [vmem:[#allocation5 + $0x130] sm:$0xff]
    %v383 = vld [vmem:[#allocation5 + $0x138] sm:$0xff]
    %v384 = vld [vmem:[#allocation5 + $0x140] sm:$0xff]
    %v385 = vld [vmem:[#allocation5 + $0x148] sm:$0xff]
    %v386 = vld [vmem:[#allocation5 + $0x150] sm:$0xff]
    %v387 = vld [vmem:[#allocation5 + $0x158] sm:$0xff]
    %v388 = vld [vmem:[#allocation5 + $0x160] sm:$0xff]
    %v389 = vld [vmem:[#allocation5 + $0x168] sm:$0xff]
    %v390 = vld [vmem:[#allocation5 + $0x170] sm:$0xff]
    %v391 = vld [vmem:[#allocation5 + $0x178] sm:$0xff]
    %v392 = vld [vmem:[#allocation5 + $0x180] sm:$0xff]
    %v393 = vld [vmem:[#allocation5 + $0x188] sm:$0xff]
    %v394 = vld [vmem:[#allocation5 + $0x190] sm:$0xff]
    %v395 = vld [vmem:[#allocation5 + $0x198] sm:$0xff]
    %v396 = vld [vmem:[#allocation5 + $0x1a0] sm:$0xff]
    %v397 = vld [vmem:[#allocation5 + $0x1a8] sm:$0xff]
    %v398 = vld [vmem:[#allocation5 + $0x1b0] sm:$0xff]
    %v399 = vld [vmem:[#allocation5 + $0x1b8] sm:$0xff]
    %v400 = vld [vmem:[#allocation5 + $0x1c0] sm:$0xff]
    %v401 = vld [vmem:[#allocation5 + $0x1c8] sm:$0xff]
    %v402 = vld [vmem:[#allocation5 + $0x1d0] sm:$0xff]
    %v403 = vld [vmem:[#allocation5 + $0x1d8] sm:$0xff]
    %v404 = vld [vmem:[#allocation5 + $0x1e0] sm:$0xff]
    %v405 = vld [vmem:[#allocation5 + $0x1e8] sm:$0xff]
    %v406 = vld [vmem:[#allocation5 + $0x1f0] sm:$0xff]
    %v407 = vld [vmem:[#allocation5 + $0x1f8] sm:$0xff]
    %v408 = vld [vmem:[#allocation5 + $0x200] sm:$0xff]
    %v409 = vld [vmem:[#allocation5 + $0x208] sm:$0xff]
    %v410 = vld [vmem:[#allocation5 + $0x210] sm:$0xff]
    %v411 = vld [vmem:[#allocation5 + $0x218] sm:$0xff]
    %v412 = vld [vmem:[#allocation5 + $0x220] sm:$0xff]
    %v413 = vld [vmem:[#allocation5 + $0x228] sm:$0xff]
    %v414 = vld [vmem:[#allocation5 + $0x230] sm:$0xff]
    %v415 = vld [vmem:[#allocation5 + $0x238] sm:$0xff]
    %v416 = vld [vmem:[#allocation5 + $0x240] sm:$0xff]
    %v417 = vld [vmem:[#allocation5 + $0x248] sm:$0xff]
    %v418 = vld [vmem:[#allocation5 + $0x250] sm:$0xff]
    %v419 = vld [vmem:[#allocation5 + $0x258] sm:$0xff]
    %v420 = vld [vmem:[#allocation5 + $0x260] sm:$0xff]
    %v421 = vld [vmem:[#allocation5 + $0x268] sm:$0xff]
    %v422 = vld [vmem:[#allocation5 + $0x270] sm:$0xff]
    %v423 = vld [vmem:[#allocation5 + $0x278] sm:$0xff]
    %v424 = vsel %vm264, 1, 0
    %v425 = vsel %vm265, 1, 0
    %v426 = vsel %vm266, 1, 0
    %v427 = vsel %vm267, 1, 0
    %v428 = vsel %vm268, 1, 0
    %v429 = vsel %vm269, 1, 0
    %v430 = vsel %vm270, 1, 0
    %v431 = vsel %vm271, 1, 0
    %v432 = vsel %vm272, 1, 0
    %v433 = vsel %vm273, 1, 0
    %v434 = vsel %vm274, 1, 0
    %v435 = vsel %vm275, 1, 0
    %v436 = vsel %vm276, 1, 0
    %v437 = vsel %vm277, 1, 0
    %v438 = vsel %vm278, 1, 0
    %v439 = vsel %vm279, 1, 0
    %v440 = vsel %vm280, 1, 0
    %v441 = vsel %vm281, 1, 0
    %v442 = vsel %vm282, 1, 0
    %v443 = vsel %vm283, 1, 0
    %v444 = vsel %vm284, 1, 0
    %v445 = vsel %vm285, 1, 0
    %v446 = vsel %vm286, 1, 0
    %v447 = vsel %vm287, 1, 0
    %v448 = vsel %vm288, 1, 0
    %v449 = vsel %vm289, 1, 0
    %v450 = vsel %vm290, 1, 0
    %v451 = vsel %vm291, 1, 0
    %v452 = vsel %vm292, 1, 0
    %v453 = vsel %vm293, 1, 0
    %v454 = vsel %vm294, 1, 0
    %v455 = vsel %vm295, 1, 0
    %v456 = vsel %vm296, 1, 0
    %v457 = vsel %vm297, 1, 0
    %v458 = vsel %vm298, 1, 0
    %v459 = vsel %vm299, 1, 0
    %v460 = vsel %vm300, 1, 0
    %v461 = vsel %vm301, 1, 0
    %v462 = vsel %vm302, 1, 0
    %v463 = vsel %vm303, 1, 0
    %v464 = vsel %vm304, 1, 0
    %v465 = vsel %vm305, 1, 0
    %v466 = vsel %vm306, 1, 0
    %v467 = vsel %vm307, 1, 0
    %v468 = vsel %vm308, 1, 0
    %v469 = vsel %vm309, 1, 0
    %v470 = vsel %vm310, 1, 0
    %v471 = vsel %vm311, 1, 0
    %v472 = vsel %vm312, 1, 0
    %v473 = vsel %vm313, 1, 0
    %v474 = vsel %vm314, 1, 0
    %v475 = vsel %vm315, 1, 0
    %v476 = vsel %vm316, 1, 0
    %v477 = vsel %vm317, 1, 0
    %v478 = vsel %vm318, 1, 0
    %v479 = vsel %vm319, 1, 0
    %v480 = vsel %vm320, 1, 0
    %v481 = vsel %vm321, 1, 0
    %v482 = vsel %vm322, 1, 0
    %v483 = vsel %vm323, 1, 0
    %v484 = vsel %vm324, 1, 0
    %v485 = vsel %vm325, 1, 0
    %v486 = vsel %vm326, 1, 0
    %v487 = vsel %vm327, 1, 0
    %v488 = vsel %vm328, 1, 0
    %v489 = vsel %vm329, 1, 0
    %v490 = vsel %vm330, 1, 0
    %v491 = vsel %vm331, 1, 0
    %v492 = vsel %vm332, 1, 0
    %v493 = vsel %vm333, 1, 0
    %v494 = vsel %vm334, 1, 0
    %v495 = vsel %vm335, 1, 0
    %v496 = vsel %vm336, 1, 0
    %v497 = vsel %vm337, 1, 0
    %v498 = vsel %vm338, 1, 0
    %v499 = vsel %vm339, 1, 0
    %v500 = vsel %vm340, 1, 0
    %v501 = vsel %vm341, 1, 0
    %v502 = vsel %vm342, 1, 0
    %v503 = vsel %vm343, 1, 0
    %vm504 = vcmp.eq.s32.totalorder %v424, 1
    %vm505 = vcmp.eq.s32.totalorder %v425, 1
    %vm506 = vcmp.eq.s32.totalorder %v426, 1
    %vm507 = vcmp.eq.s32.totalorder %v427, 1
    %vm508 = vcmp.eq.s32.totalorder %v428, 1
    %vm509 = vcmp.eq.s32.totalorder %v429, 1
    %vm510 = vcmp.eq.s32.totalorder %v430, 1
    %vm511 = vcmp.eq.s32.totalorder %v431, 1
    %vm512 = vcmp.eq.s32.totalorder %v432, 1
    %vm513 = vcmp.eq.s32.totalorder %v433, 1
    %vm514 = vcmp.eq.s32.totalorder %v434, 1
    %vm515 = vcmp.eq.s32.totalorder %v435, 1
    %vm516 = vcmp.eq.s32.totalorder %v436, 1
    %vm517 = vcmp.eq.s32.totalorder %v437, 1
    %vm518 = vcmp.eq.s32.totalorder %v438, 1
    %vm519 = vcmp.eq.s32.totalorder %v439, 1
    %vm520 = vcmp.eq.s32.totalorder %v440, 1
    %vm521 = vcmp.eq.s32.totalorder %v441, 1
    %vm522 = vcmp.eq.s32.totalorder %v442, 1
    %vm523 = vcmp.eq.s32.totalorder %v443, 1
    %vm524 = vcmp.eq.s32.totalorder %v444, 1
    %vm525 = vcmp.eq.s32.totalorder %v445, 1
    %vm526 = vcmp.eq.s32.totalorder %v446, 1
    %vm527 = vcmp.eq.s32.totalorder %v447, 1
    %vm528 = vcmp.eq.s32.totalorder %v448, 1
    %vm529 = vcmp.eq.s32.totalorder %v449, 1
    %vm530 = vcmp.eq.s32.totalorder %v450, 1
    %vm531 = vcmp.eq.s32.totalorder %v451, 1
    %vm532 = vcmp.eq.s32.totalorder %v452, 1
    %vm533 = vcmp.eq.s32.totalorder %v453, 1
    %vm534 = vcmp.eq.s32.totalorder %v454, 1
    %vm535 = vcmp.eq.s32.totalorder %v455, 1
    %vm536 = vcmp.eq.s32.totalorder %v456, 1
    %vm537 = vcmp.eq.s32.totalorder %v457, 1
    %vm538 = vcmp.eq.s32.totalorder %v458, 1
    %vm539 = vcmp.eq.s32.totalorder %v459, 1
    %vm540 = vcmp.eq.s32.totalorder %v460, 1
    %vm541 = vcmp.eq.s32.totalorder %v461, 1
    %vm542 = vcmp.eq.s32.totalorder %v462, 1
    %vm543 = vcmp.eq.s32.totalorder %v463, 1
    %vm544 = vcmp.eq.s32.totalorder %v464, 1
    %vm545 = vcmp.eq.s32.totalorder %v465, 1
    %vm546 = vcmp.eq.s32.totalorder %v466, 1
    %vm547 = vcmp.eq.s32.totalorder %v467, 1
    %vm548 = vcmp.eq.s32.totalorder %v468, 1
    %vm549 = vcmp.eq.s32.totalorder %v469, 1
    %vm550 = vcmp.eq.s32.totalorder %v470, 1
    %vm551 = vcmp.eq.s32.totalorder %v471, 1
    %vm552 = vcmp.eq.s32.totalorder %v472, 1
    %vm553 = vcmp.eq.s32.totalorder %v473, 1
    %vm554 = vcmp.eq.s32.totalorder %v474, 1
    %vm555 = vcmp.eq.s32.totalorder %v475, 1
    %vm556 = vcmp.eq.s32.totalorder %v476, 1
    %vm557 = vcmp.eq.s32.totalorder %v477, 1
    %vm558 = vcmp.eq.s32.totalorder %v478, 1
    %vm559 = vcmp.eq.s32.totalorder %v479, 1
    %vm560 = vcmp.eq.s32.totalorder %v480, 1
    %vm561 = vcmp.eq.s32.totalorder %v481, 1
    %vm562 = vcmp.eq.s32.totalorder %v482, 1
    %vm563 = vcmp.eq.s32.totalorder %v483, 1
    %vm564 = vcmp.eq.s32.totalorder %v484, 1
    %vm565 = vcmp.eq.s32.totalorder %v485, 1
    %vm566 = vcmp.eq.s32.totalorder %v486, 1
    %vm567 = vcmp.eq.s32.totalorder %v487, 1
    %vm568 = vcmp.eq.s32.totalorder %v488, 1
    %vm569 = vcmp.eq.s32.totalorder %v489, 1
    %vm570 = vcmp.eq.s32.totalorder %v490, 1
    %vm571 = vcmp.eq.s32.totalorder %v491, 1
    %vm572 = vcmp.eq.s32.totalorder %v492, 1
    %vm573 = vcmp.eq.s32.totalorder %v493, 1
    %vm574 = vcmp.eq.s32.totalorder %v494, 1
    %vm575 = vcmp.eq.s32.totalorder %v495, 1
    %vm576 = vcmp.eq.s32.totalorder %v496, 1
    %vm577 = vcmp.eq.s32.totalorder %v497, 1
    %vm578 = vcmp.eq.s32.totalorder %v498, 1
    %vm579 = vcmp.eq.s32.totalorder %v499, 1
    %vm580 = vcmp.eq.s32.totalorder %v500, 1
    %vm581 = vcmp.eq.s32.totalorder %v501, 1
    %vm582 = vcmp.eq.s32.totalorder %v502, 1
    %vm583 = vcmp.eq.s32.totalorder %v503, 1
    %v584 = vsel %vm504, %v344, 0.0
    %v585 = vsel %vm505, %v345, 0.0
    %v586 = vsel %vm506, %v346, 0.0
    %v587 = vsel %vm507, %v347, 0.0
    %v588 = vsel %vm508, %v348, 0.0
    %v589 = vsel %vm509, %v349, 0.0
    %v590 = vsel %vm510, %v350, 0.0
    %v591 = vsel %vm511, %v351, 0.0
    %v592 = vsel %vm512, %v352, 0.0
    %v593 = vsel %vm513, %v353, 0.0
    %v594 = vsel %vm514, %v354, 0.0
    %v595 = vsel %vm515, %v355, 0.0
    %v596 = vsel %vm516, %v356, 0.0
    %v597 = vsel %vm517, %v357, 0.0
    %v598 = vsel %vm518, %v358, 0.0
    %v599 = vsel %vm519, %v359, 0.0
    %v600 = vsel %vm520, %v360, 0.0
    %v601 = vsel %vm521, %v361, 0.0
    %v602 = vsel %vm522, %v362, 0.0
    %v603 = vsel %vm523, %v363, 0.0
    %v604 = vsel %vm524, %v364, 0.0
    %v605 = vsel %vm525, %v365, 0.0
    %v606 = vsel %vm526, %v366, 0.0
    %v607 = vsel %vm527, %v367, 0.0
    %v608 = vsel %vm528, %v368, 0.0
    %v609 = vsel %vm529, %v369, 0.0
    %v610 = vsel %vm530, %v370, 0.0
    %v611 = vsel %vm531, %v371, 0.0
    %v612 = vsel %vm532, %v372, 0.0
    %v613 = vsel %vm533, %v373, 0.0
    %v614 = vsel %vm534, %v374, 0.0
    %v615 = vsel %vm535, %v375, 0.0
    %v616 = vsel %vm536, %v376, 0.0
    %v617 = vsel %vm537, %v377, 0.0
    %v618 = vsel %vm538, %v378, 0.0
    %v619 = vsel %vm539, %v379, 0.0
    %v620 = vsel %vm540, %v380, 0.0
    %v621 = vsel %vm541, %v381, 0.0
    %v622 = vsel %vm542, %v382, 0.0
    %v623 = vsel %vm543, %v383, 0.0
    %v624 = vsel %vm544, %v384, 0.0
    %v625 = vsel %vm545, %v385, 0.0
    %v626 = vsel %vm546, %v386, 0.0
    %v627 = vsel %vm547, %v387, 0.0
    %v628 = vsel %vm548, %v388, 0.0
    %v629 = vsel %vm549, %v389, 0.0
    %v630 = vsel %vm550, %v390, 0.0
    %v631 = vsel %vm551, %v391, 0.0
    %v632 = vsel %vm552, %v392, 0.0
    %v633 = vsel %vm553, %v393, 0.0
    %v634 = vsel %vm554, %v394, 0.0
    %v635 = vsel %vm555, %v395, 0.0
    %v636 = vsel %vm556, %v396, 0.0
    %v637 = vsel %vm557, %v397, 0.0
    %v638 = vsel %vm558, %v398, 0.0
    %v639 = vsel %vm559, %v399, 0.0
    %v640 = vsel %vm560, %v400, 0.0
    %v641 = vsel %vm561, %v401, 0.0
    %v642 = vsel %vm562, %v402, 0.0
    %v643 = vsel %vm563, %v403, 0.0
    %v644 = vsel %vm564, %v404, 0.0
    %v645 = vsel %vm565, %v405, 0.0
    %v646 = vsel %vm566, %v406, 0.0
    %v647 = vsel %vm567, %v407, 0.0
    %v648 = vsel %vm568, %v408, 0.0
    %v649 = vsel %vm569, %v409, 0.0
    %v650 = vsel %vm570, %v410, 0.0
    %v651 = vsel %vm571, %v411, 0.0
    %v652 = vsel %vm572, %v412, 0.0
    %v653 = vsel %vm573, %v413, 0.0
    %v654 = vsel %vm574, %v414, 0.0
    %v655 = vsel %vm575, %v415, 0.0
    %v656 = vsel %vm576, %v416, 0.0
    %v657 = vsel %vm577, %v417, 0.0
    %v658 = vsel %vm578, %v418, 0.0
    %v659 = vsel %vm579, %v419, 0.0
    %v660 = vsel %vm580, %v420, 0.0
    %v661 = vsel %vm581, %v421, 0.0
    %v662 = vsel %vm582, %v422, 0.0
    %v663 = vsel %vm583, %v423, 0.0
    %v664 = vld [vmem:[%s66] sm:$0x1f]
    %v665 = vlaneseq
    %v666 = vshrl.u32 %v665, 7
    %v667 = vsub.s32 0, %v666
    %v668 = vrot.slane %v664, %v667
    %v669 = vlaneseq
    %v670 = vshrl.u32 %v669, 7
    %v671 = vsub.s32 1, %v670
    %v672 = vrot.slane %v664, %v671
    %v673 = vlaneseq
    %v674 = vshrl.u32 %v673, 7
    %v675 = vsub.s32 2, %v674
    %v676 = vrot.slane %v664, %v675
    %v677 = vlaneseq
    %v678 = vshrl.u32 %v677, 7
    %v679 = vsub.s32 3, %v678
    %v680 = vrot.slane %v664, %v679
    %v681 = vlaneseq
    %v682 = vshrl.u32 %v681, 7
    %v683 = vsub.s32 4, %v682
    %v684 = vrot.slane %v664, %v683
    %vm685 = vcmp.eq.s32.totalorder %v104, %v668
    %vm686 = vcmp.eq.s32.totalorder %v104, %v672
    %vm687 = vcmp.eq.s32.totalorder %v104, %v676
    %vm688 = vcmp.eq.s32.totalorder %v104, %v680
    %vm689 = vcmp.eq.s32.totalorder %v104, %v684
    %v690 = vsel %vm98, 1, 0
    %v691 = vsel %vm99, 1, 0
    %v692 = vsel %vm100, 1, 0
    %v693 = vsel %vm101, 1, 0
    %v694 = vsel %vm102, 1, 0
    %vm695 = vcmp.eq.s32.totalorder %v690, 1
    %vm696 = vcmp.eq.s32.totalorder %v691, 1
    %vm697 = vcmp.eq.s32.totalorder %v692, 1
    %vm698 = vcmp.eq.s32.totalorder %v693, 1
    %vm699 = vcmp.eq.s32.totalorder %v694, 1
    %vm700 = vmand %vm685, %vm695
    %vm701 = vmand %vm686, %vm696
    %vm702 = vmand %vm687, %vm697
    %vm703 = vmand %vm688, %vm698
    %vm704 = vmand %vm689, %vm699
    %v705 = vsel %vm700, 1, 0
    %v706 = vsel %vm701, 1, 0
    %v707 = vsel %vm702, 1, 0
    %v708 = vsel %vm703, 1, 0
    %v709 = vsel %vm704, 1, 0
    %v710 = vcvt.s32.f32 %v705
    %v711 = vcvt.s32.f32 %v706
    %v712 = vcvt.s32.f32 %v707
    %v713 = vcvt.s32.f32 %v708
    %v714 = vcvt.s32.f32 %v709
    %v715 = vld [vmem:[#allocation8] sm:$0xff]
    %716 = vmatprep.subr.mxu0 0.0
    %v717 = vand.u32 %v584, 4294901760
    %718 = vmatpush1.msra.mxu0 %v717
    %719 = vmatprep.subr.mxu0 0.0
    %v720 = vand.u32 %v585, 4294901760
    %721 = vmatpush1.msra.mxu0 %v720
    %722 = vmatprep.subr.mxu0 0.0
    %v723 = vand.u32 %v586, 4294901760
    %724 = vmatpush1.msra.mxu0 %v723
    %725 = vmatprep.subr.mxu0 0.0
    %v726 = vand.u32 %v587, 4294901760
    %727 = vmatpush1.msra.mxu0 %v726
    %728 = vmatprep.subr.mxu0 0.0
    %v729 = vand.u32 %v588, 4294901760
    %730 = vmatpush1.msra.mxu0 %v729
    %731 = vmatprep.subr.mxu0 0.0
    %v732 = vand.u32 %v589, 4294901760
    %733 = vmatpush1.msra.mxu0 %v732
    %734 = vmatprep.subr.mxu0 0.0
    %v735 = vand.u32 %v590, 4294901760
    %736 = vmatpush1.msra.mxu0 %v735
    %737 = vmatprep.subr.mxu0 0.0
    %v738 = vand.u32 %v591, 4294901760
    %739 = vmatpush1.msra.mxu0 %v738
    %740 = vmatprep.subr.mxu0 0.0
    %v741 = vand.u32 %v592, 4294901760
    %742 = vmatpush1.msra.mxu0 %v741
    %743 = vmatprep.subr.mxu0 0.0
    %v744 = vand.u32 %v593, 4294901760
    %745 = vmatpush1.msra.mxu0 %v744
    %746 = vmatprep.subr.mxu0 0.0
    %v747 = vand.u32 %v594, 4294901760
    %748 = vmatpush1.msra.mxu0 %v747
    %749 = vmatprep.subr.mxu0 0.0
    %v750 = vand.u32 %v595, 4294901760
    %751 = vmatpush1.msra.mxu0 %v750
    %752 = vmatprep.subr.mxu0 0.0
    %v753 = vand.u32 %v596, 4294901760
    %754 = vmatpush1.msra.mxu0 %v753
    %755 = vmatprep.subr.mxu0 0.0
    %v756 = vand.u32 %v597, 4294901760
    %757 = vmatpush1.msra.mxu0 %v756
    %758 = vmatprep.subr.mxu0 0.0
    %v759 = vand.u32 %v598, 4294901760
    %760 = vmatpush1.msra.mxu0 %v759
    %761 = vmatprep.subr.mxu0 0.0
    %v762 = vand.u32 %v599, 4294901760
    %763 = vmatpush1.msra.mxu0 %v762
    %764 = vmatprep.subr.mxu0 0.0
    %v765 = vand.u32 %v600, 4294901760
    %766 = vmatpush1.msra.mxu0 %v765
    %767 = vmatprep.subr.mxu0 0.0
    %v768 = vand.u32 %v601, 4294901760
    %769 = vmatpush1.msra.mxu0 %v768
    %770 = vmatprep.subr.mxu0 0.0
    %v771 = vand.u32 %v602, 4294901760
    %772 = vmatpush1.msra.mxu0 %v771
    %773 = vmatprep.subr.mxu0 0.0
    %v774 = vand.u32 %v603, 4294901760
    %775 = vmatpush1.msra.mxu0 %v774
    %776 = vmatprep.subr.mxu0 0.0
    %v777 = vand.u32 %v604, 4294901760
    %778 = vmatpush1.msra.mxu0 %v777
    %779 = vmatprep.subr.mxu0 0.0
    %v780 = vand.u32 %v605, 4294901760
    %781 = vmatpush1.msra.mxu0 %v780
    %782 = vmatprep.subr.mxu0 0.0
    %v783 = vand.u32 %v606, 4294901760
    %784 = vmatpush1.msra.mxu0 %v783
    %785 = vmatprep.subr.mxu0 0.0
    %v786 = vand.u32 %v607, 4294901760
    %787 = vmatpush1.msra.mxu0 %v786
    %788 = vmatprep.subr.mxu0 0.0
    %v789 = vand.u32 %v608, 4294901760
    %790 = vmatpush1.msra.mxu0 %v789
    %791 = vmatprep.subr.mxu0 0.0
    %v792 = vand.u32 %v609, 4294901760
    %793 = vmatpush1.msra.mxu0 %v792
    %794 = vmatprep.subr.mxu0 0.0
    %v795 = vand.u32 %v610, 4294901760
    %796 = vmatpush1.msra.mxu0 %v795
    %797 = vmatprep.subr.mxu0 0.0
    %v798 = vand.u32 %v611, 4294901760
    %799 = vmatpush1.msra.mxu0 %v798
    %800 = vmatprep.subr.mxu0 0.0
    %v801 = vand.u32 %v612, 4294901760
    %802 = vmatpush1.msra.mxu0 %v801
    %803 = vmatprep.subr.mxu0 0.0
    %v804 = vand.u32 %v613, 4294901760
    %805 = vmatpush1.msra.mxu0 %v804
    %806 = vmatprep.subr.mxu0 0.0
    %v807 = vand.u32 %v614, 4294901760
    %808 = vmatpush1.msra.mxu0 %v807
    %809 = vmatprep.subr.mxu0 0.0
    %v810 = vand.u32 %v615, 4294901760
    %811 = vmatpush1.msra.mxu0 %v810
    %v812 = vand.u32 %v711, 4294901760
    %v813 = vsub.f32 %v711, %v812
    %v814 = vand.u32 %v813, 4294901760
    %v815 = vsub.f32 %v813, %v814
    %v816 = vand.u32 %v815, 4294901760
    %817 = vmatprep.mubr.f32.mxu0 %v816
    %v818 = vand.u32 %v710, 4294901760
    %v819 = vsub.f32 %v710, %v818
    %v820 = vand.u32 %v819, 4294901760
    %v821 = vsub.f32 %v819, %v820
    %v822 = vand.u32 %v821, 4294901760
    %823 = vmatmul.mubr.f32.gmra.mrb[0].mxu0 %v822
    %v824 = vpop.f32.mrb[0].mxu0
    %v825 = vadd.f32 0.0, %v824
    %v826 = vpop.f32.mrb[0].mxu0
    %827 = vdwg.mxu0
    %828 = vmatprep.subr.mxu0 0.0
    %v829 = vand.u32 %v584, 4294901760
    %v830 = vsub.f32 %v584, %v829
    %v831 = vand.u32 %v830, 4294901760
    %v832 = vsub.f32 %v830, %v831
    %v833 = vand.u32 %v832, 4294901760
    %834 = vmatpush1.msra.mxu0 %v833
    %835 = vmatprep.subr.mxu0 0.0
    %v836 = vand.u32 %v585, 4294901760
    %v837 = vsub.f32 %v585, %v836
    %v838 = vand.u32 %v837, 4294901760
    %v839 = vsub.f32 %v837, %v838
    %v840 = vand.u32 %v839, 4294901760
    %841 = vmatpush1.msra.mxu0 %v840
    %842 = vmatprep.subr.mxu0 0.0
    %v843 = vand.u32 %v586, 4294901760
    %v844 = vsub.f32 %v586, %v843
    %v845 = vand.u32 %v844, 4294901760
    %v846 = vsub.f32 %v844, %v845
    %v847 = vand.u32 %v846, 4294901760
    %848 = vmatpush1.msra.mxu0 %v847
    %849 = vmatprep.subr.mxu0 0.0
    %v850 = vand.u32 %v587, 4294901760
    %v851 = vsub.f32 %v587, %v850
    %v852 = vand.u32 %v851, 4294901760
    %v853 = vsub.f32 %v851, %v852
    %v854 = vand.u32 %v853, 4294901760
    %855 = vmatpush1.msra.mxu0 %v854
    %856 = vmatprep.subr.mxu0 0.0
    %v857 = vand.u32 %v588, 4294901760
    %v858 = vsub.f32 %v588, %v857
    %v859 = vand.u32 %v858, 4294901760
    %v860 = vsub.f32 %v858, %v859
    %v861 = vand.u32 %v860, 4294901760
    %862 = vmatpush1.msra.mxu0 %v861
    %863 = vmatprep.subr.mxu0 0.0
    %v864 = vand.u32 %v589, 4294901760
    %v865 = vsub.f32 %v589, %v864
    %v866 = vand.u32 %v865, 4294901760
    %v867 = vsub.f32 %v865, %v866
    %v868 = vand.u32 %v867, 4294901760
    %869 = vmatpush1.msra.mxu0 %v868
    %870 = vmatprep.subr.mxu0 0.0
    %v871 = vand.u32 %v590, 4294901760
    %v872 = vsub.f32 %v590, %v871
    %v873 = vand.u32 %v872, 4294901760
    %v874 = vsub.f32 %v872, %v873
    %v875 = vand.u32 %v874, 4294901760
    %876 = vmatpush1.msra.mxu0 %v875
    %877 = vmatprep.subr.mxu0 0.0
    %v878 = vand.u32 %v591, 4294901760
    %v879 = vsub.f32 %v591, %v878
    %v880 = vand.u32 %v879, 4294901760
    %v881 = vsub.f32 %v879, %v880
    %v882 = vand.u32 %v881, 4294901760
    %883 = vmatpush1.msra.mxu0 %v882
    %884 = vmatprep.subr.mxu0 0.0
    %v885 = vand.u32 %v592, 4294901760
    %v886 = vsub.f32 %v592, %v885
    %v887 = vand.u32 %v886, 4294901760
    %v888 = vsub.f32 %v886, %v887
    %v889 = vand.u32 %v888, 4294901760
    %890 = vmatpush1.msra.mxu0 %v889
    %891 = vmatprep.subr.mxu0 0.0
    %v892 = vand.u32 %v593, 4294901760
    %v893 = vsub.f32 %v593, %v892
    %v894 = vand.u32 %v893, 4294901760
    %v895 = vsub.f32 %v893, %v894
    %v896 = vand.u32 %v895, 4294901760
    %897 = vmatpush1.msra.mxu0 %v896
    %898 = vmatprep.subr.mxu0 0.0
    %v899 = vand.u32 %v594, 4294901760
    %v900 = vsub.f32 %v594, %v899
    %v901 = vand.u32 %v900, 4294901760
    %v902 = vsub.f32 %v900, %v901
    %v903 = vand.u32 %v902, 4294901760
    %904 = vmatpush1.msra.mxu0 %v903
    %905 = vmatprep.subr.mxu0 0.0
    %v906 = vand.u32 %v595, 4294901760
    %v907 = vsub.f32 %v595, %v906
    %v908 = vand.u32 %v907, 4294901760
    %v909 = vsub.f32 %v907, %v908
    %v910 = vand.u32 %v909, 4294901760
    %911 = vmatpush1.msra.mxu0 %v910
    %912 = vmatprep.subr.mxu0 0.0
    %v913 = vand.u32 %v596, 4294901760
    %v914 = vsub.f32 %v596, %v913
    %v915 = vand.u32 %v914, 4294901760
    %v916 = vsub.f32 %v914, %v915
    %v917 = vand.u32 %v916, 4294901760
    %918 = vmatpush1.msra.mxu0 %v917
    %919 = vmatprep.subr.mxu0 0.0
    %v920 = vand.u32 %v597, 4294901760
    %v921 = vsub.f32 %v597, %v920
    %v922 = vand.u32 %v921, 4294901760
    %v923 = vsub.f32 %v921, %v922
    %v924 = vand.u32 %v923, 4294901760
    %925 = vmatpush1.msra.mxu0 %v924
    %926 = vmatprep.subr.mxu0 0.0
    %v927 = vand.u32 %v598, 4294901760
    %v928 = vsub.f32 %v598, %v927
    %v929 = vand.u32 %v928, 4294901760
    %v930 = vsub.f32 %v928, %v929
    %v931 = vand.u32 %v930, 4294901760
    %932 = vmatpush1.msra.mxu0 %v931
    %933 = vmatprep.subr.mxu0 0.0
    %v934 = vand.u32 %v599, 4294901760
    %v935 = vsub.f32 %v599, %v934
    %v936 = vand.u32 %v935, 4294901760
    %v937 = vsub.f32 %v935, %v936
    %v938 = vand.u32 %v937, 4294901760
    %939 = vmatpush1.msra.mxu0 %v938
    %940 = vmatprep.subr.mxu0 0.0
    %v941 = vand.u32 %v600, 4294901760
    %v942 = vsub.f32 %v600, %v941
    %v943 = vand.u32 %v942, 4294901760
    %v944 = vsub.f32 %v942, %v943
    %v945 = vand.u32 %v944, 4294901760
    %946 = vmatpush1.msra.mxu0 %v945
    %947 = vmatprep.subr.mxu0 0.0
    %v948 = vand.u32 %v601, 4294901760
    %v949 = vsub.f32 %v601, %v948
    %v950 = vand.u32 %v949, 4294901760
    %v951 = vsub.f32 %v949, %v950
    %v952 = vand.u32 %v951, 4294901760
    %953 = vmatpush1.msra.mxu0 %v952
    %954 = vmatprep.subr.mxu0 0.0
    %v955 = vand.u32 %v602, 4294901760
    %v956 = vsub.f32 %v602, %v955
    %v957 = vand.u32 %v956, 4294901760
    %v958 = vsub.f32 %v956, %v957
    %v959 = vand.u32 %v958, 4294901760
    %960 = vmatpush1.msra.mxu0 %v959
    %961 = vmatprep.subr.mxu0 0.0
    %v962 = vand.u32 %v603, 4294901760
    %v963 = vsub.f32 %v603, %v962
    %v964 = vand.u32 %v963, 4294901760
    %v965 = vsub.f32 %v963, %v964
    %v966 = vand.u32 %v965, 4294901760
    %967 = vmatpush1.msra.mxu0 %v966
    %968 = vmatprep.subr.mxu0 0.0
    %v969 = vand.u32 %v604, 4294901760
    %v970 = vsub.f32 %v604, %v969
    %v971 = vand.u32 %v970, 4294901760
    %v972 = vsub.f32 %v970, %v971
    %v973 = vand.u32 %v972, 4294901760
    %974 = vmatpush1.msra.mxu0 %v973
    %975 = vmatprep.subr.mxu0 0.0
    %v976 = vand.u32 %v605, 4294901760
    %v977 = vsub.f32 %v605, %v976
    %v978 = vand.u32 %v977, 4294901760
    %v979 = vsub.f32 %v977, %v978
    %v980 = vand.u32 %v979, 4294901760
    %981 = vmatpush1.msra.mxu0 %v980
    %982 = vmatprep.subr.mxu0 0.0
    %v983 = vand.u32 %v606, 4294901760
    %v984 = vsub.f32 %v606, %v983
    %v985 = vand.u32 %v984, 4294901760
    %v986 = vsub.f32 %v984, %v985
    %v987 = vand.u32 %v986, 4294901760
    %988 = vmatpush1.msra.mxu0 %v987
    %989 = vmatprep.subr.mxu0 0.0
    %v990 = vand.u32 %v607, 4294901760
    %v991 = vsub.f32 %v607, %v990
    %v992 = vand.u32 %v991, 4294901760
    %v993 = vsub.f32 %v991, %v992
    %v994 = vand.u32 %v993, 4294901760
    %995 = vmatpush1.msra.mxu0 %v994
    %996 = vmatprep.subr.mxu0 0.0
    %v997 = vand.u32 %v608, 4294901760
    %v998 = vsub.f32 %v608, %v997
    %v999 = vand.u32 %v998, 4294901760
    %v1000 = vsub.f32 %v998, %v999
    %v1001 = vand.u32 %v1000, 4294901760
    %1002 = vmatpush1.msra.mxu0 %v1001
    %1003 = vmatprep.subr.mxu0 0.0
    %v1004 = vand.u32 %v609, 4294901760
    %v1005 = vsub.f32 %v609, %v1004
    %v1006 = vand.u32 %v1005, 4294901760
    %v1007 = vsub.f32 %v1005, %v1006
    %v1008 = vand.u32 %v1007, 4294901760
    %1009 = vmatpush1.msra.mxu0 %v1008
    %1010 = vmatprep.subr.mxu0 0.0
    %v1011 = vand.u32 %v610, 4294901760
    %v1012 = vsub.f32 %v610, %v1011
    %v1013 = vand.u32 %v1012, 4294901760
    %v1014 = vsub.f32 %v1012, %v1013
    %v1015 = vand.u32 %v1014, 4294901760
    %1016 = vmatpush1.msra.mxu0 %v1015
    %1017 = vmatprep.subr.mxu0 0.0
    %v1018 = vand.u32 %v611, 4294901760
    %v1019 = vsub.f32 %v611, %v1018
    %v1020 = vand.u32 %v1019, 4294901760
    %v1021 = vsub.f32 %v1019, %v1020
    %v1022 = vand.u32 %v1021, 4294901760
    %1023 = vmatpush1.msra.mxu0 %v1022
    %1024 = vmatprep.subr.mxu0 0.0
    %v1025 = vand.u32 %v612, 4294901760
    %v1026 = vsub.f32 %v612, %v1025
    %v1027 = vand.u32 %v1026, 4294901760
    %v1028 = vsub.f32 %v1026, %v1027
    %v1029 = vand.u32 %v1028, 4294901760
    %1030 = vmatpush1.msra.mxu0 %v1029
    %1031 = vmatprep.subr.mxu0 0.0
    %v1032 = vand.u32 %v613, 4294901760
    %v1033 = vsub.f32 %v613, %v1032
    %v1034 = vand.u32 %v1033, 4294901760
    %v1035 = vsub.f32 %v1033, %v1034
    %v1036 = vand.u32 %v1035, 4294901760
    %1037 = vmatpush1.msra.mxu0 %v1036
    %1038 = vmatprep.subr.mxu0 0.0
    %v1039 = vand.u32 %v614, 4294901760
    %v1040 = vsub.f32 %v614, %v1039
    %v1041 = vand.u32 %v1040, 4294901760
    %v1042 = vsub.f32 %v1040, %v1041
    %v1043 = vand.u32 %v1042, 4294901760
    %1044 = vmatpush1.msra.mxu0 %v1043
    %1045 = vmatprep.subr.mxu0 0.0
    %v1046 = vand.u32 %v615, 4294901760
    %v1047 = vsub.f32 %v615, %v1046
    %v1048 = vand.u32 %v1047, 4294901760
    %v1049 = vsub.f32 %v1047, %v1048
    %v1050 = vand.u32 %v1049, 4294901760
    %1051 = vmatpush1.msra.mxu0 %v1050
    %v1052 = vand.u32 %v711, 4294901760
    %1053 = vmatprep.mubr.f32.mxu0 %v1052
    %v1054 = vand.u32 %v710, 4294901760
    %1055 = vmatmul.mubr.f32.gmra.mrb[0].mxu0 %v1054
    %v1056 = vpop.f32.mrb[0].mxu0
    %v1057 = vadd.f32 %v825, %v1056
    %v1058 = vpop.f32.mrb[0].mxu0
    %1059 = vdwg.mxu0
    %1060 = vmatprep.subr.mxu0 0.0
    %v1061 = vand.u32 %v584, 4294901760
    %v1062 = vsub.f32 %v584, %v1061
    %1063 = vmatpush1.msra.mxu0 %v1062
    %1064 = vmatprep.subr.mxu0 0.0
    %v1065 = vand.u32 %v585, 4294901760
    %v1066 = vsub.f32 %v585, %v1065
    %1067 = vmatpush1.msra.mxu0 %v1066
    %1068 = vmatprep.subr.mxu0 0.0
    %v1069 = vand.u32 %v586, 4294901760
    %v1070 = vsub.f32 %v586, %v1069
    %1071 = vmatpush1.msra.mxu0 %v1070
    %1072 = vmatprep.subr.mxu0 0.0
    %v1073 = vand.u32 %v587, 4294901760
    %v1074 = vsub.f32 %v587, %v1073
    %1075 = vmatpush1.msra.mxu0 %v1074
    %1076 = vmatprep.subr.mxu0 0.0
    %v1077 = vand.u32 %v588, 4294901760
    %v1078 = vsub.f32 %v588, %v1077
    %1079 = vmatpush1.msra.mxu0 %v1078
    %1080 = vmatprep.subr.mxu0 0.0
    %v1081 = vand.u32 %v589, 4294901760
    %v1082 = vsub.f32 %v589, %v1081
    %1083 = vmatpush1.msra.mxu0 %v1082
    %1084 = vmatprep.subr.mxu0 0.0
    %v1085 = vand.u32 %v590, 4294901760
    %v1086 = vsub.f32 %v590, %v1085
    %1087 = vmatpush1.msra.mxu0 %v1086
    %1088 = vmatprep.subr.mxu0 0.0
    %v1089 = vand.u32 %v591, 4294901760
    %v1090 = vsub.f32 %v591, %v1089
    %1091 = vmatpush1.msra.mxu0 %v1090
    %1092 = vmatprep.subr.mxu0 0.0
    %v1093 = vand.u32 %v592, 4294901760
    %v1094 = vsub.f32 %v592, %v1093
    %1095 = vmatpush1.msra.mxu0 %v1094
    %1096 = vmatprep.subr.mxu0 0.0
    %v1097 = vand.u32 %v593, 4294901760
    %v1098 = vsub.f32 %v593, %v1097
    %1099 = vmatpush1.msra.mxu0 %v1098
    %1100 = vmatprep.subr.mxu0 0.0
    %v1101 = vand.u32 %v594, 4294901760
    %v1102 = vsub.f32 %v594, %v1101
    %1103 = vmatpush1.msra.mxu0 %v1102
    %1104 = vmatprep.subr.mxu0 0.0
    %v1105 = vand.u32 %v595, 4294901760
    %v1106 = vsub.f32 %v595, %v1105
    %1107 = vmatpush1.msra.mxu0 %v1106
    %1108 = vmatprep.subr.mxu0 0.0
    %v1109 = vand.u32 %v596, 4294901760
    %v1110 = vsub.f32 %v596, %v1109
    %1111 = vmatpush1.msra.mxu0 %v1110
    %1112 = vmatprep.subr.mxu0 0.0
    %v1113 = vand.u32 %v597, 4294901760
    %v1114 = vsub.f32 %v597, %v1113
    %1115 = vmatpush1.msra.mxu0 %v1114
    %1116 = vmatprep.subr.mxu0 0.0
    %v1117 = vand.u32 %v598, 4294901760
    %v1118 = vsub.f32 %v598, %v1117
    %1119 = vmatpush1.msra.mxu0 %v1118
    %1120 = vmatprep.subr.mxu0 0.0
    %v1121 = vand.u32 %v599, 4294901760
    %v1122 = vsub.f32 %v599, %v1121
    %1123 = vmatpush1.msra.mxu0 %v1122
    %1124 = vmatprep.subr.mxu0 0.0
    %v1125 = vand.u32 %v600, 4294901760
    %v1126 = vsub.f32 %v600, %v1125
    %1127 = vmatpush1.msra.mxu0 %v1126
    %1128 = vmatprep.subr.mxu0 0.0
    %v1129 = vand.u32 %v601, 4294901760
    %v1130 = vsub.f32 %v601, %v1129
    %1131 = vmatpush1.msra.mxu0 %v1130
    %1132 = vmatprep.subr.mxu0 0.0
    %v1133 = vand.u32 %v602, 4294901760
    %v1134 = vsub.f32 %v602, %v1133
    %1135 = vmatpush1.msra.mxu0 %v1134
    %1136 = vmatprep.subr.mxu0 0.0
    %v1137 = vand.u32 %v603, 4294901760
    %v1138 = vsub.f32 %v603, %v1137
    %1139 = vmatpush1.msra.mxu0 %v1138
    %1140 = vmatprep.subr.mxu0 0.0
    %v1141 = vand.u32 %v604, 4294901760
    %v1142 = vsub.f32 %v604, %v1141
    %1143 = vmatpush1.msra.mxu0 %v1142
    %1144 = vmatprep.subr.mxu0 0.0
    %v1145 = vand.u32 %v605, 4294901760
    %v1146 = vsub.f32 %v605, %v1145
    %1147 = vmatpush1.msra.mxu0 %v1146
    %1148 = vmatprep.subr.mxu0 0.0
    %v1149 = vand.u32 %v606, 4294901760
    %v1150 = vsub.f32 %v606, %v1149
    %1151 = vmatpush1.msra.mxu0 %v1150
    %1152 = vmatprep.subr.mxu0 0.0
    %v1153 = vand.u32 %v607, 4294901760
    %v1154 = vsub.f32 %v607, %v1153
    %1155 = vmatpush1.msra.mxu0 %v1154
    %1156 = vmatprep.subr.mxu0 0.0
    %v1157 = vand.u32 %v608, 4294901760
    %v1158 = vsub.f32 %v608, %v1157
    %1159 = vmatpush1.msra.mxu0 %v1158
    %1160 = vmatprep.subr.mxu0 0.0
    %v1161 = vand.u32 %v609, 4294901760
    %v1162 = vsub.f32 %v609, %v1161
    %1163 = vmatpush1.msra.mxu0 %v1162
    %1164 = vmatprep.subr.mxu0 0.0
    %v1165 = vand.u32 %v610, 4294901760
    %v1166 = vsub.f32 %v610, %v1165
    %1167 = vmatpush1.msra.mxu0 %v1166
    %1168 = vmatprep.subr.mxu0 0.0
    %v1169 = vand.u32 %v611, 4294901760
    %v1170 = vsub.f32 %v611, %v1169
    %1171 = vmatpush1.msra.mxu0 %v1170
    %1172 = vmatprep.subr.mxu0 0.0
    %v1173 = vand.u32 %v612, 4294901760
    %v1174 = vsub.f32 %v612, %v1173
    %1175 = vmatpush1.msra.mxu0 %v1174
    %1176 = vmatprep.subr.mxu0 0.0
    %v1177 = vand.u32 %v613, 4294901760
    %v1178 = vsub.f32 %v613, %v1177
    %1179 = vmatpush1.msra.mxu0 %v1178
    %1180 = vmatprep.subr.mxu0 0.0
    %v1181 = vand.u32 %v614, 4294901760
    %v1182 = vsub.f32 %v614, %v1181
    %1183 = vmatpush1.msra.mxu0 %v1182
    %1184 = vmatprep.subr.mxu0 0.0
    %v1185 = vand.u32 %v615, 4294901760
    %v1186 = vsub.f32 %v615, %v1185
    %1187 = vmatpush1.msra.mxu0 %v1186
    %v1188 = vand.u32 %v711, 4294901760
    %v1189 = vsub.f32 %v711, %v1188
    %1190 = vmatprep.mubr.f32.mxu0 %v1189
    %v1191 = vand.u32 %v710, 4294901760
    %v1192 = vsub.f32 %v710, %v1191
    %1193 = vmatmul.mubr.f32.gmra.mrb[0].mxu0 %v1192
    %v1194 = vpop.f32.mrb[0].mxu0
    %v1195 = vadd.f32 %v1057, %v1194
    %v1196 = vpop.f32.mrb[0].mxu0
    %1197 = vdwg.mxu0
    %1198 = vmatprep.subr.mxu0 0.0
    %v1199 = vand.u32 %v584, 4294901760
    %1200 = vmatpush1.msra.mxu0 %v1199
    %1201 = vmatprep.subr.mxu0 0.0
    %v1202 = vand.u32 %v585, 4294901760
    %1203 = vmatpush1.msra.mxu0 %v1202
    %1204 = vmatprep.subr.mxu0 0.0
    %v1205 = vand.u32 %v586, 4294901760
    %1206 = vmatpush1.msra.mxu0 %v1205
    %1207 = vmatprep.subr.mxu0 0.0
    %v1208 = vand.u32 %v587, 4294901760
    %1209 = vmatpush1.msra.mxu0 %v1208
    %1210 = vmatprep.subr.mxu0 0.0
    %v1211 = vand.u32 %v588, 4294901760
    %1212 = vmatpush1.msra.mxu0 %v1211
    %1213 = vmatprep.subr.mxu0 0.0
    %v1214 = vand.u32 %v589, 4294901760
    %1215 = vmatpush1.msra.mxu0 %v1214
    %1216 = vmatprep.subr.mxu0 0.0
    %v1217 = vand.u32 %v590, 4294901760
    %1218 = vmatpush1.msra.mxu0 %v1217
    %1219 = vmatprep.subr.mxu0 0.0
    %v1220 = vand.u32 %v591, 4294901760
    %1221 = vmatpush1.msra.mxu0 %v1220
    %1222 = vmatprep.subr.mxu0 0.0
    %v1223 = vand.u32 %v592, 4294901760
    %1224 = vmatpush1.msra.mxu0 %v1223
    %1225 = vmatprep.subr.mxu0 0.0
    %v1226 = vand.u32 %v593, 4294901760
    %1227 = vmatpush1.msra.mxu0 %v1226
    %1228 = vmatprep.subr.mxu0 0.0
    %v1229 = vand.u32 %v594, 4294901760
    %1230 = vmatpush1.msra.mxu0 %v1229
    %1231 = vmatprep.subr.mxu0 0.0
    %v1232 = vand.u32 %v595, 4294901760
    %1233 = vmatpush1.msra.mxu0 %v1232
    %1234 = vmatprep.subr.mxu0 0.0
    %v1235 = vand.u32 %v596, 4294901760
    %1236 = vmatpush1.msra.mxu0 %v1235
    %1237 = vmatprep.subr.mxu0 0.0
    %v1238 = vand.u32 %v597, 4294901760
    %1239 = vmatpush1.msra.mxu0 %v1238
    %1240 = vmatprep.subr.mxu0 0.0
    %v1241 = vand.u32 %v598, 4294901760
    %1242 = vmatpush1.msra.mxu0 %v1241
    %1243 = vmatprep.subr.mxu0 0.0
    %v1244 = vand.u32 %v599, 4294901760
    %1245 = vmatpush1.msra.mxu0 %v1244
    %1246 = vmatprep.subr.mxu0 0.0
    %v1247 = vand.u32 %v600, 4294901760
    %1248 = vmatpush1.msra.mxu0 %v1247
    %1249 = vmatprep.subr.mxu0 0.0
    %v1250 = vand.u32 %v601, 4294901760
    %1251 = vmatpush1.msra.mxu0 %v1250
    %1252 = vmatprep.subr.mxu0 0.0
    %v1253 = vand.u32 %v602, 4294901760
    %1254 = vmatpush1.msra.mxu0 %v1253
    %1255 = vmatprep.subr.mxu0 0.0
    %v1256 = vand.u32 %v603, 4294901760
    %1257 = vmatpush1.msra.mxu0 %v1256
    %1258 = vmatprep.subr.mxu0 0.0
    %v1259 = vand.u32 %v604, 4294901760
    %1260 = vmatpush1.msra.mxu0 %v1259
    %1261 = vmatprep.subr.mxu0 0.0
    %v1262 = vand.u32 %v605, 4294901760
    %1263 = vmatpush1.msra.mxu0 %v1262
    %1264 = vmatprep.subr.mxu0 0.0
    %v1265 = vand.u32 %v606, 4294901760
    %1266 = vmatpush1.msra.mxu0 %v1265
    %1267 = vmatprep.subr.mxu0 0.0
    %v1268 = vand.u32 %v607, 4294901760
    %1269 = vmatpush1.msra.mxu0 %v1268
    %1270 = vmatprep.subr.mxu0 0.0
    %v1271 = vand.u32 %v608, 4294901760
    %1272 = vmatpush1.msra.mxu0 %v1271
    %1273 = vmatprep.subr.mxu0 0.0
    %v1274 = vand.u32 %v609, 4294901760
    %1275 = vmatpush1.msra.mxu0 %v1274
    %1276 = vmatprep.subr.mxu0 0.0
    %v1277 = vand.u32 %v610, 4294901760
    %1278 = vmatpush1.msra.mxu0 %v1277
    %1279 = vmatprep.subr.mxu0 0.0
    %v1280 = vand.u32 %v611, 4294901760
    %1281 = vmatpush1.msra.mxu0 %v1280
    %1282 = vmatprep.subr.mxu0 0.0
    %v1283 = vand.u32 %v612, 4294901760
    %1284 = vmatpush1.msra.mxu0 %v1283
    %1285 = vmatprep.subr.mxu0 0.0
    %v1286 = vand.u32 %v613, 4294901760
    %1287 = vmatpush1.msra.mxu0 %v1286
    %1288 = vmatprep.subr.mxu0 0.0
    %v1289 = vand.u32 %v614, 4294901760
    %1290 = vmatpush1.msra.mxu0 %v1289
    %1291 = vmatprep.subr.mxu0 0.0
    %v1292 = vand.u32 %v615, 4294901760
    %1293 = vmatpush1.msra.mxu0 %v1292
    %v1294 = vand.u32 %v711, 4294901760
    %v1295 = vsub.f32 %v711, %v1294
    %v1296 = vand.u32 %v1295, 4294901760
    %1297 = vmatprep.mubr.f32.mxu0 %v1296
    %v1298 = vand.u32 %v710, 4294901760
    %v1299 = vsub.f32 %v710, %v1298
    %v1300 = vand.u32 %v1299, 4294901760
    %1301 = vmatmul.mubr.f32.gmra.mrb[0].mxu0 %v1300
    %v1302 = vpop.f32.mrb[0].mxu0
    %v1303 = vadd.f32 %v1195, %v1302
    %v1304 = vpop.f32.mrb[0].mxu0
    %1305 = vdwg.mxu0
    %1306 = vmatprep.subr.mxu0 0.0
    %v1307 = vand.u32 %v584, 4294901760
    %v1308 = vsub.f32 %v584, %v1307
    %v1309 = vand.u32 %v1308, 4294901760
    %1310 = vmatpush1.msra.mxu0 %v1309
    %1311 = vmatprep.subr.mxu0 0.0
    %v1312 = vand.u32 %v585, 4294901760
    %v1313 = vsub.f32 %v585, %v1312
    %v1314 = vand.u32 %v1313, 4294901760
    %1315 = vmatpush1.msra.mxu0 %v1314
    %1316 = vmatprep.subr.mxu0 0.0
    %v1317 = vand.u32 %v586, 4294901760
    %v1318 = vsub.f32 %v586, %v1317
    %v1319 = vand.u32 %v1318, 4294901760
    %1320 = vmatpush1.msra.mxu0 %v1319
    %1321 = vmatprep.subr.mxu0 0.0
    %v1322 = vand.u32 %v587, 4294901760
    %v1323 = vsub.f32 %v587, %v1322
    %v1324 = vand.u32 %v1323, 4294901760
    %1325 = vmatpush1.msra.mxu0 %v1324
    %1326 = vmatprep.subr.mxu0 0.0
    %v1327 = vand.u32 %v588, 4294901760
    %v1328 = vsub.f32 %v588, %v1327
    %v1329 = vand.u32 %v1328, 4294901760
    %1330 = vmatpush1.msra.mxu0 %v1329
    %1331 = vmatprep.subr.mxu0 0.0
    %v1332 = vand.u32 %v589, 4294901760
    %v1333 = vsub.f32 %v589, %v1332
    %v1334 = vand.u32 %v1333, 4294901760
    %1335 = vmatpush1.msra.mxu0 %v1334
    %1336 = vmatprep.subr.mxu0 0.0
    %v1337 = vand.u32 %v590, 4294901760
    %v1338 = vsub.f32 %v590, %v1337
    %v1339 = vand.u32 %v1338, 4294901760
    %1340 = vmatpush1.msra.mxu0 %v1339
    %1341 = vmatprep.subr.mxu0 0.0
    %v1342 = vand.u32 %v591, 4294901760
    %v1343 = vsub.f32 %v591, %v1342
    %v1344 = vand.u32 %v1343, 4294901760
    %1345 = vmatpush1.msra.mxu0 %v1344
    %1346 = vmatprep.subr.mxu0 0.0
    %v1347 = vand.u32 %v592, 4294901760
    %v1348 = vsub.f32 %v592, %v1347
    %v1349 = vand.u32 %v1348, 4294901760
    %1350 = vmatpush1.msra.mxu0 %v1349
    %1351 = vmatprep.subr.mxu0 0.0
    %v1352 = vand.u32 %v593, 4294901760
    %v1353 = vsub.f32 %v593, %v1352
    %v1354 = vand.u32 %v1353, 4294901760
    %1355 = vmatpush1.msra.mxu0 %v1354
    %1356 = vmatprep.subr.mxu0 0.0
    %v1357 = vand.u32 %v594, 4294901760
    %v1358 = vsub.f32 %v594, %v1357
    %v1359 = vand.u32 %v1358, 4294901760
    %1360 = vmatpush1.msra.mxu0 %v1359
    %1361 = vmatprep.subr.mxu0 0.0
    %v1362 = vand.u32 %v595, 4294901760
    %v1363 = vsub.f32 %v595, %v1362
    %v1364 = vand.u32 %v1363, 4294901760
    %1365 = vmatpush1.msra.mxu0 %v1364
    %1366 = vmatprep.subr.mxu0 0.0
    %v1367 = vand.u32 %v596, 4294901760
    %v1368 = vsub.f32 %v596, %v1367
    %v1369 = vand.u32 %v1368, 4294901760
    %1370 = vmatpush1.msra.mxu0 %v1369
    %1371 = vmatprep.subr.mxu0 0.0
    %v1372 = vand.u32 %v597, 4294901760
    %v1373 = vsub.f32 %v597, %v1372
    %v1374 = vand.u32 %v1373, 4294901760
    %1375 = vmatpush1.msra.mxu0 %v1374
    %1376 = vmatprep.subr.mxu0 0.0
    %v1377 = vand.u32 %v598, 4294901760
    %v1378 = vsub.f32 %v598, %v1377
    %v1379 = vand.u32 %v1378, 4294901760
    %1380 = vmatpush1.msra.mxu0 %v1379
    %1381 = vmatprep.subr.mxu0 0.0
    %v1382 = vand.u32 %v599, 4294901760
    %v1383 = vsub.f32 %v599, %v1382
    %v1384 = vand.u32 %v1383, 4294901760
    %1385 = vmatpush1.msra.mxu0 %v1384
    %1386 = vmatprep.subr.mxu0 0.0
    %v1387 = vand.u32 %v600, 4294901760
    %v1388 = vsub.f32 %v600, %v1387
    %v1389 = vand.u32 %v1388, 4294901760
    %1390 = vmatpush1.msra.mxu0 %v1389
    %1391 = vmatprep.subr.mxu0 0.0
    %v1392 = vand.u32 %v601, 4294901760
    %v1393 = vsub.f32 %v601, %v1392
    %v1394 = vand.u32 %v1393, 4294901760
    %1395 = vmatpush1.msra.mxu0 %v1394
    %1396 = vmatprep.subr.mxu0 0.0
    %v1397 = vand.u32 %v602, 4294901760
    %v1398 = vsub.f32 %v602, %v1397
    %v1399 = vand.u32 %v1398, 4294901760
    %1400 = vmatpush1.msra.mxu0 %v1399
    %1401 = vmatprep.subr.mxu0 0.0
    %v1402 = vand.u32 %v603, 4294901760
    %v1403 = vsub.f32 %v603, %v1402
    %v1404 = vand.u32 %v1403, 4294901760
    %1405 = vmatpush1.msra.mxu0 %v1404
    %1406 = vmatprep.subr.mxu0 0.0
    %v1407 = vand.u32 %v604, 4294901760
    %v1408 = vsub.f32 %v604, %v1407
    %v1409 = vand.u32 %v1408, 4294901760
    %1410 = vmatpush1.msra.mxu0 %v1409
    %1411 = vmatprep.subr.mxu0 0.0
    %v1412 = vand.u32 %v605, 4294901760
    %v1413 = vsub.f32 %v605, %v1412
    %v1414 = vand.u32 %v1413, 4294901760
    %1415 = vmatpush1.msra.mxu0 %v1414
    %1416 = vmatprep.subr.mxu0 0.0
    %v1417 = vand.u32 %v606, 4294901760
    %v1418 = vsub.f32 %v606, %v1417
    %v1419 = vand.u32 %v1418, 4294901760
    %1420 = vmatpush1.msra.mxu0 %v1419
    %1421 = vmatprep.subr.mxu0 0.0
    %v1422 = vand.u32 %v607, 4294901760
    %v1423 = vsub.f32 %v607, %v1422
    %v1424 = vand.u32 %v1423, 4294901760
    %1425 = vmatpush1.msra.mxu0 %v1424
    %1426 = vmatprep.subr.mxu0 0.0
    %v1427 = vand.u32 %v608, 4294901760
    %v1428 = vsub.f32 %v608, %v1427
    %v1429 = vand.u32 %v1428, 4294901760
    %1430 = vmatpush1.msra.mxu0 %v1429
    %1431 = vmatprep.subr.mxu0 0.0
    %v1432 = vand.u32 %v609, 4294901760
    %v1433 = vsub.f32 %v609, %v1432
    %v1434 = vand.u32 %v1433, 4294901760
    %1435 = vmatpush1.msra.mxu0 %v1434
    %1436 = vmatprep.subr.mxu0 0.0
    %v1437 = vand.u32 %v610, 4294901760
    %v1438 = vsub.f32 %v610, %v1437
    %v1439 = vand.u32 %v1438, 4294901760
    %1440 = vmatpush1.msra.mxu0 %v1439
    %1441 = vmatprep.subr.mxu0 0.0
    %v1442 = vand.u32 %v611, 4294901760
    %v1443 = vsub.f32 %v611, %v1442
    %v1444 = vand.u32 %v1443, 4294901760
    %1445 = vmatpush1.msra.mxu0 %v1444
    %1446 = vmatprep.subr.mxu0 0.0
    %v1447 = vand.u32 %v612, 4294901760
    %v1448 = vsub.f32 %v612, %v1447
    %v1449 = vand.u32 %v1448, 4294901760
    %1450 = vmatpush1.msra.mxu0 %v1449
    %1451 = vmatprep.subr.mxu0 0.0
    %v1452 = vand.u32 %v613, 4294901760
    %v1453 = vsub.f32 %v613, %v1452
    %v1454 = vand.u32 %v1453, 4294901760
    %1455 = vmatpush1.msra.mxu0 %v1454
    %1456 = vmatprep.subr.mxu0 0.0
    %v1457 = vand.u32 %v614, 4294901760
    %v1458 = vsub.f32 %v614, %v1457
    %v1459 = vand.u32 %v1458, 4294901760
    %1460 = vmatpush1.msra.mxu0 %v1459
    %1461 = vmatprep.subr.mxu0 0.0
    %v1462 = vand.u32 %v615, 4294901760
    %v1463 = vsub.f32 %v615, %v1462
    %v1464 = vand.u32 %v1463, 4294901760
    %1465 = vmatpush1.msra.mxu0 %v1464
    %v1466 = vand.u32 %v711, 4294901760
    %1467 = vmatprep.mubr.f32.mxu0 %v1466
    %v1468 = vand.u32 %v710, 4294901760
    %1469 = vmatmul.mubr.f32.gmra.mrb[0].mxu0 %v1468
    %v1470 = vpop.f32.mrb[0].mxu0
    %v1471 = vadd.f32 %v1303, %v1470
    %v1472 = vpop.f32.mrb[0].mxu0
    %1473 = vdwg.mxu0
    %1474 = vmatprep.subr.mxu0 0.0
    %v1475 = vand.u32 %v584, 4294901760
    %1476 = vmatpush1.msra.mxu0 %v1475
    %1477 = vmatprep.subr.mxu0 0.0
    %v1478 = vand.u32 %v585, 4294901760
    %1479 = vmatpush1.msra.mxu0 %v1478
    %1480 = vmatprep.subr.mxu0 0.0
    %v1481 = vand.u32 %v586, 4294901760
    %1482 = vmatpush1.msra.mxu0 %v1481
    %1483 = vmatprep.subr.mxu0 0.0
    %v1484 = vand.u32 %v587, 4294901760
    %1485 = vmatpush1.msra.mxu0 %v1484
    %1486 = vmatprep.subr.mxu0 0.0
    %v1487 = vand.u32 %v588, 4294901760
    %1488 = vmatpush1.msra.mxu0 %v1487
    %1489 = vmatprep.subr.mxu0 0.0
    %v1490 = vand.u32 %v589, 4294901760
    %1491 = vmatpush1.msra.mxu0 %v1490
    %1492 = vmatprep.subr.mxu0 0.0
    %v1493 = vand.u32 %v590, 4294901760
    %1494 = vmatpush1.msra.mxu0 %v1493
    %1495 = vmatprep.subr.mxu0 0.0
    %v1496 = vand.u32 %v591, 4294901760
    %1497 = vmatpush1.msra.mxu0 %v1496
    %1498 = vmatprep.subr.mxu0 0.0
    %v1499 = vand.u32 %v592, 4294901760
    %1500 = vmatpush1.msra.mxu0 %v1499
    %1501 = vmatprep.subr.mxu0 0.0
    %v1502 = vand.u32 %v593, 4294901760
    %1503 = vmatpush1.msra.mxu0 %v1502
    %1504 = vmatprep.subr.mxu0 0.0
    %v1505 = vand.u32 %v594, 4294901760
    %1506 = vmatpush1.msra.mxu0 %v1505
    %1507 = vmatprep.subr.mxu0 0.0
    %v1508 = vand.u32 %v595, 4294901760
    %1509 = vmatpush1.msra.mxu0 %v1508
    %1510 = vmatprep.subr.mxu0 0.0
    %v1511 = vand.u32 %v596, 4294901760
    %1512 = vmatpush1.msra.mxu0 %v1511
    %1513 = vmatprep.subr.mxu0 0.0
    %v1514 = vand.u32 %v597, 4294901760
    %1515 = vmatpush1.msra.mxu0 %v1514
    %1516 = vmatprep.subr.mxu0 0.0
    %v1517 = vand.u32 %v598, 4294901760
    %1518 = vmatpush1.msra.mxu0 %v1517
    %1519 = vmatprep.subr.mxu0 0.0
    %v1520 = vand.u32 %v599, 4294901760
    %1521 = vmatpush1.msra.mxu0 %v1520
    %1522 = vmatprep.subr.mxu0 0.0
    %v1523 = vand.u32 %v600, 4294901760
    %1524 = vmatpush1.msra.mxu0 %v1523
    %1525 = vmatprep.subr.mxu0 0.0
    %v1526 = vand.u32 %v601, 4294901760
    %1527 = vmatpush1.msra.mxu0 %v1526
    %1528 = vmatprep.subr.mxu0 0.0
    %v1529 = vand.u32 %v602, 4294901760
    %1530 = vmatpush1.msra.mxu0 %v1529
    %1531 = vmatprep.subr.mxu0 0.0
    %v1532 = vand.u32 %v603, 4294901760
    %1533 = vmatpush1.msra.mxu0 %v1532
    %1534 = vmatprep.subr.mxu0 0.0
    %v1535 = vand.u32 %v604, 4294901760
    %1536 = vmatpush1.msra.mxu0 %v1535
    %1537 = vmatprep.subr.mxu0 0.0
    %v1538 = vand.u32 %v605, 4294901760
    %1539 = vmatpush1.msra.mxu0 %v1538
    %1540 = vmatprep.subr.mxu0 0.0
    %v1541 = vand.u32 %v606, 4294901760
    %1542 = vmatpush1.msra.mxu0 %v1541
    %1543 = vmatprep.subr.mxu0 0.0
    %v1544 = vand.u32 %v607, 4294901760
    %1545 = vmatpush1.msra.mxu0 %v1544
    %1546 = vmatprep.subr.mxu0 0.0
    %v1547 = vand.u32 %v608, 4294901760
    %1548 = vmatpush1.msra.mxu0 %v1547
    %1549 = vmatprep.subr.mxu0 0.0
    %v1550 = vand.u32 %v609, 4294901760
    %1551 = vmatpush1.msra.mxu0 %v1550
    %1552 = vmatprep.subr.mxu0 0.0
    %v1553 = vand.u32 %v610, 4294901760
    %1554 = vmatpush1.msra.mxu0 %v1553
    %1555 = vmatprep.subr.mxu0 0.0
    %v1556 = vand.u32 %v611, 4294901760
    %1557 = vmatpush1.msra.mxu0 %v1556
    %1558 = vmatprep.subr.mxu0 0.0
    %v1559 = vand.u32 %v612, 4294901760
    %1560 = vmatpush1.msra.mxu0 %v1559
    %1561 = vmatprep.subr.mxu0 0.0
    %v1562 = vand.u32 %v613, 4294901760
    %1563 = vmatpush1.msra.mxu0 %v1562
    %1564 = vmatprep.subr.mxu0 0.0
    %v1565 = vand.u32 %v614, 4294901760
    %1566 = vmatpush1.msra.mxu0 %v1565
    %1567 = vmatprep.subr.mxu0 0.0
    %v1568 = vand.u32 %v615, 4294901760
    %1569 = vmatpush1.msra.mxu0 %v1568
    %v1570 = vand.u32 %v711, 4294901760
    %1571 = vmatprep.mubr.f32.mxu0 %v1570
    %v1572 = vand.u32 %v710, 4294901760
    %1573 = vmatmul.mubr.f32.gmra.mrb[0].mxu0 %v1572
    %v1574 = vpop.f32.mrb[0].mxu0
    %v1575 = vadd.f32 %v1471, %v1574
    %v1576 = vpop.f32.mrb[0].mxu0
    %1577 = vdwg.mxu0
    %1578 = vmatprep.subr.mxu0 0.0
    %v1579 = vand.u32 %v616, 4294901760
    %1580 = vmatpush1.msra.mxu0 %v1579
    %1581 = vmatprep.subr.mxu0 0.0
    %v1582 = vand.u32 %v617, 4294901760
    %1583 = vmatpush1.msra.mxu0 %v1582
    %1584 = vmatprep.subr.mxu0 0.0
    %v1585 = vand.u32 %v618, 4294901760
    %1586 = vmatpush1.msra.mxu0 %v1585
    %1587 = vmatprep.subr.mxu0 0.0
    %v1588 = vand.u32 %v619, 4294901760
    %1589 = vmatpush1.msra.mxu0 %v1588
    %1590 = vmatprep.subr.mxu0 0.0
    %v1591 = vand.u32 %v620, 4294901760
    %1592 = vmatpush1.msra.mxu0 %v1591
    %1593 = vmatprep.subr.mxu0 0.0
    %v1594 = vand.u32 %v621, 4294901760
    %1595 = vmatpush1.msra.mxu0 %v1594
    %1596 = vmatprep.subr.mxu0 0.0
    %v1597 = vand.u32 %v622, 4294901760
    %1598 = vmatpush1.msra.mxu0 %v1597
    %1599 = vmatprep.subr.mxu0 0.0
    %v1600 = vand.u32 %v623, 4294901760
    %1601 = vmatpush1.msra.mxu0 %v1600
    %1602 = vmatprep.subr.mxu0 0.0
    %v1603 = vand.u32 %v624, 4294901760
    %1604 = vmatpush1.msra.mxu0 %v1603
    %1605 = vmatprep.subr.mxu0 0.0
    %v1606 = vand.u32 %v625, 4294901760
    %1607 = vmatpush1.msra.mxu0 %v1606
    %1608 = vmatprep.subr.mxu0 0.0
    %v1609 = vand.u32 %v626, 4294901760
    %1610 = vmatpush1.msra.mxu0 %v1609
    %1611 = vmatprep.subr.mxu0 0.0
    %v1612 = vand.u32 %v627, 4294901760
    %1613 = vmatpush1.msra.mxu0 %v1612
    %1614 = vmatprep.subr.mxu0 0.0
    %v1615 = vand.u32 %v628, 4294901760
    %1616 = vmatpush1.msra.mxu0 %v1615
    %1617 = vmatprep.subr.mxu0 0.0
    %v1618 = vand.u32 %v629, 4294901760
    %1619 = vmatpush1.msra.mxu0 %v1618
    %1620 = vmatprep.subr.mxu0 0.0
    %v1621 = vand.u32 %v630, 4294901760
    %1622 = vmatpush1.msra.mxu0 %v1621
    %1623 = vmatprep.subr.mxu0 0.0
    %v1624 = vand.u32 %v631, 4294901760
    %1625 = vmatpush1.msra.mxu0 %v1624
    %1626 = vmatprep.subr.mxu0 0.0
    %v1627 = vand.u32 %v632, 4294901760
    %1628 = vmatpush1.msra.mxu0 %v1627
    %1629 = vmatprep.subr.mxu0 0.0
    %v1630 = vand.u32 %v633, 4294901760
    %1631 = vmatpush1.msra.mxu0 %v1630
    %1632 = vmatprep.subr.mxu0 0.0
    %v1633 = vand.u32 %v634, 4294901760
    %1634 = vmatpush1.msra.mxu0 %v1633
    %1635 = vmatprep.subr.mxu0 0.0
    %v1636 = vand.u32 %v635, 4294901760
    %1637 = vmatpush1.msra.mxu0 %v1636
    %1638 = vmatprep.subr.mxu0 0.0
    %v1639 = vand.u32 %v636, 4294901760
    %1640 = vmatpush1.msra.mxu0 %v1639
    %1641 = vmatprep.subr.mxu0 0.0
    %v1642 = vand.u32 %v637, 4294901760
    %1643 = vmatpush1.msra.mxu0 %v1642
    %1644 = vmatprep.subr.mxu0 0.0
    %v1645 = vand.u32 %v638, 4294901760
    %1646 = vmatpush1.msra.mxu0 %v1645
    %1647 = vmatprep.subr.mxu0 0.0
    %v1648 = vand.u32 %v639, 4294901760
    %1649 = vmatpush1.msra.mxu0 %v1648
    %1650 = vmatprep.subr.mxu0 0.0
    %v1651 = vand.u32 %v640, 4294901760
    %1652 = vmatpush1.msra.mxu0 %v1651
    %1653 = vmatprep.subr.mxu0 0.0
    %v1654 = vand.u32 %v641, 4294901760
    %1655 = vmatpush1.msra.mxu0 %v1654
    %1656 = vmatprep.subr.mxu0 0.0
    %v1657 = vand.u32 %v642, 4294901760
    %1658 = vmatpush1.msra.mxu0 %v1657
    %1659 = vmatprep.subr.mxu0 0.0
    %v1660 = vand.u32 %v643, 4294901760
    %1661 = vmatpush1.msra.mxu0 %v1660
    %1662 = vmatprep.subr.mxu0 0.0
    %v1663 = vand.u32 %v644, 4294901760
    %1664 = vmatpush1.msra.mxu0 %v1663
    %1665 = vmatprep.subr.mxu0 0.0
    %v1666 = vand.u32 %v645, 4294901760
    %1667 = vmatpush1.msra.mxu0 %v1666
    %1668 = vmatprep.subr.mxu0 0.0
    %v1669 = vand.u32 %v646, 4294901760
    %1670 = vmatpush1.msra.mxu0 %v1669
    %1671 = vmatprep.subr.mxu0 0.0
    %v1672 = vand.u32 %v647, 4294901760
    %1673 = vmatpush1.msra.mxu0 %v1672
    %v1674 = vand.u32 %v713, 4294901760
    %v1675 = vsub.f32 %v713, %v1674
    %v1676 = vand.u32 %v1675, 4294901760
    %v1677 = vsub.f32 %v1675, %v1676
    %v1678 = vand.u32 %v1677, 4294901760
    %1679 = vmatprep.mubr.f32.mxu0 %v1678
    %v1680 = vand.u32 %v712, 4294901760
    %v1681 = vsub.f32 %v712, %v1680
    %v1682 = vand.u32 %v1681, 4294901760
    %v1683 = vsub.f32 %v1681, %v1682
    %v1684 = vand.u32 %v1683, 4294901760
    %1685 = vmatmul.mubr.f32.gmra.mrb[0].mxu0 %v1684
    %v1686 = vpop.f32.mrb[0].mxu0
    %v1687 = vadd.f32 %v1575, %v1686
    %v1688 = vpop.f32.mrb[0].mxu0
    %1689 = vdwg.mxu0
    %1690 = vmatprep.subr.mxu0 0.0
    %v1691 = vand.u32 %v616, 4294901760
    %v1692 = vsub.f32 %v616, %v1691
    %v1693 = vand.u32 %v1692, 4294901760
    %v1694 = vsub.f32 %v1692, %v1693
    %v1695 = vand.u32 %v1694, 4294901760
    %1696 = vmatpush1.msra.mxu0 %v1695
    %1697 = vmatprep.subr.mxu0 0.0
    %v1698 = vand.u32 %v617, 4294901760
    %v1699 = vsub.f32 %v617, %v1698
    %v1700 = vand.u32 %v1699, 4294901760
    %v1701 = vsub.f32 %v1699, %v1700
    %v1702 = vand.u32 %v1701, 4294901760
    %1703 = vmatpush1.msra.mxu0 %v1702
    %1704 = vmatprep.subr.mxu0 0.0
    %v1705 = vand.u32 %v618, 4294901760
    %v1706 = vsub.f32 %v618, %v1705
    %v1707 = vand.u32 %v1706, 4294901760
    %v1708 = vsub.f32 %v1706, %v1707
    %v1709 = vand.u32 %v1708, 4294901760
    %1710 = vmatpush1.msra.mxu0 %v1709
    %1711 = vmatprep.subr.mxu0 0.0
    %v1712 = vand.u32 %v619, 4294901760
    %v1713 = vsub.f32 %v619, %v1712
    %v1714 = vand.u32 %v1713, 4294901760
    %v1715 = vsub.f32 %v1713, %v1714
    %v1716 = vand.u32 %v1715, 4294901760
    %1717 = vmatpush1.msra.mxu0 %v1716
    %1718 = vmatprep.subr.mxu0 0.0
    %v1719 = vand.u32 %v620, 4294901760
    %v1720 = vsub.f32 %v620, %v1719
    %v1721 = vand.u32 %v1720, 4294901760
    %v1722 = vsub.f32 %v1720, %v1721
    %v1723 = vand.u32 %v1722, 4294901760
    %1724 = vmatpush1.msra.mxu0 %v1723
    %1725 = vmatprep.subr.mxu0 0.0
    %v1726 = vand.u32 %v621, 4294901760
    %v1727 = vsub.f32 %v621, %v1726
    %v1728 = vand.u32 %v1727, 4294901760
    %v1729 = vsub.f32 %v1727, %v1728
    %v1730 = vand.u32 %v1729, 4294901760
    %1731 = vmatpush1.msra.mxu0 %v1730
    %1732 = vmatprep.subr.mxu0 0.0
    %v1733 = vand.u32 %v622, 4294901760
    %v1734 = vsub.f32 %v622, %v1733
    %v1735 = vand.u32 %v1734, 4294901760
    %v1736 = vsub.f32 %v1734, %v1735
    %v1737 = vand.u32 %v1736, 4294901760
    %1738 = vmatpush1.msra.mxu0 %v1737
    %1739 = vmatprep.subr.mxu0 0.0
    %v1740 = vand.u32 %v623, 4294901760
    %v1741 = vsub.f32 %v623, %v1740
    %v1742 = vand.u32 %v1741, 4294901760
    %v1743 = vsub.f32 %v1741, %v1742
    %v1744 = vand.u32 %v1743, 4294901760
    %1745 = vmatpush1.msra.mxu0 %v1744
    %1746 = vmatprep.subr.mxu0 0.0
    %v1747 = vand.u32 %v624, 4294901760
    %v1748 = vsub.f32 %v624, %v1747
    %v1749 = vand.u32 %v1748, 4294901760
    %v1750 = vsub.f32 %v1748, %v1749
    %v1751 = vand.u32 %v1750, 4294901760
    %1752 = vmatpush1.msra.mxu0 %v1751
    %1753 = vmatprep.subr.mxu0 0.0
    %v1754 = vand.u32 %v625, 4294901760
    %v1755 = vsub.f32 %v625, %v1754
    %v1756 = vand.u32 %v1755, 4294901760
    %v1757 = vsub.f32 %v1755, %v1756
    %v1758 = vand.u32 %v1757, 4294901760
    %1759 = vmatpush1.msra.mxu0 %v1758
    %1760 = vmatprep.subr.mxu0 0.0
    %v1761 = vand.u32 %v626, 4294901760
    %v1762 = vsub.f32 %v626, %v1761
    %v1763 = vand.u32 %v1762, 4294901760
    %v1764 = vsub.f32 %v1762, %v1763
    %v1765 = vand.u32 %v1764, 4294901760
    %1766 = vmatpush1.msra.mxu0 %v1765
    %1767 = vmatprep.subr.mxu0 0.0
    %v1768 = vand.u32 %v627, 4294901760
    %v1769 = vsub.f32 %v627, %v1768
    %v1770 = vand.u32 %v1769, 4294901760
    %v1771 = vsub.f32 %v1769, %v1770
    %v1772 = vand.u32 %v1771, 4294901760
    %1773 = vmatpush1.msra.mxu0 %v1772
    %1774 = vmatprep.subr.mxu0 0.0
    %v1775 = vand.u32 %v628, 4294901760
    %v1776 = vsub.f32 %v628, %v1775
    %v1777 = vand.u32 %v1776, 4294901760
    %v1778 = vsub.f32 %v1776, %v1777
    %v1779 = vand.u32 %v1778, 4294901760
    %1780 = vmatpush1.msra.mxu0 %v1779
    %1781 = vmatprep.subr.mxu0 0.0
    %v1782 = vand.u32 %v629, 4294901760
    %v1783 = vsub.f32 %v629, %v1782
    %v1784 = vand.u32 %v1783, 4294901760
    %v1785 = vsub.f32 %v1783, %v1784
    %v1786 = vand.u32 %v1785, 4294901760
    %1787 = vmatpush1.msra.mxu0 %v1786
    %1788 = vmatprep.subr.mxu0 0.0
    %v1789 = vand.u32 %v630, 4294901760
    %v1790 = vsub.f32 %v630, %v1789
    %v1791 = vand.u32 %v1790, 4294901760
    %v1792 = vsub.f32 %v1790, %v1791
    %v1793 = vand.u32 %v1792, 4294901760
    %1794 = vmatpush1.msra.mxu0 %v1793
    %1795 = vmatprep.subr.mxu0 0.0
    %v1796 = vand.u32 %v631, 4294901760
    %v1797 = vsub.f32 %v631, %v1796
    %v1798 = vand.u32 %v1797, 4294901760
    %v1799 = vsub.f32 %v1797, %v1798
    %v1800 = vand.u32 %v1799, 4294901760
    %1801 = vmatpush1.msra.mxu0 %v1800
    %1802 = vmatprep.subr.mxu0 0.0
    %v1803 = vand.u32 %v632, 4294901760
    %v1804 = vsub.f32 %v632, %v1803
    %v1805 = vand.u32 %v1804, 4294901760
    %v1806 = vsub.f32 %v1804, %v1805
    %v1807 = vand.u32 %v1806, 4294901760
    %1808 = vmatpush1.msra.mxu0 %v1807
    %1809 = vmatprep.subr.mxu0 0.0
    %v1810 = vand.u32 %v633, 4294901760
    %v1811 = vsub.f32 %v633, %v1810
    %v1812 = vand.u32 %v1811, 4294901760
    %v1813 = vsub.f32 %v1811, %v1812
    %v1814 = vand.u32 %v1813, 4294901760
    %1815 = vmatpush1.msra.mxu0 %v1814
    %1816 = vmatprep.subr.mxu0 0.0
    %v1817 = vand.u32 %v634, 4294901760
    %v1818 = vsub.f32 %v634, %v1817
    %v1819 = vand.u32 %v1818, 4294901760
    %v1820 = vsub.f32 %v1818, %v1819
    %v1821 = vand.u32 %v1820, 4294901760
    %1822 = vmatpush1.msra.mxu0 %v1821
    %1823 = vmatprep.subr.mxu0 0.0
    %v1824 = vand.u32 %v635, 4294901760
    %v1825 = vsub.f32 %v635, %v1824
    %v1826 = vand.u32 %v1825, 4294901760
    %v1827 = vsub.f32 %v1825, %v1826
    %v1828 = vand.u32 %v1827, 4294901760
    %1829 = vmatpush1.msra.mxu0 %v1828
    %1830 = vmatprep.subr.mxu0 0.0
    %v1831 = vand.u32 %v636, 4294901760
    %v1832 = vsub.f32 %v636, %v1831
    %v1833 = vand.u32 %v1832, 4294901760
    %v1834 = vsub.f32 %v1832, %v1833
    %v1835 = vand.u32 %v1834, 4294901760
    %1836 = vmatpush1.msra.mxu0 %v1835
    %1837 = vmatprep.subr.mxu0 0.0
    %v1838 = vand.u32 %v637, 4294901760
    %v1839 = vsub.f32 %v637, %v1838
    %v1840 = vand.u32 %v1839, 4294901760
    %v1841 = vsub.f32 %v1839, %v1840
    %v1842 = vand.u32 %v1841, 4294901760
    %1843 = vmatpush1.msra.mxu0 %v1842
    %1844 = vmatprep.subr.mxu0 0.0
    %v1845 = vand.u32 %v638, 4294901760
    %v1846 = vsub.f32 %v638, %v1845
    %v1847 = vand.u32 %v1846, 4294901760
    %v1848 = vsub.f32 %v1846, %v1847
    %v1849 = vand.u32 %v1848, 4294901760
    %1850 = vmatpush1.msra.mxu0 %v1849
    %1851 = vmatprep.subr.mxu0 0.0
    %v1852 = vand.u32 %v639, 4294901760
    %v1853 = vsub.f32 %v639, %v1852
    %v1854 = vand.u32 %v1853, 4294901760
    %v1855 = vsub.f32 %v1853, %v1854
    %v1856 = vand.u32 %v1855, 4294901760
    %1857 = vmatpush1.msra.mxu0 %v1856
    %1858 = vmatprep.subr.mxu0 0.0
    %v1859 = vand.u32 %v640, 4294901760
    %v1860 = vsub.f32 %v640, %v1859
    %v1861 = vand.u32 %v1860, 4294901760
    %v1862 = vsub.f32 %v1860, %v1861
    %v1863 = vand.u32 %v1862, 4294901760
    %1864 = vmatpush1.msra.mxu0 %v1863
    %1865 = vmatprep.subr.mxu0 0.0
    %v1866 = vand.u32 %v641, 4294901760
    %v1867 = vsub.f32 %v641, %v1866
    %v1868 = vand.u32 %v1867, 4294901760
    %v1869 = vsub.f32 %v1867, %v1868
    %v1870 = vand.u32 %v1869, 4294901760
    %1871 = vmatpush1.msra.mxu0 %v1870
    %1872 = vmatprep.subr.mxu0 0.0
    %v1873 = vand.u32 %v642, 4294901760
    %v1874 = vsub.f32 %v642, %v1873
    %v1875 = vand.u32 %v1874, 4294901760
    %v1876 = vsub.f32 %v1874, %v1875
    %v1877 = vand.u32 %v1876, 4294901760
    %1878 = vmatpush1.msra.mxu0 %v1877
    %1879 = vmatprep.subr.mxu0 0.0
    %v1880 = vand.u32 %v643, 4294901760
    %v1881 = vsub.f32 %v643, %v1880
    %v1882 = vand.u32 %v1881, 4294901760
    %v1883 = vsub.f32 %v1881, %v1882
    %v1884 = vand.u32 %v1883, 4294901760
    %1885 = vmatpush1.msra.mxu0 %v1884
    %1886 = vmatprep.subr.mxu0 0.0
    %v1887 = vand.u32 %v644, 4294901760
    %v1888 = vsub.f32 %v644, %v1887
    %v1889 = vand.u32 %v1888, 4294901760
    %v1890 = vsub.f32 %v1888, %v1889
    %v1891 = vand.u32 %v1890, 4294901760
    %1892 = vmatpush1.msra.mxu0 %v1891
    %1893 = vmatprep.subr.mxu0 0.0
    %v1894 = vand.u32 %v645, 4294901760
    %v1895 = vsub.f32 %v645, %v1894
    %v1896 = vand.u32 %v1895, 4294901760
    %v1897 = vsub.f32 %v1895, %v1896
    %v1898 = vand.u32 %v1897, 4294901760
    %1899 = vmatpush1.msra.mxu0 %v1898
    %1900 = vmatprep.subr.mxu0 0.0
    %v1901 = vand.u32 %v646, 4294901760
    %v1902 = vsub.f32 %v646, %v1901
    %v1903 = vand.u32 %v1902, 4294901760
    %v1904 = vsub.f32 %v1902, %v1903
    %v1905 = vand.u32 %v1904, 4294901760
    %1906 = vmatpush1.msra.mxu0 %v1905
    %1907 = vmatprep.subr.mxu0 0.0
    %v1908 = vand.u32 %v647, 4294901760
    %v1909 = vsub.f32 %v647, %v1908
    %v1910 = vand.u32 %v1909, 4294901760
    %v1911 = vsub.f32 %v1909, %v1910
    %v1912 = vand.u32 %v1911, 4294901760
    %1913 = vmatpush1.msra.mxu0 %v1912
    %v1914 = vand.u32 %v713, 4294901760
    %1915 = vmatprep.mubr.f32.mxu0 %v1914
    %v1916 = vand.u32 %v712, 4294901760
    %1917 = vmatmul.mubr.f32.gmra.mrb[0].mxu0 %v1916
    %v1918 = vpop.f32.mrb[0].mxu0
    %v1919 = vadd.f32 %v1687, %v1918
    %v1920 = vpop.f32.mrb[0].mxu0
    %1921 = vdwg.mxu0
    %1922 = vmatprep.subr.mxu0 0.0
    %v1923 = vand.u32 %v616, 4294901760
    %v1924 = vsub.f32 %v616, %v1923
    %1925 = vmatpush1.msra.mxu0 %v1924
    %1926 = vmatprep.subr.mxu0 0.0
    %v1927 = vand.u32 %v617, 4294901760
    %v1928 = vsub.f32 %v617, %v1927
    %1929 = vmatpush1.msra.mxu0 %v1928
    %1930 = vmatprep.subr.mxu0 0.0
    %v1931 = vand.u32 %v618, 4294901760
    %v1932 = vsub.f32 %v618, %v1931
    %1933 = vmatpush1.msra.mxu0 %v1932
    %1934 = vmatprep.subr.mxu0 0.0
    %v1935 = vand.u32 %v619, 4294901760
    %v1936 = vsub.f32 %v619, %v1935
    %1937 = vmatpush1.msra.mxu0 %v1936
    %1938 = vmatprep.subr.mxu0 0.0
    %v1939 = vand.u32 %v620, 4294901760
    %v1940 = vsub.f32 %v620, %v1939
    %1941 = vmatpush1.msra.mxu0 %v1940
    %1942 = vmatprep.subr.mxu0 0.0
    %v1943 = vand.u32 %v621, 4294901760
    %v1944 = vsub.f32 %v621, %v1943
    %1945 = vmatpush1.msra.mxu0 %v1944
    %1946 = vmatprep.subr.mxu0 0.0
    %v1947 = vand.u32 %v622, 4294901760
    %v1948 = vsub.f32 %v622, %v1947
    %1949 = vmatpush1.msra.mxu0 %v1948
    %1950 = vmatprep.subr.mxu0 0.0
    %v1951 = vand.u32 %v623, 4294901760
    %v1952 = vsub.f32 %v623, %v1951
    %1953 = vmatpush1.msra.mxu0 %v1952
    %1954 = vmatprep.subr.mxu0 0.0
    %v1955 = vand.u32 %v624, 4294901760
    %v1956 = vsub.f32 %v624, %v1955
    %1957 = vmatpush1.msra.mxu0 %v1956
    %1958 = vmatprep.subr.mxu0 0.0
    %v1959 = vand.u32 %v625, 4294901760
    %v1960 = vsub.f32 %v625, %v1959
    %1961 = vmatpush1.msra.mxu0 %v1960
    %1962 = vmatprep.subr.mxu0 0.0
    %v1963 = vand.u32 %v626, 4294901760
    %v1964 = vsub.f32 %v626, %v1963
    %1965 = vmatpush1.msra.mxu0 %v1964
    %1966 = vmatprep.subr.mxu0 0.0
    %v1967 = vand.u32 %v627, 4294901760
    %v1968 = vsub.f32 %v627, %v1967
    %1969 = vmatpush1.msra.mxu0 %v1968
    %1970 = vmatprep.subr.mxu0 0.0
    %v1971 = vand.u32 %v628, 4294901760
    %v1972 = vsub.f32 %v628, %v1971
    %1973 = vmatpush1.msra.mxu0 %v1972
    %1974 = vmatprep.subr.mxu0 0.0
    %v1975 = vand.u32 %v629, 4294901760
    %v1976 = vsub.f32 %v629, %v1975
    %1977 = vmatpush1.msra.mxu0 %v1976
    %1978 = vmatprep.subr.mxu0 0.0
    %v1979 = vand.u32 %v630, 4294901760
    %v1980 = vsub.f32 %v630, %v1979
    %1981 = vmatpush1.msra.mxu0 %v1980
    %1982 = vmatprep.subr.mxu0 0.0
    %v1983 = vand.u32 %v631, 4294901760
    %v1984 = vsub.f32 %v631, %v1983
    %1985 = vmatpush1.msra.mxu0 %v1984
    %1986 = vmatprep.subr.mxu0 0.0
    %v1987 = vand.u32 %v632, 4294901760
    %v1988 = vsub.f32 %v632, %v1987
    %1989 = vmatpush1.msra.mxu0 %v1988
    %1990 = vmatprep.subr.mxu0 0.0
    %v1991 = vand.u32 %v633, 4294901760
    %v1992 = vsub.f32 %v633, %v1991
    %1993 = vmatpush1.msra.mxu0 %v1992
    %1994 = vmatprep.subr.mxu0 0.0
    %v1995 = vand.u32 %v634, 4294901760
    %v1996 = vsub.f32 %v634, %v1995
    %1997 = vmatpush1.msra.mxu0 %v1996
    %1998 = vmatprep.subr.mxu0 0.0
    %v1999 = vand.u32 %v635, 4294901760
    %v2000 = vsub.f32 %v635, %v1999
    %2001 = vmatpush1.msra.mxu0 %v2000
    %2002 = vmatprep.subr.mxu0 0.0
    %v2003 = vand.u32 %v636, 4294901760
    %v2004 = vsub.f32 %v636, %v2003
    %2005 = vmatpush1.msra.mxu0 %v2004
    %2006 = vmatprep.subr.mxu0 0.0
    %v2007 = vand.u32 %v637, 4294901760
    %v2008 = vsub.f32 %v637, %v2007
    %2009 = vmatpush1.msra.mxu0 %v2008
    %2010 = vmatprep.subr.mxu0 0.0
    %v2011 = vand.u32 %v638, 4294901760
    %v2012 = vsub.f32 %v638, %v2011
    %2013 = vmatpush1.msra.mxu0 %v2012
    %2014 = vmatprep.subr.mxu0 0.0
    %v2015 = vand.u32 %v639, 4294901760
    %v2016 = vsub.f32 %v639, %v2015
    %2017 = vmatpush1.msra.mxu0 %v2016
    %2018 = vmatprep.subr.mxu0 0.0
    %v2019 = vand.u32 %v640, 4294901760
    %v2020 = vsub.f32 %v640, %v2019
    %2021 = vmatpush1.msra.mxu0 %v2020
    %2022 = vmatprep.subr.mxu0 0.0
    %v2023 = vand.u32 %v641, 4294901760
    %v2024 = vsub.f32 %v641, %v2023
    %2025 = vmatpush1.msra.mxu0 %v2024
    %2026 = vmatprep.subr.mxu0 0.0
    %v2027 = vand.u32 %v642, 4294901760
    %v2028 = vsub.f32 %v642, %v2027
    %2029 = vmatpush1.msra.mxu0 %v2028
    %2030 = vmatprep.subr.mxu0 0.0
    %v2031 = vand.u32 %v643, 4294901760
    %v2032 = vsub.f32 %v643, %v2031
    %2033 = vmatpush1.msra.mxu0 %v2032
    %2034 = vmatprep.subr.mxu0 0.0
    %v2035 = vand.u32 %v644, 4294901760
    %v2036 = vsub.f32 %v644, %v2035
    %2037 = vmatpush1.msra.mxu0 %v2036
    %2038 = vmatprep.subr.mxu0 0.0
    %v2039 = vand.u32 %v645, 4294901760
    %v2040 = vsub.f32 %v645, %v2039
    %2041 = vmatpush1.msra.mxu0 %v2040
    %2042 = vmatprep.subr.mxu0 0.0
    %v2043 = vand.u32 %v646, 4294901760
    %v2044 = vsub.f32 %v646, %v2043
    %2045 = vmatpush1.msra.mxu0 %v2044
    %2046 = vmatprep.subr.mxu0 0.0
    %v2047 = vand.u32 %v647, 4294901760
    %v2048 = vsub.f32 %v647, %v2047
    %2049 = vmatpush1.msra.mxu0 %v2048
    %v2050 = vand.u32 %v713, 4294901760
    %v2051 = vsub.f32 %v713, %v2050
    %2052 = vmatprep.mubr.f32.mxu0 %v2051
    %v2053 = vand.u32 %v712, 4294901760
    %v2054 = vsub.f32 %v712, %v2053
    %2055 = vmatmul.mubr.f32.gmra.mrb[0].mxu0 %v2054
    %v2056 = vpop.f32.mrb[0].mxu0
    %v2057 = vadd.f32 %v1919, %v2056
    %v2058 = vpop.f32.mrb[0].mxu0
    %2059 = vdwg.mxu0
    %2060 = vmatprep.subr.mxu0 0.0
    %v2061 = vand.u32 %v616, 4294901760
    %2062 = vmatpush1.msra.mxu0 %v2061
    %2063 = vmatprep.subr.mxu0 0.0
    %v2064 = vand.u32 %v617, 4294901760
    %2065 = vmatpush1.msra.mxu0 %v2064
    %2066 = vmatprep.subr.mxu0 0.0
    %v2067 = vand.u32 %v618, 4294901760
    %2068 = vmatpush1.msra.mxu0 %v2067
    %2069 = vmatprep.subr.mxu0 0.0
    %v2070 = vand.u32 %v619, 4294901760
    %2071 = vmatpush1.msra.mxu0 %v2070
    %2072 = vmatprep.subr.mxu0 0.0
    %v2073 = vand.u32 %v620, 4294901760
    %2074 = vmatpush1.msra.mxu0 %v2073
    %2075 = vmatprep.subr.mxu0 0.0
    %v2076 = vand.u32 %v621, 4294901760
    %2077 = vmatpush1.msra.mxu0 %v2076
    %2078 = vmatprep.subr.mxu0 0.0
    %v2079 = vand.u32 %v622, 4294901760
    %2080 = vmatpush1.msra.mxu0 %v2079
    %2081 = vmatprep.subr.mxu0 0.0
    %v2082 = vand.u32 %v623, 4294901760
    %2083 = vmatpush1.msra.mxu0 %v2082
    %2084 = vmatprep.subr.mxu0 0.0
    %v2085 = vand.u32 %v624, 4294901760
    %2086 = vmatpush1.msra.mxu0 %v2085
    %2087 = vmatprep.subr.mxu0 0.0
    %v2088 = vand.u32 %v625, 4294901760
    %2089 = vmatpush1.msra.mxu0 %v2088
    %2090 = vmatprep.subr.mxu0 0.0
    %v2091 = vand.u32 %v626, 4294901760
    %2092 = vmatpush1.msra.mxu0 %v2091
    %2093 = vmatprep.subr.mxu0 0.0
    %v2094 = vand.u32 %v627, 4294901760
    %2095 = vmatpush1.msra.mxu0 %v2094
    %2096 = vmatprep.subr.mxu0 0.0
    %v2097 = vand.u32 %v628, 4294901760
    %2098 = vmatpush1.msra.mxu0 %v2097
    %2099 = vmatprep.subr.mxu0 0.0
    %v2100 = vand.u32 %v629, 4294901760
    %2101 = vmatpush1.msra.mxu0 %v2100
    %2102 = vmatprep.subr.mxu0 0.0
    %v2103 = vand.u32 %v630, 4294901760
    %2104 = vmatpush1.msra.mxu0 %v2103
    %2105 = vmatprep.subr.mxu0 0.0
    %v2106 = vand.u32 %v631, 4294901760
    %2107 = vmatpush1.msra.mxu0 %v2106
    %2108 = vmatprep.subr.mxu0 0.0
    %v2109 = vand.u32 %v632, 4294901760
    %2110 = vmatpush1.msra.mxu0 %v2109
    %2111 = vmatprep.subr.mxu0 0.0
    %v2112 = vand.u32 %v633, 4294901760
    %2113 = vmatpush1.msra.mxu0 %v2112
    %2114 = vmatprep.subr.mxu0 0.0
    %v2115 = vand.u32 %v634, 4294901760
    %2116 = vmatpush1.msra.mxu0 %v2115
    %2117 = vmatprep.subr.mxu0 0.0
    %v2118 = vand.u32 %v635, 4294901760
    %2119 = vmatpush1.msra.mxu0 %v2118
    %2120 = vmatprep.subr.mxu0 0.0
    %v2121 = vand.u32 %v636, 4294901760
    %2122 = vmatpush1.msra.mxu0 %v2121
    %2123 = vmatprep.subr.mxu0 0.0
    %v2124 = vand.u32 %v637, 4294901760
    %2125 = vmatpush1.msra.mxu0 %v2124
    %2126 = vmatprep.subr.mxu0 0.0
    %v2127 = vand.u32 %v638, 4294901760
    %2128 = vmatpush1.msra.mxu0 %v2127
    %2129 = vmatprep.subr.mxu0 0.0
    %v2130 = vand.u32 %v639, 4294901760
    %2131 = vmatpush1.msra.mxu0 %v2130
    %2132 = vmatprep.subr.mxu0 0.0
    %v2133 = vand.u32 %v640, 4294901760
    %2134 = vmatpush1.msra.mxu0 %v2133
    %2135 = vmatprep.subr.mxu0 0.0
    %v2136 = vand.u32 %v641, 4294901760
    %2137 = vmatpush1.msra.mxu0 %v2136
    %2138 = vmatprep.subr.mxu0 0.0
    %v2139 = vand.u32 %v642, 4294901760
    %2140 = vmatpush1.msra.mxu0 %v2139
    %2141 = vmatprep.subr.mxu0 0.0
    %v2142 = vand.u32 %v643, 4294901760
    %2143 = vmatpush1.msra.mxu0 %v2142
    %2144 = vmatprep.subr.mxu0 0.0
    %v2145 = vand.u32 %v644, 4294901760
    %2146 = vmatpush1.msra.mxu0 %v2145
    %2147 = vmatprep.subr.mxu0 0.0
    %v2148 = vand.u32 %v645, 4294901760
    %2149 = vmatpush1.msra.mxu0 %v2148
    %2150 = vmatprep.subr.mxu0 0.0
    %v2151 = vand.u32 %v646, 4294901760
    %2152 = vmatpush1.msra.mxu0 %v2151
    %2153 = vmatprep.subr.mxu0 0.0
    %v2154 = vand.u32 %v647, 4294901760
    %2155 = vmatpush1.msra.mxu0 %v2154
    %v2156 = vand.u32 %v713, 4294901760
    %v2157 = vsub.f32 %v713, %v2156
    %v2158 = vand.u32 %v2157, 4294901760
    %2159 = vmatprep.mubr.f32.mxu0 %v2158
    %v2160 = vand.u32 %v712, 4294901760
    %v2161 = vsub.f32 %v712, %v2160
    %v2162 = vand.u32 %v2161, 4294901760
    %2163 = vmatmul.mubr.f32.gmra.mrb[0].mxu0 %v2162
    %v2164 = vpop.f32.mrb[0].mxu0
    %v2165 = vadd.f32 %v2057, %v2164
    %v2166 = vpop.f32.mrb[0].mxu0
    %2167 = vdwg.mxu0
    %2168 = vmatprep.subr.mxu0 0.0
    %v2169 = vand.u32 %v616, 4294901760
    %v2170 = vsub.f32 %v616, %v2169
    %v2171 = vand.u32 %v2170, 4294901760
    %2172 = vmatpush1.msra.mxu0 %v2171
    %2173 = vmatprep.subr.mxu0 0.0
    %v2174 = vand.u32 %v617, 4294901760
    %v2175 = vsub.f32 %v617, %v2174
    %v2176 = vand.u32 %v2175, 4294901760
    %2177 = vmatpush1.msra.mxu0 %v2176
    %2178 = vmatprep.subr.mxu0 0.0
    %v2179 = vand.u32 %v618, 4294901760
    %v2180 = vsub.f32 %v618, %v2179
    %v2181 = vand.u32 %v2180, 4294901760
    %2182 = vmatpush1.msra.mxu0 %v2181
    %2183 = vmatprep.subr.mxu0 0.0
    %v2184 = vand.u32 %v619, 4294901760
    %v2185 = vsub.f32 %v619, %v2184
    %v2186 = vand.u32 %v2185, 4294901760
    %2187 = vmatpush1.msra.mxu0 %v2186
    %2188 = vmatprep.subr.mxu0 0.0
    %v2189 = vand.u32 %v620, 4294901760
    %v2190 = vsub.f32 %v620, %v2189
    %v2191 = vand.u32 %v2190, 4294901760
    %2192 = vmatpush1.msra.mxu0 %v2191
    %2193 = vmatprep.subr.mxu0 0.0
    %v2194 = vand.u32 %v621, 4294901760
    %v2195 = vsub.f32 %v621, %v2194
    %v2196 = vand.u32 %v2195, 4294901760
    %2197 = vmatpush1.msra.mxu0 %v2196
    %2198 = vmatprep.subr.mxu0 0.0
    %v2199 = vand.u32 %v622, 4294901760
    %v2200 = vsub.f32 %v622, %v2199
    %v2201 = vand.u32 %v2200, 4294901760
    %2202 = vmatpush1.msra.mxu0 %v2201
    %2203 = vmatprep.subr.mxu0 0.0
    %v2204 = vand.u32 %v623, 4294901760
    %v2205 = vsub.f32 %v623, %v2204
    %v2206 = vand.u32 %v2205, 4294901760
    %2207 = vmatpush1.msra.mxu0 %v2206
    %2208 = vmatprep.subr.mxu0 0.0
    %v2209 = vand.u32 %v624, 4294901760
    %v2210 = vsub.f32 %v624, %v2209
    %v2211 = vand.u32 %v2210, 4294901760
    %2212 = vmatpush1.msra.mxu0 %v2211
    %2213 = vmatprep.subr.mxu0 0.0
    %v2214 = vand.u32 %v625, 4294901760
    %v2215 = vsub.f32 %v625, %v2214
    %v2216 = vand.u32 %v2215, 4294901760
    %2217 = vmatpush1.msra.mxu0 %v2216
    %2218 = vmatprep.subr.mxu0 0.0
    %v2219 = vand.u32 %v626, 4294901760
    %v2220 = vsub.f32 %v626, %v2219
    %v2221 = vand.u32 %v2220, 4294901760
    %2222 = vmatpush1.msra.mxu0 %v2221
    %2223 = vmatprep.subr.mxu0 0.0
    %v2224 = vand.u32 %v627, 4294901760
    %v2225 = vsub.f32 %v627, %v2224
    %v2226 = vand.u32 %v2225, 4294901760
    %2227 = vmatpush1.msra.mxu0 %v2226
    %2228 = vmatprep.subr.mxu0 0.0
    %v2229 = vand.u32 %v628, 4294901760
    %v2230 = vsub.f32 %v628, %v2229
    %v2231 = vand.u32 %v2230, 4294901760
    %2232 = vmatpush1.msra.mxu0 %v2231
    %2233 = vmatprep.subr.mxu0 0.0
    %v2234 = vand.u32 %v629, 4294901760
    %v2235 = vsub.f32 %v629, %v2234
    %v2236 = vand.u32 %v2235, 4294901760
    %2237 = vmatpush1.msra.mxu0 %v2236
    %2238 = vmatprep.subr.mxu0 0.0
    %v2239 = vand.u32 %v630, 4294901760
    %v2240 = vsub.f32 %v630, %v2239
    %v2241 = vand.u32 %v2240, 4294901760
    %2242 = vmatpush1.msra.mxu0 %v2241
    %2243 = vmatprep.subr.mxu0 0.0
    %v2244 = vand.u32 %v631, 4294901760
    %v2245 = vsub.f32 %v631, %v2244
    %v2246 = vand.u32 %v2245, 4294901760
    %2247 = vmatpush1.msra.mxu0 %v2246
    %2248 = vmatprep.subr.mxu0 0.0
    %v2249 = vand.u32 %v632, 4294901760
    %v2250 = vsub.f32 %v632, %v2249
    %v2251 = vand.u32 %v2250, 4294901760
    %2252 = vmatpush1.msra.mxu0 %v2251
    %2253 = vmatprep.subr.mxu0 0.0
    %v2254 = vand.u32 %v633, 4294901760
    %v2255 = vsub.f32 %v633, %v2254
    %v2256 = vand.u32 %v2255, 4294901760
    %2257 = vmatpush1.msra.mxu0 %v2256
    %2258 = vmatprep.subr.mxu0 0.0
    %v2259 = vand.u32 %v634, 4294901760
    %v2260 = vsub.f32 %v634, %v2259
    %v2261 = vand.u32 %v2260, 4294901760
    %2262 = vmatpush1.msra.mxu0 %v2261
    %2263 = vmatprep.subr.mxu0 0.0
    %v2264 = vand.u32 %v635, 4294901760
    %v2265 = vsub.f32 %v635, %v2264
    %v2266 = vand.u32 %v2265, 4294901760
    %2267 = vmatpush1.msra.mxu0 %v2266
    %2268 = vmatprep.subr.mxu0 0.0
    %v2269 = vand.u32 %v636, 4294901760
    %v2270 = vsub.f32 %v636, %v2269
    %v2271 = vand.u32 %v2270, 4294901760
    %2272 = vmatpush1.msra.mxu0 %v2271
    %2273 = vmatprep.subr.mxu0 0.0
    %v2274 = vand.u32 %v637, 4294901760
    %v2275 = vsub.f32 %v637, %v2274
    %v2276 = vand.u32 %v2275, 4294901760
    %2277 = vmatpush1.msra.mxu0 %v2276
    %2278 = vmatprep.subr.mxu0 0.0
    %v2279 = vand.u32 %v638, 4294901760
    %v2280 = vsub.f32 %v638, %v2279
    %v2281 = vand.u32 %v2280, 4294901760
    %2282 = vmatpush1.msra.mxu0 %v2281
    %2283 = vmatprep.subr.mxu0 0.0
    %v2284 = vand.u32 %v639, 4294901760
    %v2285 = vsub.f32 %v639, %v2284
    %v2286 = vand.u32 %v2285, 4294901760
    %2287 = vmatpush1.msra.mxu0 %v2286
    %2288 = vmatprep.subr.mxu0 0.0
    %v2289 = vand.u32 %v640, 4294901760
    %v2290 = vsub.f32 %v640, %v2289
    %v2291 = vand.u32 %v2290, 4294901760
    %2292 = vmatpush1.msra.mxu0 %v2291
    %2293 = vmatprep.subr.mxu0 0.0
    %v2294 = vand.u32 %v641, 4294901760
    %v2295 = vsub.f32 %v641, %v2294
    %v2296 = vand.u32 %v2295, 4294901760
    %2297 = vmatpush1.msra.mxu0 %v2296
    %2298 = vmatprep.subr.mxu0 0.0
    %v2299 = vand.u32 %v642, 4294901760
    %v2300 = vsub.f32 %v642, %v2299
    %v2301 = vand.u32 %v2300, 4294901760
    %2302 = vmatpush1.msra.mxu0 %v2301
    %2303 = vmatprep.subr.mxu0 0.0
    %v2304 = vand.u32 %v643, 4294901760
    %v2305 = vsub.f32 %v643, %v2304
    %v2306 = vand.u32 %v2305, 4294901760
    %2307 = vmatpush1.msra.mxu0 %v2306
    %2308 = vmatprep.subr.mxu0 0.0
    %v2309 = vand.u32 %v644, 4294901760
    %v2310 = vsub.f32 %v644, %v2309
    %v2311 = vand.u32 %v2310, 4294901760
    %2312 = vmatpush1.msra.mxu0 %v2311
    %2313 = vmatprep.subr.mxu0 0.0
    %v2314 = vand.u32 %v645, 4294901760
    %v2315 = vsub.f32 %v645, %v2314
    %v2316 = vand.u32 %v2315, 4294901760
    %2317 = vmatpush1.msra.mxu0 %v2316
    %2318 = vmatprep.subr.mxu0 0.0
    %v2319 = vand.u32 %v646, 4294901760
    %v2320 = vsub.f32 %v646, %v2319
    %v2321 = vand.u32 %v2320, 4294901760
    %2322 = vmatpush1.msra.mxu0 %v2321
    %2323 = vmatprep.subr.mxu0 0.0
    %v2324 = vand.u32 %v647, 4294901760
    %v2325 = vsub.f32 %v647, %v2324
    %v2326 = vand.u32 %v2325, 4294901760
    %2327 = vmatpush1.msra.mxu0 %v2326
    %v2328 = vand.u32 %v713, 4294901760
    %2329 = vmatprep.mubr.f32.mxu0 %v2328
    %v2330 = vand.u32 %v712, 4294901760
    %2331 = vmatmul.mubr.f32.gmra.mrb[0].mxu0 %v2330
    %v2332 = vpop.f32.mrb[0].mxu0
    %v2333 = vadd.f32 %v2165, %v2332
    %v2334 = vpop.f32.mrb[0].mxu0
    %2335 = vdwg.mxu0
    %2336 = vmatprep.subr.mxu0 0.0
    %v2337 = vand.u32 %v616, 4294901760
    %2338 = vmatpush1.msra.mxu0 %v2337
    %2339 = vmatprep.subr.mxu0 0.0
    %v2340 = vand.u32 %v617, 4294901760
    %2341 = vmatpush1.msra.mxu0 %v2340
    %2342 = vmatprep.subr.mxu0 0.0
    %v2343 = vand.u32 %v618, 4294901760
    %2344 = vmatpush1.msra.mxu0 %v2343
    %2345 = vmatprep.subr.mxu0 0.0
    %v2346 = vand.u32 %v619, 4294901760
    %2347 = vmatpush1.msra.mxu0 %v2346
    %2348 = vmatprep.subr.mxu0 0.0
    %v2349 = vand.u32 %v620, 4294901760
    %2350 = vmatpush1.msra.mxu0 %v2349
    %2351 = vmatprep.subr.mxu0 0.0
    %v2352 = vand.u32 %v621, 4294901760
    %2353 = vmatpush1.msra.mxu0 %v2352
    %2354 = vmatprep.subr.mxu0 0.0
    %v2355 = vand.u32 %v622, 4294901760
    %2356 = vmatpush1.msra.mxu0 %v2355
    %2357 = vmatprep.subr.mxu0 0.0
    %v2358 = vand.u32 %v623, 4294901760
    %2359 = vmatpush1.msra.mxu0 %v2358
    %2360 = vmatprep.subr.mxu0 0.0
    %v2361 = vand.u32 %v624, 4294901760
    %2362 = vmatpush1.msra.mxu0 %v2361
    %2363 = vmatprep.subr.mxu0 0.0
    %v2364 = vand.u32 %v625, 4294901760
    %2365 = vmatpush1.msra.mxu0 %v2364
    %2366 = vmatprep.subr.mxu0 0.0
    %v2367 = vand.u32 %v626, 4294901760
    %2368 = vmatpush1.msra.mxu0 %v2367
    %2369 = vmatprep.subr.mxu0 0.0
    %v2370 = vand.u32 %v627, 4294901760
    %2371 = vmatpush1.msra.mxu0 %v2370
    %2372 = vmatprep.subr.mxu0 0.0
    %v2373 = vand.u32 %v628, 4294901760
    %2374 = vmatpush1.msra.mxu0 %v2373
    %2375 = vmatprep.subr.mxu0 0.0
    %v2376 = vand.u32 %v629, 4294901760
    %2377 = vmatpush1.msra.mxu0 %v2376
    %2378 = vmatprep.subr.mxu0 0.0
    %v2379 = vand.u32 %v630, 4294901760
    %2380 = vmatpush1.msra.mxu0 %v2379
    %2381 = vmatprep.subr.mxu0 0.0
    %v2382 = vand.u32 %v631, 4294901760
    %2383 = vmatpush1.msra.mxu0 %v2382
    %2384 = vmatprep.subr.mxu0 0.0
    %v2385 = vand.u32 %v632, 4294901760
    %2386 = vmatpush1.msra.mxu0 %v2385
    %2387 = vmatprep.subr.mxu0 0.0
    %v2388 = vand.u32 %v633, 4294901760
    %2389 = vmatpush1.msra.mxu0 %v2388
    %2390 = vmatprep.subr.mxu0 0.0
    %v2391 = vand.u32 %v634, 4294901760
    %2392 = vmatpush1.msra.mxu0 %v2391
    %2393 = vmatprep.subr.mxu0 0.0
    %v2394 = vand.u32 %v635, 4294901760
    %2395 = vmatpush1.msra.mxu0 %v2394
    %2396 = vmatprep.subr.mxu0 0.0
    %v2397 = vand.u32 %v636, 4294901760
    %2398 = vmatpush1.msra.mxu0 %v2397
    %2399 = vmatprep.subr.mxu0 0.0
    %v2400 = vand.u32 %v637, 4294901760
    %2401 = vmatpush1.msra.mxu0 %v2400
    %2402 = vmatprep.subr.mxu0 0.0
    %v2403 = vand.u32 %v638, 4294901760
    %2404 = vmatpush1.msra.mxu0 %v2403
    %2405 = vmatprep.subr.mxu0 0.0
    %v2406 = vand.u32 %v639, 4294901760
    %2407 = vmatpush1.msra.mxu0 %v2406
    %2408 = vmatprep.subr.mxu0 0.0
    %v2409 = vand.u32 %v640, 4294901760
    %2410 = vmatpush1.msra.mxu0 %v2409
    %2411 = vmatprep.subr.mxu0 0.0
    %v2412 = vand.u32 %v641, 4294901760
    %2413 = vmatpush1.msra.mxu0 %v2412
    %2414 = vmatprep.subr.mxu0 0.0
    %v2415 = vand.u32 %v642, 4294901760
    %2416 = vmatpush1.msra.mxu0 %v2415
    %2417 = vmatprep.subr.mxu0 0.0
    %v2418 = vand.u32 %v643, 4294901760
    %2419 = vmatpush1.msra.mxu0 %v2418
    %2420 = vmatprep.subr.mxu0 0.0
    %v2421 = vand.u32 %v644, 4294901760
    %2422 = vmatpush1.msra.mxu0 %v2421
    %2423 = vmatprep.subr.mxu0 0.0
    %v2424 = vand.u32 %v645, 4294901760
    %2425 = vmatpush1.msra.mxu0 %v2424
    %2426 = vmatprep.subr.mxu0 0.0
    %v2427 = vand.u32 %v646, 4294901760
    %2428 = vmatpush1.msra.mxu0 %v2427
    %2429 = vmatprep.subr.mxu0 0.0
    %v2430 = vand.u32 %v647, 4294901760
    %2431 = vmatpush1.msra.mxu0 %v2430
    %v2432 = vand.u32 %v713, 4294901760
    %2433 = vmatprep.mubr.f32.mxu0 %v2432
    %v2434 = vand.u32 %v712, 4294901760
    %2435 = vmatmul.mubr.f32.gmra.mrb[0].mxu0 %v2434
    %v2436 = vpop.f32.mrb[0].mxu0
    %v2437 = vadd.f32 %v2333, %v2436
    %v2438 = vpop.f32.mrb[0].mxu0
    %2439 = vdwg.mxu0
    %2440 = vmatprep.subr.mxu0 0.0
    %v2441 = vand.u32 %v648, 4294901760
    %2442 = vmatpush1.msra.mxu0 %v2441
    %2443 = vmatprep.subr.mxu0 0.0
    %v2444 = vand.u32 %v649, 4294901760
    %2445 = vmatpush1.msra.mxu0 %v2444
    %2446 = vmatprep.subr.mxu0 0.0
    %v2447 = vand.u32 %v650, 4294901760
    %2448 = vmatpush1.msra.mxu0 %v2447
    %2449 = vmatprep.subr.mxu0 0.0
    %v2450 = vand.u32 %v651, 4294901760
    %2451 = vmatpush1.msra.mxu0 %v2450
    %2452 = vmatprep.subr.mxu0 0.0
    %v2453 = vand.u32 %v652, 4294901760
    %2454 = vmatpush1.msra.mxu0 %v2453
    %2455 = vmatprep.subr.mxu0 0.0
    %v2456 = vand.u32 %v653, 4294901760
    %2457 = vmatpush1.msra.mxu0 %v2456
    %2458 = vmatprep.subr.mxu0 0.0
    %v2459 = vand.u32 %v654, 4294901760
    %2460 = vmatpush1.msra.mxu0 %v2459
    %2461 = vmatprep.subr.mxu0 0.0
    %v2462 = vand.u32 %v655, 4294901760
    %2463 = vmatpush1.msra.mxu0 %v2462
    %2464 = vmatprep.subr.mxu0 0.0
    %v2465 = vand.u32 %v656, 4294901760
    %2466 = vmatpush1.msra.mxu0 %v2465
    %2467 = vmatprep.subr.mxu0 0.0
    %v2468 = vand.u32 %v657, 4294901760
    %2469 = vmatpush1.msra.mxu0 %v2468
    %2470 = vmatprep.subr.mxu0 0.0
    %v2471 = vand.u32 %v658, 4294901760
    %2472 = vmatpush1.msra.mxu0 %v2471
    %2473 = vmatprep.subr.mxu0 0.0
    %v2474 = vand.u32 %v659, 4294901760
    %2475 = vmatpush1.msra.mxu0 %v2474
    %2476 = vmatprep.subr.mxu0 0.0
    %v2477 = vand.u32 %v660, 4294901760
    %2478 = vmatpush1.msra.mxu0 %v2477
    %2479 = vmatprep.subr.mxu0 0.0
    %v2480 = vand.u32 %v661, 4294901760
    %2481 = vmatpush1.msra.mxu0 %v2480
    %2482 = vmatprep.subr.mxu0 0.0
    %v2483 = vand.u32 %v662, 4294901760
    %2484 = vmatpush1.msra.mxu0 %v2483
    %2485 = vmatprep.subr.mxu0 0.0
    %v2486 = vand.u32 %v663, 4294901760
    %2487 = vmatpush1.msra.mxu0 %v2486
    %2488 = vmatprep.subr.mxu0 0.0
    %2489 = vmatpush1.msra.mxu0 0.0
    %2490 = vmatprep.subr.mxu0 0.0
    %2491 = vmatpush1.msra.mxu0 0.0
    %2492 = vmatprep.subr.mxu0 0.0
    %2493 = vmatpush1.msra.mxu0 0.0
    %2494 = vmatprep.subr.mxu0 0.0
    %2495 = vmatpush1.msra.mxu0 0.0
    %2496 = vmatprep.subr.mxu0 0.0
    %2497 = vmatpush1.msra.mxu0 0.0
    %2498 = vmatprep.subr.mxu0 0.0
    %2499 = vmatpush1.msra.mxu0 0.0
    %2500 = vmatprep.subr.mxu0 0.0
    %2501 = vmatpush1.msra.mxu0 0.0
    %2502 = vmatprep.subr.mxu0 0.0
    %2503 = vmatpush1.msra.mxu0 0.0
    %2504 = vmatprep.subr.mxu0 0.0
    %2505 = vmatpush1.msra.mxu0 0.0
    %2506 = vmatprep.subr.mxu0 0.0
    %2507 = vmatpush1.msra.mxu0 0.0
    %2508 = vmatprep.subr.mxu0 0.0
    %2509 = vmatpush1.msra.mxu0 0.0
    %2510 = vmatprep.subr.mxu0 0.0
    %2511 = vmatpush1.msra.mxu0 0.0
    %2512 = vmatprep.subr.mxu0 0.0
    %2513 = vmatpush1.msra.mxu0 0.0
    %2514 = vmatprep.subr.mxu0 0.0
    %2515 = vmatpush1.msra.mxu0 0.0
    %2516 = vmatprep.subr.mxu0 0.0
    %2517 = vmatpush1.msra.mxu0 0.0
    %2518 = vmatprep.subr.mxu0 0.0
    %2519 = vmatpush1.msra.mxu0 0.0
    %2520 = vmatprep.mubr.f32.mxu0 0.0
    %v2521 = vand.u32 %v714, 4294901760
    %v2522 = vsub.f32 %v714, %v2521
    %v2523 = vand.u32 %v2522, 4294901760
    %v2524 = vsub.f32 %v2522, %v2523
    %v2525 = vand.u32 %v2524, 4294901760
    %2526 = vmatmul.mubr.f32.gmra.mrb[0].mxu0 %v2525
    %v2527 = vpop.f32.mrb[0].mxu0
    %v2528 = vadd.f32 %v2437, %v2527
    %v2529 = vpop.f32.mrb[0].mxu0
    %2530 = vdwg.mxu0
    %2531 = vmatprep.subr.mxu0 0.0
    %v2532 = vand.u32 %v648, 4294901760
    %v2533 = vsub.f32 %v648, %v2532
    %v2534 = vand.u32 %v2533, 4294901760
    %v2535 = vsub.f32 %v2533, %v2534
    %v2536 = vand.u32 %v2535, 4294901760
    %2537 = vmatpush1.msra.mxu0 %v2536
    %2538 = vmatprep.subr.mxu0 0.0
    %v2539 = vand.u32 %v649, 4294901760
    %v2540 = vsub.f32 %v649, %v2539
    %v2541 = vand.u32 %v2540, 4294901760
    %v2542 = vsub.f32 %v2540, %v2541
    %v2543 = vand.u32 %v2542, 4294901760
    %2544 = vmatpush1.msra.mxu0 %v2543
    %2545 = vmatprep.subr.mxu0 0.0
    %v2546 = vand.u32 %v650, 4294901760
    %v2547 = vsub.f32 %v650, %v2546
    %v2548 = vand.u32 %v2547, 4294901760
    %v2549 = vsub.f32 %v2547, %v2548
    %v2550 = vand.u32 %v2549, 4294901760
    %2551 = vmatpush1.msra.mxu0 %v2550
    %2552 = vmatprep.subr.mxu0 0.0
    %v2553 = vand.u32 %v651, 4294901760
    %v2554 = vsub.f32 %v651, %v2553
    %v2555 = vand.u32 %v2554, 4294901760
    %v2556 = vsub.f32 %v2554, %v2555
    %v2557 = vand.u32 %v2556, 4294901760
    %2558 = vmatpush1.msra.mxu0 %v2557
    %2559 = vmatprep.subr.mxu0 0.0
    %v2560 = vand.u32 %v652, 4294901760
    %v2561 = vsub.f32 %v652, %v2560
    %v2562 = vand.u32 %v2561, 4294901760
    %v2563 = vsub.f32 %v2561, %v2562
    %v2564 = vand.u32 %v2563, 4294901760
    %2565 = vmatpush1.msra.mxu0 %v2564
    %2566 = vmatprep.subr.mxu0 0.0
    %v2567 = vand.u32 %v653, 4294901760
    %v2568 = vsub.f32 %v653, %v2567
    %v2569 = vand.u32 %v2568, 4294901760
    %v2570 = vsub.f32 %v2568, %v2569
    %v2571 = vand.u32 %v2570, 4294901760
    %2572 = vmatpush1.msra.mxu0 %v2571
    %2573 = vmatprep.subr.mxu0 0.0
    %v2574 = vand.u32 %v654, 4294901760
    %v2575 = vsub.f32 %v654, %v2574
    %v2576 = vand.u32 %v2575, 4294901760
    %v2577 = vsub.f32 %v2575, %v2576
    %v2578 = vand.u32 %v2577, 4294901760
    %2579 = vmatpush1.msra.mxu0 %v2578
    %2580 = vmatprep.subr.mxu0 0.0
    %v2581 = vand.u32 %v655, 4294901760
    %v2582 = vsub.f32 %v655, %v2581
    %v2583 = vand.u32 %v2582, 4294901760
    %v2584 = vsub.f32 %v2582, %v2583
    %v2585 = vand.u32 %v2584, 4294901760
    %2586 = vmatpush1.msra.mxu0 %v2585
    %2587 = vmatprep.subr.mxu0 0.0
    %v2588 = vand.u32 %v656, 4294901760
    %v2589 = vsub.f32 %v656, %v2588
    %v2590 = vand.u32 %v2589, 4294901760
    %v2591 = vsub.f32 %v2589, %v2590
    %v2592 = vand.u32 %v2591, 4294901760
    %2593 = vmatpush1.msra.mxu0 %v2592
    %2594 = vmatprep.subr.mxu0 0.0
    %v2595 = vand.u32 %v657, 4294901760
    %v2596 = vsub.f32 %v657, %v2595
    %v2597 = vand.u32 %v2596, 4294901760
    %v2598 = vsub.f32 %v2596, %v2597
    %v2599 = vand.u32 %v2598, 4294901760
    %2600 = vmatpush1.msra.mxu0 %v2599
    %2601 = vmatprep.subr.mxu0 0.0
    %v2602 = vand.u32 %v658, 4294901760
    %v2603 = vsub.f32 %v658, %v2602
    %v2604 = vand.u32 %v2603, 4294901760
    %v2605 = vsub.f32 %v2603, %v2604
    %v2606 = vand.u32 %v2605, 4294901760
    %2607 = vmatpush1.msra.mxu0 %v2606
    %2608 = vmatprep.subr.mxu0 0.0
    %v2609 = vand.u32 %v659, 4294901760
    %v2610 = vsub.f32 %v659, %v2609
    %v2611 = vand.u32 %v2610, 4294901760
    %v2612 = vsub.f32 %v2610, %v2611
    %v2613 = vand.u32 %v2612, 4294901760
    %2614 = vmatpush1.msra.mxu0 %v2613
    %2615 = vmatprep.subr.mxu0 0.0
    %v2616 = vand.u32 %v660, 4294901760
    %v2617 = vsub.f32 %v660, %v2616
    %v2618 = vand.u32 %v2617, 4294901760
    %v2619 = vsub.f32 %v2617, %v2618
    %v2620 = vand.u32 %v2619, 4294901760
    %2621 = vmatpush1.msra.mxu0 %v2620
    %2622 = vmatprep.subr.mxu0 0.0
    %v2623 = vand.u32 %v661, 4294901760
    %v2624 = vsub.f32 %v661, %v2623
    %v2625 = vand.u32 %v2624, 4294901760
    %v2626 = vsub.f32 %v2624, %v2625
    %v2627 = vand.u32 %v2626, 4294901760
    %2628 = vmatpush1.msra.mxu0 %v2627
    %2629 = vmatprep.subr.mxu0 0.0
    %v2630 = vand.u32 %v662, 4294901760
    %v2631 = vsub.f32 %v662, %v2630
    %v2632 = vand.u32 %v2631, 4294901760
    %v2633 = vsub.f32 %v2631, %v2632
    %v2634 = vand.u32 %v2633, 4294901760
    %2635 = vmatpush1.msra.mxu0 %v2634
    %2636 = vmatprep.subr.mxu0 0.0
    %v2637 = vand.u32 %v663, 4294901760
    %v2638 = vsub.f32 %v663, %v2637
    %v2639 = vand.u32 %v2638, 4294901760
    %v2640 = vsub.f32 %v2638, %v2639
    %v2641 = vand.u32 %v2640, 4294901760
    %2642 = vmatpush1.msra.mxu0 %v2641
    %2643 = vmatprep.subr.mxu0 0.0
    %2644 = vmatpush1.msra.mxu0 0.0
    %2645 = vmatprep.subr.mxu0 0.0
    %2646 = vmatpush1.msra.mxu0 0.0
    %2647 = vmatprep.subr.mxu0 0.0
    %2648 = vmatpush1.msra.mxu0 0.0
    %2649 = vmatprep.subr.mxu0 0.0
    %2650 = vmatpush1.msra.mxu0 0.0
    %2651 = vmatprep.subr.mxu0 0.0
    %2652 = vmatpush1.msra.mxu0 0.0
    %2653 = vmatprep.subr.mxu0 0.0
    %2654 = vmatpush1.msra.mxu0 0.0
    %2655 = vmatprep.subr.mxu0 0.0
    %2656 = vmatpush1.msra.mxu0 0.0
    %2657 = vmatprep.subr.mxu0 0.0
    %2658 = vmatpush1.msra.mxu0 0.0
    %2659 = vmatprep.subr.mxu0 0.0
    %2660 = vmatpush1.msra.mxu0 0.0
    %2661 = vmatprep.subr.mxu0 0.0
    %2662 = vmatpush1.msra.mxu0 0.0
    %2663 = vmatprep.subr.mxu0 0.0
    %2664 = vmatpush1.msra.mxu0 0.0
    %2665 = vmatprep.subr.mxu0 0.0
    %2666 = vmatpush1.msra.mxu0 0.0
    %2667 = vmatprep.subr.mxu0 0.0
    %2668 = vmatpush1.msra.mxu0 0.0
    %2669 = vmatprep.subr.mxu0 0.0
    %2670 = vmatpush1.msra.mxu0 0.0
    %2671 = vmatprep.subr.mxu0 0.0
    %2672 = vmatpush1.msra.mxu0 0.0
    %2673 = vmatprep.subr.mxu0 0.0
    %2674 = vmatpush1.msra.mxu0 0.0
    %2675 = vmatprep.mubr.f32.mxu0 0.0
    %v2676 = vand.u32 %v714, 4294901760
    %2677 = vmatmul.mubr.f32.gmra.mrb[0].mxu0 %v2676
    %v2678 = vpop.f32.mrb[0].mxu0
    %v2679 = vadd.f32 %v2528, %v2678
    %v2680 = vpop.f32.mrb[0].mxu0
    %2681 = vdwg.mxu0
    %2682 = vmatprep.subr.mxu0 0.0
    %v2683 = vand.u32 %v648, 4294901760
    %v2684 = vsub.f32 %v648, %v2683
    %2685 = vmatpush1.msra.mxu0 %v2684
    %2686 = vmatprep.subr.mxu0 0.0
    %v2687 = vand.u32 %v649, 4294901760
    %v2688 = vsub.f32 %v649, %v2687
    %2689 = vmatpush1.msra.mxu0 %v2688
    %2690 = vmatprep.subr.mxu0 0.0
    %v2691 = vand.u32 %v650, 4294901760
    %v2692 = vsub.f32 %v650, %v2691
    %2693 = vmatpush1.msra.mxu0 %v2692
    %2694 = vmatprep.subr.mxu0 0.0
    %v2695 = vand.u32 %v651, 4294901760
    %v2696 = vsub.f32 %v651, %v2695
    %2697 = vmatpush1.msra.mxu0 %v2696
    %2698 = vmatprep.subr.mxu0 0.0
    %v2699 = vand.u32 %v652, 4294901760
    %v2700 = vsub.f32 %v652, %v2699
    %2701 = vmatpush1.msra.mxu0 %v2700
    %2702 = vmatprep.subr.mxu0 0.0
    %v2703 = vand.u32 %v653, 4294901760
    %v2704 = vsub.f32 %v653, %v2703
    %2705 = vmatpush1.msra.mxu0 %v2704
    %2706 = vmatprep.subr.mxu0 0.0
    %v2707 = vand.u32 %v654, 4294901760
    %v2708 = vsub.f32 %v654, %v2707
    %2709 = vmatpush1.msra.mxu0 %v2708
    %2710 = vmatprep.subr.mxu0 0.0
    %v2711 = vand.u32 %v655, 4294901760
    %v2712 = vsub.f32 %v655, %v2711
    %2713 = vmatpush1.msra.mxu0 %v2712
    %2714 = vmatprep.subr.mxu0 0.0
    %v2715 = vand.u32 %v656, 4294901760
    %v2716 = vsub.f32 %v656, %v2715
    %2717 = vmatpush1.msra.mxu0 %v2716
    %2718 = vmatprep.subr.mxu0 0.0
    %v2719 = vand.u32 %v657, 4294901760
    %v2720 = vsub.f32 %v657, %v2719
    %2721 = vmatpush1.msra.mxu0 %v2720
    %2722 = vmatprep.subr.mxu0 0.0
    %v2723 = vand.u32 %v658, 4294901760
    %v2724 = vsub.f32 %v658, %v2723
    %2725 = vmatpush1.msra.mxu0 %v2724
    %2726 = vmatprep.subr.mxu0 0.0
    %v2727 = vand.u32 %v659, 4294901760
    %v2728 = vsub.f32 %v659, %v2727
    %2729 = vmatpush1.msra.mxu0 %v2728
    %2730 = vmatprep.subr.mxu0 0.0
    %v2731 = vand.u32 %v660, 4294901760
    %v2732 = vsub.f32 %v660, %v2731
    %2733 = vmatpush1.msra.mxu0 %v2732
    %2734 = vmatprep.subr.mxu0 0.0
    %v2735 = vand.u32 %v661, 4294901760
    %v2736 = vsub.f32 %v661, %v2735
    %2737 = vmatpush1.msra.mxu0 %v2736
    %2738 = vmatprep.subr.mxu0 0.0
    %v2739 = vand.u32 %v662, 4294901760
    %v2740 = vsub.f32 %v662, %v2739
    %2741 = vmatpush1.msra.mxu0 %v2740
    %2742 = vmatprep.subr.mxu0 0.0
    %v2743 = vand.u32 %v663, 4294901760
    %v2744 = vsub.f32 %v663, %v2743
    %2745 = vmatpush1.msra.mxu0 %v2744
    %2746 = vmatprep.subr.mxu0 0.0
    %2747 = vmatpush1.msra.mxu0 0.0
    %2748 = vmatprep.subr.mxu0 0.0
    %2749 = vmatpush1.msra.mxu0 0.0
    %2750 = vmatprep.subr.mxu0 0.0
    %2751 = vmatpush1.msra.mxu0 0.0
    %2752 = vmatprep.subr.mxu0 0.0
    %2753 = vmatpush1.msra.mxu0 0.0
    %2754 = vmatprep.subr.mxu0 0.0
    %2755 = vmatpush1.msra.mxu0 0.0
    %2756 = vmatprep.subr.mxu0 0.0
    %2757 = vmatpush1.msra.mxu0 0.0
    %2758 = vmatprep.subr.mxu0 0.0
    %2759 = vmatpush1.msra.mxu0 0.0
    %2760 = vmatprep.subr.mxu0 0.0
    %2761 = vmatpush1.msra.mxu0 0.0
    %2762 = vmatprep.subr.mxu0 0.0
    %2763 = vmatpush1.msra.mxu0 0.0
    %2764 = vmatprep.subr.mxu0 0.0
    %2765 = vmatpush1.msra.mxu0 0.0
    %2766 = vmatprep.subr.mxu0 0.0
    %2767 = vmatpush1.msra.mxu0 0.0
    %2768 = vmatprep.subr.mxu0 0.0
    %2769 = vmatpush1.msra.mxu0 0.0
    %2770 = vmatprep.subr.mxu0 0.0
    %2771 = vmatpush1.msra.mxu0 0.0
    %2772 = vmatprep.subr.mxu0 0.0
    %2773 = vmatpush1.msra.mxu0 0.0
    %2774 = vmatprep.subr.mxu0 0.0
    %2775 = vmatpush1.msra.mxu0 0.0
    %2776 = vmatprep.subr.mxu0 0.0
    %2777 = vmatpush1.msra.mxu0 0.0
    %2778 = vmatprep.mubr.f32.mxu0 0.0
    %v2779 = vand.u32 %v714, 4294901760
    %v2780 = vsub.f32 %v714, %v2779
    %2781 = vmatmul.mubr.f32.gmra.mrb[0].mxu0 %v2780
    %v2782 = vpop.f32.mrb[0].mxu0
    %v2783 = vadd.f32 %v2679, %v2782
    %v2784 = vpop.f32.mrb[0].mxu0
    %2785 = vdwg.mxu0
    %2786 = vmatprep.subr.mxu0 0.0
    %v2787 = vand.u32 %v648, 4294901760
    %2788 = vmatpush1.msra.mxu0 %v2787
    %2789 = vmatprep.subr.mxu0 0.0
    %v2790 = vand.u32 %v649, 4294901760
    %2791 = vmatpush1.msra.mxu0 %v2790
    %2792 = vmatprep.subr.mxu0 0.0
    %v2793 = vand.u32 %v650, 4294901760
    %2794 = vmatpush1.msra.mxu0 %v2793
    %2795 = vmatprep.subr.mxu0 0.0
    %v2796 = vand.u32 %v651, 4294901760
    %2797 = vmatpush1.msra.mxu0 %v2796
    %2798 = vmatprep.subr.mxu0 0.0
    %v2799 = vand.u32 %v652, 4294901760
    %2800 = vmatpush1.msra.mxu0 %v2799
    %2801 = vmatprep.subr.mxu0 0.0
    %v2802 = vand.u32 %v653, 4294901760
    %2803 = vmatpush1.msra.mxu0 %v2802
    %2804 = vmatprep.subr.mxu0 0.0
    %v2805 = vand.u32 %v654, 4294901760
    %2806 = vmatpush1.msra.mxu0 %v2805
    %2807 = vmatprep.subr.mxu0 0.0
    %v2808 = vand.u32 %v655, 4294901760
    %2809 = vmatpush1.msra.mxu0 %v2808
    %2810 = vmatprep.subr.mxu0 0.0
    %v2811 = vand.u32 %v656, 4294901760
    %2812 = vmatpush1.msra.mxu0 %v2811
    %2813 = vmatprep.subr.mxu0 0.0
    %v2814 = vand.u32 %v657, 4294901760
    %2815 = vmatpush1.msra.mxu0 %v2814
    %2816 = vmatprep.subr.mxu0 0.0
    %v2817 = vand.u32 %v658, 4294901760
    %2818 = vmatpush1.msra.mxu0 %v2817
    %2819 = vmatprep.subr.mxu0 0.0
    %v2820 = vand.u32 %v659, 4294901760
    %2821 = vmatpush1.msra.mxu0 %v2820
    %2822 = vmatprep.subr.mxu0 0.0
    %v2823 = vand.u32 %v660, 4294901760
    %2824 = vmatpush1.msra.mxu0 %v2823
    %2825 = vmatprep.subr.mxu0 0.0
    %v2826 = vand.u32 %v661, 4294901760
    %2827 = vmatpush1.msra.mxu0 %v2826
    %2828 = vmatprep.subr.mxu0 0.0
    %v2829 = vand.u32 %v662, 4294901760
    %2830 = vmatpush1.msra.mxu0 %v2829
    %2831 = vmatprep.subr.mxu0 0.0
    %v2832 = vand.u32 %v663, 4294901760
    %2833 = vmatpush1.msra.mxu0 %v2832
    %2834 = vmatprep.subr.mxu0 0.0
    %2835 = vmatpush1.msra.mxu0 0.0
    %2836 = vmatprep.subr.mxu0 0.0
    %2837 = vmatpush1.msra.mxu0 0.0
    %2838 = vmatprep.subr.mxu0 0.0
    %2839 = vmatpush1.msra.mxu0 0.0
    %2840 = vmatprep.subr.mxu0 0.0
    %2841 = vmatpush1.msra.mxu0 0.0
    %2842 = vmatprep.subr.mxu0 0.0
    %2843 = vmatpush1.msra.mxu0 0.0
    %2844 = vmatprep.subr.mxu0 0.0
    %2845 = vmatpush1.msra.mxu0 0.0
    %2846 = vmatprep.subr.mxu0 0.0
    %2847 = vmatpush1.msra.mxu0 0.0
    %2848 = vmatprep.subr.mxu0 0.0
    %2849 = vmatpush1.msra.mxu0 0.0
    %2850 = vmatprep.subr.mxu0 0.0
    %2851 = vmatpush1.msra.mxu0 0.0
    %2852 = vmatprep.subr.mxu0 0.0
    %2853 = vmatpush1.msra.mxu0 0.0
    %2854 = vmatprep.subr.mxu0 0.0
    %2855 = vmatpush1.msra.mxu0 0.0
    %2856 = vmatprep.subr.mxu0 0.0
    %2857 = vmatpush1.msra.mxu0 0.0
    %2858 = vmatprep.subr.mxu0 0.0
    %2859 = vmatpush1.msra.mxu0 0.0
    %2860 = vmatprep.subr.mxu0 0.0
    %2861 = vmatpush1.msra.mxu0 0.0
    %2862 = vmatprep.subr.mxu0 0.0
    %2863 = vmatpush1.msra.mxu0 0.0
    %2864 = vmatprep.subr.mxu0 0.0
    %2865 = vmatpush1.msra.mxu0 0.0
    %2866 = vmatprep.mubr.f32.mxu0 0.0
    %v2867 = vand.u32 %v714, 4294901760
    %v2868 = vsub.f32 %v714, %v2867
    %v2869 = vand.u32 %v2868, 4294901760
    %2870 = vmatmul.mubr.f32.gmra.mrb[0].mxu0 %v2869
    %v2871 = vpop.f32.mrb[0].mxu0
    %v2872 = vadd.f32 %v2783, %v2871
    %v2873 = vpop.f32.mrb[0].mxu0
    %2874 = vdwg.mxu0
    %2875 = vmatprep.subr.mxu0 0.0
    %v2876 = vand.u32 %v648, 4294901760
    %v2877 = vsub.f32 %v648, %v2876
    %v2878 = vand.u32 %v2877, 4294901760
    %2879 = vmatpush1.msra.mxu0 %v2878
    %2880 = vmatprep.subr.mxu0 0.0
    %v2881 = vand.u32 %v649, 4294901760
    %v2882 = vsub.f32 %v649, %v2881
    %v2883 = vand.u32 %v2882, 4294901760
    %2884 = vmatpush1.msra.mxu0 %v2883
    %2885 = vmatprep.subr.mxu0 0.0
    %v2886 = vand.u32 %v650, 4294901760
    %v2887 = vsub.f32 %v650, %v2886
    %v2888 = vand.u32 %v2887, 4294901760
    %2889 = vmatpush1.msra.mxu0 %v2888
    %2890 = vmatprep.subr.mxu0 0.0
    %v2891 = vand.u32 %v651, 4294901760
    %v2892 = vsub.f32 %v651, %v2891
    %v2893 = vand.u32 %v2892, 4294901760
    %2894 = vmatpush1.msra.mxu0 %v2893
    %2895 = vmatprep.subr.mxu0 0.0
    %v2896 = vand.u32 %v652, 4294901760
    %v2897 = vsub.f32 %v652, %v2896
    %v2898 = vand.u32 %v2897, 4294901760
    %2899 = vmatpush1.msra.mxu0 %v2898
    %2900 = vmatprep.subr.mxu0 0.0
    %v2901 = vand.u32 %v653, 4294901760
    %v2902 = vsub.f32 %v653, %v2901
    %v2903 = vand.u32 %v2902, 4294901760
    %2904 = vmatpush1.msra.mxu0 %v2903
    %2905 = vmatprep.subr.mxu0 0.0
    %v2906 = vand.u32 %v654, 4294901760
    %v2907 = vsub.f32 %v654, %v2906
    %v2908 = vand.u32 %v2907, 4294901760
    %2909 = vmatpush1.msra.mxu0 %v2908
    %2910 = vmatprep.subr.mxu0 0.0
    %v2911 = vand.u32 %v655, 4294901760
    %v2912 = vsub.f32 %v655, %v2911
    %v2913 = vand.u32 %v2912, 4294901760
    %2914 = vmatpush1.msra.mxu0 %v2913
    %2915 = vmatprep.subr.mxu0 0.0
    %v2916 = vand.u32 %v656, 4294901760
    %v2917 = vsub.f32 %v656, %v2916
    %v2918 = vand.u32 %v2917, 4294901760
    %2919 = vmatpush1.msra.mxu0 %v2918
    %2920 = vmatprep.subr.mxu0 0.0
    %v2921 = vand.u32 %v657, 4294901760
    %v2922 = vsub.f32 %v657, %v2921
    %v2923 = vand.u32 %v2922, 4294901760
    %2924 = vmatpush1.msra.mxu0 %v2923
    %2925 = vmatprep.subr.mxu0 0.0
    %v2926 = vand.u32 %v658, 4294901760
    %v2927 = vsub.f32 %v658, %v2926
    %v2928 = vand.u32 %v2927, 4294901760
    %2929 = vmatpush1.msra.mxu0 %v2928
    %2930 = vmatprep.subr.mxu0 0.0
    %v2931 = vand.u32 %v659, 4294901760
    %v2932 = vsub.f32 %v659, %v2931
    %v2933 = vand.u32 %v2932, 4294901760
    %2934 = vmatpush1.msra.mxu0 %v2933
    %2935 = vmatprep.subr.mxu0 0.0
    %v2936 = vand.u32 %v660, 4294901760
    %v2937 = vsub.f32 %v660, %v2936
    %v2938 = vand.u32 %v2937, 4294901760
    %2939 = vmatpush1.msra.mxu0 %v2938
    %2940 = vmatprep.subr.mxu0 0.0
    %v2941 = vand.u32 %v661, 4294901760
    %v2942 = vsub.f32 %v661, %v2941
    %v2943 = vand.u32 %v2942, 4294901760
    %2944 = vmatpush1.msra.mxu0 %v2943
    %2945 = vmatprep.subr.mxu0 0.0
    %v2946 = vand.u32 %v662, 4294901760
    %v2947 = vsub.f32 %v662, %v2946
    %v2948 = vand.u32 %v2947, 4294901760
    %2949 = vmatpush1.msra.mxu0 %v2948
    %2950 = vmatprep.subr.mxu0 0.0
    %v2951 = vand.u32 %v663, 4294901760
    %v2952 = vsub.f32 %v663, %v2951
    %v2953 = vand.u32 %v2952, 4294901760
    %2954 = vmatpush1.msra.mxu0 %v2953
    %2955 = vmatprep.subr.mxu0 0.0
    %2956 = vmatpush1.msra.mxu0 0.0
    %2957 = vmatprep.subr.mxu0 0.0
    %2958 = vmatpush1.msra.mxu0 0.0
    %2959 = vmatprep.subr.mxu0 0.0
    %2960 = vmatpush1.msra.mxu0 0.0
    %2961 = vmatprep.subr.mxu0 0.0
    %2962 = vmatpush1.msra.mxu0 0.0
    %2963 = vmatprep.subr.mxu0 0.0
    %2964 = vmatpush1.msra.mxu0 0.0
    %2965 = vmatprep.subr.mxu0 0.0
    %2966 = vmatpush1.msra.mxu0 0.0
    %2967 = vmatprep.subr.mxu0 0.0
    %2968 = vmatpush1.msra.mxu0 0.0
    %2969 = vmatprep.subr.mxu0 0.0
    %2970 = vmatpush1.msra.mxu0 0.0
    %2971 = vmatprep.subr.mxu0 0.0
    %2972 = vmatpush1.msra.mxu0 0.0
    %2973 = vmatprep.subr.mxu0 0.0
    %2974 = vmatpush1.msra.mxu0 0.0
    %2975 = vmatprep.subr.mxu0 0.0
    %2976 = vmatpush1.msra.mxu0 0.0
    %2977 = vmatprep.subr.mxu0 0.0
    %2978 = vmatpush1.msra.mxu0 0.0
    %2979 = vmatprep.subr.mxu0 0.0
    %2980 = vmatpush1.msra.mxu0 0.0
    %2981 = vmatprep.subr.mxu0 0.0
    %2982 = vmatpush1.msra.mxu0 0.0
    %2983 = vmatprep.subr.mxu0 0.0
    %2984 = vmatpush1.msra.mxu0 0.0
    %2985 = vmatprep.subr.mxu0 0.0
    %2986 = vmatpush1.msra.mxu0 0.0
    %2987 = vmatprep.mubr.f32.mxu0 0.0
    %v2988 = vand.u32 %v714, 4294901760
    %2989 = vmatmul.mubr.f32.gmra.mrb[0].mxu0 %v2988
    %v2990 = vpop.f32.mrb[0].mxu0
    %v2991 = vadd.f32 %v2872, %v2990
    %v2992 = vpop.f32.mrb[0].mxu0
    %2993 = vdwg.mxu0
    %2994 = vmatprep.subr.mxu0 0.0
    %v2995 = vand.u32 %v648, 4294901760
    %2996 = vmatpush1.msra.mxu0 %v2995
    %2997 = vmatprep.subr.mxu0 0.0
    %v2998 = vand.u32 %v649, 4294901760
    %2999 = vmatpush1.msra.mxu0 %v2998
    %3000 = vmatprep.subr.mxu0 0.0
    %v3001 = vand.u32 %v650, 4294901760
    %3002 = vmatpush1.msra.mxu0 %v3001
    %3003 = vmatprep.subr.mxu0 0.0
    %v3004 = vand.u32 %v651, 4294901760
    %3005 = vmatpush1.msra.mxu0 %v3004
    %3006 = vmatprep.subr.mxu0 0.0
    %v3007 = vand.u32 %v652, 4294901760
    %3008 = vmatpush1.msra.mxu0 %v3007
    %3009 = vmatprep.subr.mxu0 0.0
    %v3010 = vand.u32 %v653, 4294901760
    %3011 = vmatpush1.msra.mxu0 %v3010
    %3012 = vmatprep.subr.mxu0 0.0
    %v3013 = vand.u32 %v654, 4294901760
    %3014 = vmatpush1.msra.mxu0 %v3013
    %3015 = vmatprep.subr.mxu0 0.0
    %v3016 = vand.u32 %v655, 4294901760
    %3017 = vmatpush1.msra.mxu0 %v3016
    %3018 = vmatprep.subr.mxu0 0.0
    %v3019 = vand.u32 %v656, 4294901760
    %3020 = vmatpush1.msra.mxu0 %v3019
    %3021 = vmatprep.subr.mxu0 0.0
    %v3022 = vand.u32 %v657, 4294901760
    %3023 = vmatpush1.msra.mxu0 %v3022
    %3024 = vmatprep.subr.mxu0 0.0
    %v3025 = vand.u32 %v658, 4294901760
    %3026 = vmatpush1.msra.mxu0 %v3025
    %3027 = vmatprep.subr.mxu0 0.0
    %v3028 = vand.u32 %v659, 4294901760
    %3029 = vmatpush1.msra.mxu0 %v3028
    %3030 = vmatprep.subr.mxu0 0.0
    %v3031 = vand.u32 %v660, 4294901760
    %3032 = vmatpush1.msra.mxu0 %v3031
    %3033 = vmatprep.subr.mxu0 0.0
    %v3034 = vand.u32 %v661, 4294901760
    %3035 = vmatpush1.msra.mxu0 %v3034
    %3036 = vmatprep.subr.mxu0 0.0
    %v3037 = vand.u32 %v662, 4294901760
    %3038 = vmatpush1.msra.mxu0 %v3037
    %3039 = vmatprep.subr.mxu0 0.0
    %v3040 = vand.u32 %v663, 4294901760
    %3041 = vmatpush1.msra.mxu0 %v3040
    %3042 = vmatprep.subr.mxu0 0.0
    %3043 = vmatpush1.msra.mxu0 0.0
    %3044 = vmatprep.subr.mxu0 0.0
    %3045 = vmatpush1.msra.mxu0 0.0
    %3046 = vmatprep.subr.mxu0 0.0
    %3047 = vmatpush1.msra.mxu0 0.0
    %3048 = vmatprep.subr.mxu0 0.0
    %3049 = vmatpush1.msra.mxu0 0.0
    %3050 = vmatprep.subr.mxu0 0.0
    %3051 = vmatpush1.msra.mxu0 0.0
    %3052 = vmatprep.subr.mxu0 0.0
    %3053 = vmatpush1.msra.mxu0 0.0
    %3054 = vmatprep.subr.mxu0 0.0
    %3055 = vmatpush1.msra.mxu0 0.0
    %3056 = vmatprep.subr.mxu0 0.0
    %3057 = vmatpush1.msra.mxu0 0.0
    %3058 = vmatprep.subr.mxu0 0.0
    %3059 = vmatpush1.msra.mxu0 0.0
    %3060 = vmatprep.subr.mxu0 0.0
    %3061 = vmatpush1.msra.mxu0 0.0
    %3062 = vmatprep.subr.mxu0 0.0
    %3063 = vmatpush1.msra.mxu0 0.0
    %3064 = vmatprep.subr.mxu0 0.0
    %3065 = vmatpush1.msra.mxu0 0.0
    %3066 = vmatprep.subr.mxu0 0.0
    %3067 = vmatpush1.msra.mxu0 0.0
    %3068 = vmatprep.subr.mxu0 0.0
    %3069 = vmatpush1.msra.mxu0 0.0
    %3070 = vmatprep.subr.mxu0 0.0
    %3071 = vmatpush1.msra.mxu0 0.0
    %3072 = vmatprep.subr.mxu0 0.0
    %3073 = vmatpush1.msra.mxu0 0.0
    %3074 = vmatprep.mubr.f32.mxu0 0.0
    %v3075 = vand.u32 %v714, 4294901760
    %3076 = vmatmul.mubr.f32.gmra.mrb[0].mxu0 %v3075
    %v3077 = vpop.f32.mrb[0].mxu0
    %v3078 = vadd.f32 %v2991, %v3077
    %v3079 = vpop.f32.mrb[0].mxu0
    %3080 = vdwg.mxu0
    %v3081 = vadd.f32 %v715, %v3078
    %3082 = vst [vmem:[#allocation8] sm:$0xff] %v3081
    %v3083 = vld [vmem:[%s5] sm:$0xff]
    %v3084 = vadd.f32 %v710, %v711
    %v3085 = vadd.f32 %v3084, %v712
    %v3086 = vadd.f32 %v3085, %v713
    %v3087 = vadd.f32 %v3086, %v714
    %3088 = vadd.xlane.f32.xlu0 %v3087
    %v3089 = vpop.xlane.xlu0 %3088
    %v3090 = vadd.f32 %v3083, %v3089
    %vm3091 = vcmask 7168
    %3092 = vst.msk [vmem:[%s5] sm:$0xff] %vm3091, %v3090
    // Predicated region
    $region18: #{tpu_custom_call.1} parent=1 // pred_check
      _
    $region19: #{tpu_custom_call.1} parent=1 // pred_check_branch
      %3094 = sbr.rel (0) target = $region21
    $region20: #{tpu_custom_call.1} parent=1 // pred_region
      %s3096 = ssub.s32 128, 128
      %3097 = vsyncadd [#allocation7], %s3096
      %s3099 = sshll.u32 [#allocation8], 4
      %s3100 = int_to_ptr.vmem [resolvable:$true] %s3099
      %3102 = dma.vmem_to_hbm [thread:$0]  %s3100, 128, %s4, [#allocation7]
    $region21: #{tpu_custom_call.1} parent=1 // pred_fallthru
      _
    // Predicated region
    $region22: #{tpu_custom_call.1} parent=1 // pred_check
      _
    $region23: #{tpu_custom_call.1} parent=1 // pred_check_branch
      %3104 = sbr.rel (0) target = $region25
    $region24: #{tpu_custom_call.1} parent=1 // pred_region
      _
    $region25: #{tpu_custom_call.1} parent=1 // pred_fallthru
      _
    // Predicated region
    $region26: #{tpu_custom_call.1} parent=1 // pred_check
      _
    $region27: #{tpu_custom_call.1} parent=1 // pred_check_branch
      %3106 = sbr.rel (0) target = $region29
    $region28: #{tpu_custom_call.1} parent=1 // pred_region
      %3107 = dma.done [#allocation7], 128
    $region29: #{tpu_custom_call.1} parent=1 // pred_fallthru
      _
    // Predicated region
    $region30: #{tpu_custom_call.1} parent=1 // pred_check
      _
    $region31: #{tpu_custom_call.1} parent=1 // pred_check_branch
      %3109 = sbr.rel (0) target = $region33
    $region32: #{tpu_custom_call.1} parent=1 // pred_region
      _
    $region33: #{tpu_custom_call.1} parent=1 // pred_fallthru
      _
    %3110 = vsyncpa [#allocation6], 1
    %3111 = vsyncpa [#allocation7], 1

</llo_original>
